<compile_context>
chip_gen: v7x
topology: tpu7x:2x2x1
jax: 0.10.0
libtpu: 0.0.40
codegen_flags: <defaults>
</compile_context>

<pallas_src>
import functools

import numpy as np
import jax
import jax.numpy as jnp
from jax.experimental import pallas as pl
from jax.experimental.pallas import tpu as pltpu


MXU_INPUT_DTYPE = jnp.bfloat16      # set to jnp.float32 for bit-exact checks
ACT_DTYPE = MXU_INPUT_DTYPE         # dtype of chained intermediates in HBM
VMEM_LIMIT = 48 * 1024 * 1024       # safe on v5e/v6e (128 MiB) and v7x (64 MiB)


def _round_up(x, m):
    return (x + m - 1) // m * m


# ----------------------------------------------------------------------------
# Static per-resolution layout: per-image padded-flat spatial map on lanes.
#   columns [L0, L0 + Hp*Wp) hold the (H+2)x(W+2) zero-padded image row-major;
#   everything else (guard / tail) is zero.  S is 128-aligned and large enough
#   that every 3x3 tap window of the valid region stays inside [0, S).
# ----------------------------------------------------------------------------
def _res_cfg(H, W):
    Hp, Wp = H + 2, W + 2
    img = Hp * Wp
    L0 = _round_up(Wp + 1, 8)
    S = _round_up(L0 + img + Wp + 1, 128)
    return {"H": H, "W": W, "Hp": Hp, "Wp": Wp, "img": img, "L0": L0, "S": S}


def _valid_mask(cfg):
    """(1, S) 0/1 mask of the valid (non-ring, non-guard) positions."""
    m = np.zeros((1, cfg["S"]), np.float32)
    for h in range(cfg["H"]):
        start = cfg["L0"] + (h + 1) * cfg["Wp"] + 1
        m[0, start:start + cfg["W"]] = 1.0
    return m


def _interp_matrix_1d(n):
    """(2n, n) 1-D bilinear matrix, half-pixel centers (align_corners=False)."""
    m = np.zeros((2 * n, n), np.float32)
    for o in range(2 * n):
        src = max((o + 0.5) / 2.0 - 0.5, 0.0)
        i0 = min(int(np.floor(src)), n - 1)
        frac = src - i0
        i1 = min(i0 + 1, n - 1)
        m[o, i0] += 1.0 - frac
        m[o, i1] += frac
    return m


def _upsample_matrix(cfg_in, cfg_out):
    """Per-image (S_in, S_out): padded-flat -> padded-flat 2x bilinear upsample
    (ring/guard columns of the output stay exactly zero)."""
    Hi, Wi = cfg_in["H"], cfg_in["W"]
    Ho, Wo = cfg_out["H"], cfg_out["W"]
    assert Ho == 2 * Hi and Wo == 2 * Wi
    m2d = np.kron(_interp_matrix_1d(Hi), _interp_matrix_1d(Wi))  # (Ho*Wo, Hi*Wi)
    in_pos = [cfg_in["L0"] + (h + 1) * cfg_in["Wp"] + (w + 1)
              for h in range(Hi) for w in range(Wi)]
    out_pos = [cfg_out["L0"] + (h + 1) * cfg_out["Wp"] + (w + 1)
               for h in range(Ho) for w in range(Wo)]
    u = np.zeros((cfg_in["S"], cfg_out["S"]), np.float32)
    u[np.ix_(in_pos, out_pos)] = m2d.T
    return u


def _stride2_select_matrix(cfg_in, cfg_out):
    """Per-image (S_in, S_out) 0/1 matrix: stride-2 subsample of a full-res
    (stride-1) conv output, repacked into the lower-res padded-flat layout."""
    Ho, Wo = cfg_out["H"], cfg_out["W"]
    assert 2 * Ho == cfg_in["H"] and 2 * Wo == cfg_in["W"]
    d = np.zeros((cfg_in["S"], cfg_out["S"]), np.float32)
    for ho in range(Ho):
        for wo in range(Wo):
            p_in = cfg_in["L0"] + (2 * ho + 1) * cfg_in["Wp"] + (2 * wo + 1)
            p_out = cfg_out["L0"] + (ho + 1) * cfg_out["Wp"] + (wo + 1)
            d[p_in, p_out] = 1.0
    return d


# ----------------------------------------------------------------------------
# Layout glue (tiny XLA reshapes on small tensors; no im2col, no big transposes)
# ----------------------------------------------------------------------------
def _pack(x_cbhw, cfg):
    """(C, B, H, W) -> (C, B*S) padded-flat."""
    C, B = x_cbhw.shape[0], x_cbhw.shape[1]
    xp = jnp.pad(x_cbhw, ((0, 0), (0, 0), (1, 1), (1, 1)))
    flat = xp.reshape(C, B, cfg["img"])
    flat = jnp.pad(flat, ((0, 0), (0, 0),
                          (cfg["L0"], cfg["S"] - cfg["L0"] - cfg["img"])))
    return flat.reshape(C, B * cfg["S"])


def _unpack(y_flat, cfg, B):
    """(C, B*S) padded-flat -> (B, C, H, W)."""
    C = y_flat.shape[0]
    y = y_flat.reshape(C, B, cfg["S"])[:, :, cfg["L0"]:cfg["L0"] + cfg["img"]]
    y = y.reshape(C, B, cfg["Hp"], cfg["Wp"])[:, :, 1:-1, 1:-1]
    return jnp.transpose(y, (1, 0, 2, 3))


# ----------------------------------------------------------------------------
# In-kernel helpers (operate on values)
# ----------------------------------------------------------------------------
def _conv3(h, w_st, b, Wp, S):
    """3x3 conv on the padded-flat layout.  The 9 taps are lane-rolled copies
    of h stacked into one (Cout, 9*Cin) @ (9*Cin, S) MXU matmul.  Only valid
    output columns are meaningful; callers mask / select afterwards."""
    h = h.astype(jnp.float32)
    taps = []
    for t in range(9):
        di, dj = divmod(t, 3)
        off = (di - 1) * Wp + (dj - 1)          # static column shift of tap t
        taps.append(h if off == 0 else pltpu.roll(h, (-off) % S, axis=1))
    stacked = jnp.concatenate(taps, axis=0).astype(w_st.dtype)   # (9*Cin, S)
    return jnp.dot(w_st, stacked, preferred_element_type=jnp.float32) + b


def _mm(w, h, b=None):
    """1x1 conv: (Cout, Cin) @ (Cin, S) with f32 accumulation."""
    y = jnp.dot(w, h.astype(w.dtype), preferred_element_type=jnp.float32)
    return y if b is None else y + b


# ----------------------------------------------------------------------------
# Kernel bodies (one grid step == one image; full-width lane-dense stores)
# ----------------------------------------------------------------------------
def _down_block_kernel(x_ref, wcs_ref, bcs_ref, dsel_ref, w3_ref, b3_ref,
                       w1_ref, b1_ref, mask_ref, o_ref,
                       *, Wp_in, S_in, Wp_out, S_out):
    # con_stride evaluated at every full-res position (stride 1) ...
    t_full = _conv3(x_ref[...], wcs_ref[...], bcs_ref[...], Wp_in, S_in)
    # ... fused stride-2 selection + repack to the lower-res padded-flat layout
    t = jnp.dot(t_full.astype(dsel_ref.dtype), dsel_ref[...],
                preferred_element_type=jnp.float32)
    # conv_3 -> BN -> relu  (BN folded into w3/b3)
    y0 = jnp.maximum(_conv3(t, w3_ref[...], b3_ref[...], Wp_out, S_out), 0.0)
    # conv_1 -> BN -> relu  (fused epilogue)
    y1 = jnp.maximum(_mm(w1_ref[...], y0, b1_ref[...]), 0.0)
    # single lane-dense store of both results; ring/guard columns zeroed
    o_ref[...] = (jnp.concatenate([y0, y1], axis=0) * mask_ref[...]).astype(o_ref.dtype)


def _up_mid_kernel(xq_ref, up_ref, w3p_ref, b3p_ref, w1bn_ref, b1bn_ref,
                   w1p_ref, b1p_ref, mask_ref, o_ref, *, Wp, S):
    # 2x bilinear upsample as a per-image (C, S_in) @ (S_in, S_out) matmul
    u = jnp.dot(xq_ref[...].astype(up_ref.dtype), up_ref[...],
                preferred_element_type=jnp.float32)
    c = _conv3(u, w3p_ref[...], b3p_ref[...], Wp, S)                 # conv_3
    d = jnp.maximum(_mm(w1bn_ref[...], c, b1bn_ref[...]), 0.0)       # conv_1+BN+relu
    e = _mm(w1p_ref[...], d, b1p_ref[...])                           # conv_1
    o_ref[...] = (e * mask_ref[...]).astype(o_ref.dtype)


def _gate_mid_kernel(x0_ref, x2_ref, w3bn_ref, b3bn_ref, wcon_ref, bcon_ref,
                     w1bn_ref, b1bn_ref, mask_ref, o_ref, *, Wp, S):
    m = mask_ref[...]
    # x1 = relu(bn(conv_3(x0))), ring zeroed so it can feed the next 3x3 conv
    x1 = jnp.maximum(_conv3(x0_ref[...], w3bn_ref[...], b3bn_ref[...], Wp, S), 0.0) * m
    x2 = x2_ref[...].astype(jnp.float32)
    # in-register concat: [x1 * sigmoid(x2) * 2 ; x2]  (never hits HBM)
    z = jnp.concatenate([x1 * jax.nn.sigmoid(x2) * 2.0, x2], axis=0)
    y = jnp.maximum(_conv3(z, wcon_ref[...], bcon_ref[...], Wp, S), 0.0)  # con+BN+relu
    y = jnp.maximum(_mm(w1bn_ref[...], y, b1bn_ref[...]), 0.0)           # conv_1+BN+relu
    o_ref[...] = (y * m).astype(o_ref.dtype)


def _final_kernel(x3_ref, xin_ref, up_ref, w3p_ref, b3p_ref, w1bn_ref, b1bn_ref,
                  w1p_ref, b1p_ref, wcon_ref, bcon_ref, mask_ref, o_ref, *, Wp, S):
    m = mask_ref[...]
    u = jnp.dot(x3_ref[...].astype(up_ref.dtype), up_ref[...],
                preferred_element_type=jnp.float32)                       # upsample x2
    c = _conv3(u, w3p_ref[...], b3p_ref[...], Wp, S)                      # conv_3
    d = jnp.maximum(_mm(w1bn_ref[...], c, b1bn_ref[...]), 0.0)            # conv_1+BN+relu
    e = _mm(w1p_ref[...], d, b1p_ref[...]) * m                            # conv_1 (= x3)
    xin = xin_ref[...].astype(jnp.float32)
    # in-register concat: [x3 ; x * sigmoid(x3) * 2]
    z = jnp.concatenate([e, xin * jax.nn.sigmoid(e) * 2.0], axis=0)
    y = jnp.maximum(_conv3(z, wcon_ref[...], bcon_ref[...], Wp, S), 0.0)  # con+BN+relu
    o_ref[...] = (y * m).astype(o_ref.dtype)


# ----------------------------------------------------------------------------
# pallas_call wrappers
# ----------------------------------------------------------------------------
def _img_spec(rows, S):
    return pl.BlockSpec((rows, S), lambda b: (0, b))


def _const_spec(arr):
    nd = arr.ndim
    return pl.BlockSpec(arr.shape, lambda b: (0,) * nd)


def _stage_call(kernel, operands, in_specs, out_rows, S_out, B, out_dtype):
    return pl.pallas_call(
        kernel,
        out_shape=jax.ShapeDtypeStruct((out_rows, B * S_out), out_dtype),
        grid=(B,),
        in_specs=in_specs,
        out_specs=pl.BlockSpec((out_rows, S_out), lambda b: (0, b)),
        compiler_params=pltpu.CompilerParams(
            dimension_semantics=("parallel",),
            vmem_limit_bytes=VMEM_LIMIT),
    )(*operands)


# ----------------------------------------------------------------------------
# Parameters (deterministic synthetic init) and forward pass
# ----------------------------------------------------------------------------
def init_params(C, key):
    ks = jax.random.split(key, 12)
    w = lambda k, s: 0.1 * jax.random.normal(k, s, jnp.float32)
    return {
        "conv_1_w": w(ks[0], (C, C, 1, 1)), "conv_1_b": w(ks[1], (C,)),
        "conv_3_w": w(ks[2], (C, C, 3, 3)), "conv_3_b": w(ks[3], (C,)),
        "con_stride_w": w(ks[4], (C, C, 3, 3)), "con_stride_b": w(ks[5], (C,)),
        "con_w": w(ks[6], (C, 2 * C, 3, 3)), "con_b": w(ks[7], (C,)),
        "bn_gamma": 1.0 + 0.1 * jax.random.normal(ks[8], (C,), jnp.float32),
        "bn_beta": 0.1 * jax.random.normal(ks[9], (C,), jnp.float32),
        "bn_mean": 0.1 * jax.random.normal(ks[10], (C,), jnp.float32),
        "bn_var": 1.0 + 0.1 * jnp.abs(jax.random.normal(ks[11], (C,), jnp.float32)),
    }


def spatial_att_new_forward(x_nchw, p):
    eps = 1e-5
    B, C, H, W = x_nchw.shape
    assert H % 4 == 0 and W % 4 == 0  # see TODO(synk) at top: crop branch not needed

    # eval-mode BatchNorm folded into conv weights/biases (shared bn module)
    scale = p["bn_gamma"] / jnp.sqrt(p["bn_var"] + eps)
    shift = p["bn_beta"] - p["bn_mean"] * scale

    def stack3(w):   # (Cout, Cin, 3, 3) -> (Cout, 9*Cin), tap-major columns
        co, ci = w.shape[0], w.shape[1]
        return jnp.transpose(w, (0, 2, 3, 1)).reshape(co, 9 * ci)

    mxu = MXU_INPUT_DTYPE
    w1_bn = (p["conv_1_w"][:, :, 0, 0] * scale[:, None]).astype(mxu)
    b1_bn = (scale * p["conv_1_b"] + shift).reshape(C, 1)
    w1_p = p["conv_1_w"][:, :, 0, 0].astype(mxu)
    b1_p = p["conv_1_b"].reshape(C, 1)

    w3_bn = stack3(p["conv_3_w"] * scale[:, None, None, None]).astype(mxu)
    b3_bn = (scale * p["conv_3_b"] + shift).reshape(C, 1)
    w3_p = stack3(p["conv_3_w"]).astype(mxu)
    b3_p = p["conv_3_b"].reshape(C, 1)

    wcs = stack3(p["con_stride_w"]).astype(mxu)
    bcs = p["con_stride_b"].reshape(C, 1)

    wcon_bn = stack3(p["con_w"] * scale[:, None, None, None]).astype(mxu)
    bcon_bn = (scale * p["con_b"] + shift).reshape(C, 1)

    # static layout constants (built once at trace time)
    cfg_f = _res_cfg(H, W)
    cfg_h = _res_cfg(H // 2, W // 2)
    cfg_q = _res_cfg(H // 4, W // 4)
    mask_f = jnp.asarray(_valid_mask(cfg_f))
    mask_h = jnp.asarray(_valid_mask(cfg_h))
    mask_q = jnp.asarray(_valid_mask(cfg_q))
    dsel_f2h = jnp.asarray(_stride2_select_matrix(cfg_f, cfg_h)).astype(mxu)
    dsel_h2q = jnp.asarray(_stride2_select_matrix(cfg_h, cfg_q)).astype(mxu)
    up_q2h = jnp.asarray(_upsample_matrix(cfg_q, cfg_h)).astype(mxu)
    up_h2f = jnp.asarray(_upsample_matrix(cfg_h, cfg_f)).astype(mxu)

    # NCHW -> lane-dense padded-flat (C, B*S_full), f32 (also used as the gate)
    x_packed = _pack(jnp.transpose(x_nchw, (1, 0, 2, 3)).astype(jnp.float32), cfg_f)

    # ---- stage 1: x0 = relu(bn(conv_3(con_stride(x)))); x1a = relu(bn(conv_1(x0)))
    ops = [x_packed, wcs, bcs, dsel_f2h, w3_bn, b3_bn, w1_bn, b1_bn, mask_h]
    specs = [_img_spec(C, cfg_f["S"])] + [_const_spec(o) for o in ops[1:]]
    y01 = _stage_call(
        functools.partial(_down_block_kernel, Wp_in=cfg_f["Wp"], S_in=cfg_f["S"],
                          Wp_out=cfg_h["Wp"], S_out=cfg_h["S"]),
        ops, specs, 2 * C, cfg_h["S"], B, ACT_DTYPE)
    x0, x1a = y01[:C], y01[C:]

    # ---- stage 2: x2q = relu(bn(conv_1(relu(bn(conv_3(con_stride(x1a)))))))
    ops = [x1a, wcs, bcs, dsel_h2q, w3_bn, b3_bn, w1_bn, b1_bn, mask_q]
    specs = [_img_spec(C, cfg_h["S"])] + [_const_spec(o) for o in ops[1:]]
    y12 = _stage_call(
        functools.partial(_down_block_kernel, Wp_in=cfg_h["Wp"], S_in=cfg_h["S"],
                          Wp_out=cfg_q["Wp"], S_out=cfg_q["S"]),
        ops, specs, 2 * C, cfg_q["S"], B, ACT_DTYPE)
    x2q = y12[C:]

    # ---- stage 3: x2 = conv_1(relu(bn(conv_1(conv_3(upsample2x(x2q))))))
    ops = [x2q, up_q2h, w3_p, b3_p, w1_bn, b1_bn, w1_p, b1_p, mask_h]
    specs = [_img_spec(C, cfg_q["S"])] + [_const_spec(o) for o in ops[1:]]
    x2 = _stage_call(
        functools.partial(_up_mid_kernel, Wp=cfg_h["Wp"], S=cfg_h["S"]),
        ops, specs, C, cfg_h["S"], B, ACT_DTYPE)

    # ---- stage 4: x1 = relu(bn(conv_3(x0))); x3 = cat([x1*sigmoid(x2)*2, x2]);
    #               x3a = relu(bn(conv_1(relu(bn(con(x3))))))
    ops = [x0, x2, w3_bn, b3_bn, wcon_bn, bcon_bn, w1_bn, b1_bn, mask_h]
    specs = [_img_spec(C, cfg_h["S"]), _img_spec(C, cfg_h["S"])] + \
            [_const_spec(o) for o in ops[2:]]
    x3a = _stage_call(
        functools.partial(_gate_mid_kernel, Wp=cfg_h["Wp"], S=cfg_h["S"]),
        ops, specs, C, cfg_h["S"], B, ACT_DTYPE)

    # ---- stage 5: x3 = conv_1(relu(bn(conv_1(conv_3(upsample2x(x3a))))));
    #               out = relu(bn(con(cat([x3, x*sigmoid(x3)*2]))))
    ops = [x3a, x_packed, up_h2f, w3_p, b3_p, w1_bn, b1_bn, w1_p, b1_p,
           wcon_bn, bcon_bn, mask_f]
    specs = [_img_spec(C, cfg_h["S"]), _img_spec(C, cfg_f["S"])] + \
            [_const_spec(o) for o in ops[2:]]
    out = _stage_call(
        functools.partial(_final_kernel, Wp=cfg_f["Wp"], S=cfg_f["S"]),
        ops, specs, C, cfg_f["S"], B, jnp.float32)

    return _unpack(out, cfg_f, B)


if __name__ == "__main__":
    C = 4
    key = jax.random.PRNGKey(0)
    kp, kx = jax.random.split(key)
    params = init_params(C, kp)
    x = jax.random.normal(kx, (2, C, 16, 16), jnp.float32)

    fwd = jax.jit(lambda inp: spatial_att_new_forward(inp, params))
    out = jax.block_until_ready(fwd(x))

    assert out.shape == (2, C, 16, 16), out.shape
    assert bool(jnp.all(jnp.isfinite(out)))
    print("KERNEL_OK")
</pallas_src>

<mosaic_0001>
module attributes {stable_mosaic.version = 11 : i64} {
  func.func @_up_mid_kernel(%arg0: i32, %arg1: memref<4x128xbf16, #tpu.memory_space<vmem>>, %arg2: memref<128x128xbf16, #tpu.memory_space<vmem>>, %arg3: memref<4x36xbf16, #tpu.memory_space<vmem>>, %arg4: memref<4x1xf32, #tpu.memory_space<vmem>>, %arg5: memref<4x4xbf16, #tpu.memory_space<vmem>>, %arg6: memref<4x1xf32, #tpu.memory_space<vmem>>, %arg7: memref<4x4xbf16, #tpu.memory_space<vmem>>, %arg8: memref<4x1xf32, #tpu.memory_space<vmem>>, %arg9: memref<1x128xf32, #tpu.memory_space<vmem>>, %arg10: memref<4x128xbf16, #tpu.memory_space<vmem>>) attributes {dimension_semantics = [#tpu.dimension_semantics<parallel>], iteration_bounds = array<i64: 2>, scalar_prefetch = 0 : i64, scratch_operands = 0 : i64, tpu.core_type = #tpu.core_type<tc>, window_params = [{transform_indices = @transform_0, window_bounds = array<i64: 4, 128>}, {pipeline_mode = #tpu.pipeline_mode<synchronous>, transform_indices = @transform_1, window_bounds = array<i64: 128, 128>}, {pipeline_mode = #tpu.pipeline_mode<synchronous>, transform_indices = @transform_2, window_bounds = array<i64: 4, 36>}, {pipeline_mode = #tpu.pipeline_mode<synchronous>, transform_indices = @transform_3, window_bounds = array<i64: 4, 1>}, {pipeline_mode = #tpu.pipeline_mode<synchronous>, transform_indices = @transform_4, window_bounds = array<i64: 4, 4>}, {pipeline_mode = #tpu.pipeline_mode<synchronous>, transform_indices = @transform_5, window_bounds = array<i64: 4, 1>}, {pipeline_mode = #tpu.pipeline_mode<synchronous>, transform_indices = @transform_6, window_bounds = array<i64: 4, 4>}, {pipeline_mode = #tpu.pipeline_mode<synchronous>, transform_indices = @transform_7, window_bounds = array<i64: 4, 1>}, {pipeline_mode = #tpu.pipeline_mode<synchronous>, transform_indices = @transform_8, window_bounds = array<i64: 1, 128>}, {transform_indices = @transform_9, window_bounds = array<i64: 4, 128>}]} {
    %c0 = arith.constant 0 : index
    %c0_0 = arith.constant 0 : index
    %0 = vector.load %arg1[%c0, %c0_0] : memref<4x128xbf16, #tpu.memory_space<vmem>>, vector<4x128xbf16>
    %c0_1 = arith.constant 0 : index
    %c0_2 = arith.constant 0 : index
    %1 = vector.load %arg2[%c0_1, %c0_2] : memref<128x128xbf16, #tpu.memory_space<vmem>>, vector<128x128xbf16>
    %cst = arith.constant dense<0.000000e+00> : vector<4x128xf32>
    %2 = tpu.matmul %0, %1, %cst {dimension_numbers = #tpu.dot_dimension_numbers<[1], [0], [0], [1], [0, 0, 1, 1], [], []>} : vector<4x128xbf16>, vector<128x128xbf16>, vector<4x128xf32> -> vector<4x128xf32>
    %c0_3 = arith.constant 0 : index
    %c0_4 = arith.constant 0 : index
    %3 = vector.load %arg3[%c0_3, %c0_4] : memref<4x36xbf16, #tpu.memory_space<vmem>>, vector<4x36xbf16>
    %c0_5 = arith.constant 0 : index
    %c0_6 = arith.constant 0 : index
    %4 = vector.load %arg4[%c0_5, %c0_6] : memref<4x1xf32, #tpu.memory_space<vmem>>, vector<4x1xf32>
    %c11_i32 = arith.constant 11 : i32
    %5 = tpu.dynamic_rotate %2 by %c11_i32 dim 1 : vector<4x128xf32>, i32 -> vector<4x128xf32>
    %c10_i32 = arith.constant 10 : i32
    %6 = tpu.dynamic_rotate %2 by %c10_i32 dim 1 : vector<4x128xf32>, i32 -> vector<4x128xf32>
    %c9_i32 = arith.constant 9 : i32
    %7 = tpu.dynamic_rotate %2 by %c9_i32 dim 1 : vector<4x128xf32>, i32 -> vector<4x128xf32>
    %c1_i32 = arith.constant 1 : i32
    %8 = tpu.dynamic_rotate %2 by %c1_i32 dim 1 : vector<4x128xf32>, i32 -> vector<4x128xf32>
    %c127_i32 = arith.constant 127 : i32
    %9 = tpu.dynamic_rotate %2 by %c127_i32 dim 1 : vector<4x128xf32>, i32 -> vector<4x128xf32>
    %c119_i32 = arith.constant 119 : i32
    %10 = tpu.dynamic_rotate %2 by %c119_i32 dim 1 : vector<4x128xf32>, i32 -> vector<4x128xf32>
    %c118_i32 = arith.constant 118 : i32
    %11 = tpu.dynamic_rotate %2 by %c118_i32 dim 1 : vector<4x128xf32>, i32 -> vector<4x128xf32>
    %c117_i32 = arith.constant 117 : i32
    %12 = tpu.dynamic_rotate %2 by %c117_i32 dim 1 : vector<4x128xf32>, i32 -> vector<4x128xf32>
    %13 = tpu.concatenate %5, %6, %7, %8, %2, %9, %10, %11, %12 in 0 : vector<4x128xf32>, vector<4x128xf32>, vector<4x128xf32>, vector<4x128xf32>, vector<4x128xf32>, vector<4x128xf32>, vector<4x128xf32>, vector<4x128xf32>, vector<4x128xf32> -> vector<36x128xf32>
    %14 = arith.truncf %13 : vector<36x128xf32> to vector<36x128xbf16>
    %cst_7 = arith.constant dense<0.000000e+00> : vector<4x128xf32>
    %15 = tpu.matmul %3, %14, %cst_7 {dimension_numbers = #tpu.dot_dimension_numbers<[1], [0], [0], [1], [0, 0, 1, 1], [], []>} : vector<4x36xbf16>, vector<36x128xbf16>, vector<4x128xf32> -> vector<4x128xf32>
    %16 = vector.broadcast %4 : vector<4x1xf32> to vector<4x128xf32>
    %17 = arith.addf %15, %16 : vector<4x128xf32>
    %c0_8 = arith.constant 0 : index
    %c0_9 = arith.constant 0 : index
    %18 = vector.load %arg5[%c0_8, %c0_9] : memref<4x4xbf16, #tpu.memory_space<vmem>>, vector<4x4xbf16>
    %c0_10 = arith.constant 0 : index
    %c0_11 = arith.constant 0 : index
    %19 = vector.load %arg6[%c0_10, %c0_11] : memref<4x1xf32, #tpu.memory_space<vmem>>, vector<4x1xf32>
    %20 = arith.truncf %17 : vector<4x128xf32> to vector<4x128xbf16>
    %cst_12 = arith.constant dense<0.000000e+00> : vector<4x128xf32>
    %21 = tpu.matmul %18, %20, %cst_12 {dimension_numbers = #tpu.dot_dimension_numbers<[1], [0], [0], [1], [0, 0, 1, 1], [], []>} : vector<4x4xbf16>, vector<4x128xbf16>, vector<4x128xf32> -> vector<4x128xf32>
    %22 = vector.broadcast %19 : vector<4x1xf32> to vector<4x128xf32>
    %23 = arith.addf %21, %22 : vector<4x128xf32>
    %cst_13 = arith.constant 0.000000e+00 : f32
    %24 = vector.broadcast %cst_13 : f32 to vector<4x128xf32>
    %25 = arith.maximumf %23, %24 : vector<4x128xf32>
    %c0_14 = arith.constant 0 : index
    %c0_15 = arith.constant 0 : index
    %26 = vector.load %arg7[%c0_14, %c0_15] : memref<4x4xbf16, #tpu.memory_space<vmem>>, vector<4x4xbf16>
    %c0_16 = arith.constant 0 : index
    %c0_17 = arith.constant 0 : index
    %27 = vector.load %arg8[%c0_16, %c0_17] : memref<4x1xf32, #tpu.memory_space<vmem>>, vector<4x1xf32>
    %28 = arith.truncf %25 : vector<4x128xf32> to vector<4x128xbf16>
    %cst_18 = arith.constant dense<0.000000e+00> : vector<4x128xf32>
    %29 = tpu.matmul %26, %28, %cst_18 {dimension_numbers = #tpu.dot_dimension_numbers<[1], [0], [0], [1], [0, 0, 1, 1], [], []>} : vector<4x4xbf16>, vector<4x128xbf16>, vector<4x128xf32> -> vector<4x128xf32>
    %30 = vector.broadcast %27 : vector<4x1xf32> to vector<4x128xf32>
    %31 = arith.addf %29, %30 : vector<4x128xf32>
    %c0_19 = arith.constant 0 : index
    %c0_20 = arith.constant 0 : index
    %32 = vector.load %arg9[%c0_19, %c0_20] : memref<1x128xf32, #tpu.memory_space<vmem>>, vector<1x128xf32>
    %33 = vector.broadcast %32 : vector<1x128xf32> to vector<4x128xf32>
    %34 = arith.mulf %31, %33 : vector<4x128xf32>
    %35 = arith.truncf %34 : vector<4x128xf32> to vector<4x128xbf16>
    %c0_21 = arith.constant 0 : index
    %c0_22 = arith.constant 0 : index
    %36 = vector.load %arg10[%c0_21, %c0_22] : memref<4x128xbf16, #tpu.memory_space<vmem>>, vector<4x128xbf16>
    tpu.vector_store %arg10[%c0_21, %c0_22], %35 {strides = array<i32>} : memref<4x128xbf16, #tpu.memory_space<vmem>>, vector<4x128xbf16>,
    return
  }
  func.func @transform_0(%arg0: i32) -> (i32, i32) {
    %c0_i32 = arith.constant 0 : i32
    %c0_i32_0 = arith.constant 0 : i32
    return %c0_i32, %arg0 : i32, i32
  }
  func.func @transform_1(%arg0: i32) -> (i32, i32) {
    %c0_i32 = arith.constant 0 : i32
    %c0_i32_0 = arith.constant 0 : i32
    %c0_i32_1 = arith.constant 0 : i32
    return %c0_i32, %c0_i32_0 : i32, i32
  }
  func.func @transform_2(%arg0: i32) -> (i32, i32) {
    %c0_i32 = arith.constant 0 : i32
    %c0_i32_0 = arith.constant 0 : i32
    %c0_i32_1 = arith.constant 0 : i32
    return %c0_i32, %c0_i32_0 : i32, i32
  }
  func.func @transform_3(%arg0: i32) -> (i32, i32) {
    %c0_i32 = arith.constant 0 : i32
    %c0_i32_0 = arith.constant 0 : i32
    %c0_i32_1 = arith.constant 0 : i32
    return %c0_i32, %c0_i32_0 : i32, i32
  }
  func.func @transform_4(%arg0: i32) -> (i32, i32) {
    %c0_i32 = arith.constant 0 : i32
    %c0_i32_0 = arith.constant 0 : i32
    %c0_i32_1 = arith.constant 0 : i32
    return %c0_i32, %c0_i32_0 : i32, i32
  }
  func.func @transform_5(%arg0: i32) -> (i32, i32) {
    %c0_i32 = arith.constant 0 : i32
    %c0_i32_0 = arith.constant 0 : i32
    %c0_i32_1 = arith.constant 0 : i32
    return %c0_i32, %c0_i32_0 : i32, i32
  }
  func.func @transform_6(%arg0: i32) -> (i32, i32) {
    %c0_i32 = arith.constant 0 : i32
    %c0_i32_0 = arith.constant 0 : i32
    %c0_i32_1 = arith.constant 0 : i32
    return %c0_i32, %c0_i32_0 : i32, i32
  }
  func.func @transform_7(%arg0: i32) -> (i32, i32) {
    %c0_i32 = arith.constant 0 : i32
    %c0_i32_0 = arith.constant 0 : i32
    %c0_i32_1 = arith.constant 0 : i32
    return %c0_i32, %c0_i32_0 : i32, i32
  }
  func.func @transform_8(%arg0: i32) -> (i32, i32) {
    %c0_i32 = arith.constant 0 : i32
    %c0_i32_0 = arith.constant 0 : i32
    %c0_i32_1 = arith.constant 0 : i32
    return %c0_i32, %c0_i32_0 : i32, i32
  }
  func.func @transform_9(%arg0: i32) -> (i32, i32) {
    %c0_i32 = arith.constant 0 : i32
    %c0_i32_0 = arith.constant 0 : i32
    return %c0_i32, %arg0 : i32, i32
  }
}

module attributes {stable_mosaic.version = 11 : i64} {
  func.func @_down_block_kernel(%arg0: i32, %arg1: memref<4x384xf32, #tpu.memory_space<vmem>>, %arg2: memref<4x36xbf16, #tpu.memory_space<vmem>>, %arg3: memref<4x1xf32, #tpu.memory_space<vmem>>, %arg4: memref<384x128xbf16, #tpu.memory_space<vmem>>, %arg5: memref<4x36xbf16, #tpu.memory_space<vmem>>, %arg6: memref<4x1xf32, #tpu.memory_space<vmem>>, %arg7: memref<4x4xbf16, #tpu.memory_space<vmem>>, %arg8: memref<4x1xf32, #tpu.memory_space<vmem>>, %arg9: memref<1x128xf32, #tpu.memory_space<vmem>>, %arg10: memref<8x128xbf16, #tpu.memory_space<vmem>>) attributes {dimension_semantics = [#tpu.dimension_semantics<parallel>], iteration_bounds = array<i64: 2>, scalar_prefetch = 0 : i64, scratch_operands = 0 : i64, tpu.core_type = #tpu.core_type<tc>, window_params = [{transform_indices = @transform_0, window_bounds = array<i64: 4, 384>}, {pipeline_mode = #tpu.pipeline_mode<synchronous>, transform_indices = @transform_1, window_bounds = array<i64: 4, 36>}, {pipeline_mode = #tpu.pipeline_mode<synchronous>, transform_indices = @transform_2, window_bounds = array<i64: 4, 1>}, {pipeline_mode = #tpu.pipeline_mode<synchronous>, transform_indices = @transform_3, window_bounds = array<i64: 384, 128>}, {pipeline_mode = #tpu.pipeline_mode<synchronous>, transform_indices = @transform_4, window_bounds = array<i64: 4, 36>}, {pipeline_mode = #tpu.pipeline_mode<synchronous>, transform_indices = @transform_5, window_bounds = array<i64: 4, 1>}, {pipeline_mode = #tpu.pipeline_mode<synchronous>, transform_indices = @transform_6, window_bounds = array<i64: 4, 4>}, {pipeline_mode = #tpu.pipeline_mode<synchronous>, transform_indices = @transform_7, window_bounds = array<i64: 4, 1>}, {pipeline_mode = #tpu.pipeline_mode<synchronous>, transform_indices = @transform_8, window_bounds = array<i64: 1, 128>}, {transform_indices = @transform_9, window_bounds = array<i64: 8, 128>}]} {
    %c0 = arith.constant 0 : index
    %c0_0 = arith.constant 0 : index
    %0 = vector.load %arg1[%c0, %c0_0] : memref<4x384xf32, #tpu.memory_space<vmem>>, vector<4x384xf32>
    %c0_1 = arith.constant 0 : index
    %c0_2 = arith.constant 0 : index
    %1 = vector.load %arg2[%c0_1, %c0_2] : memref<4x36xbf16, #tpu.memory_space<vmem>>, vector<4x36xbf16>
    %c0_3 = arith.constant 0 : index
    %c0_4 = arith.constant 0 : index
    %2 = vector.load %arg3[%c0_3, %c0_4] : memref<4x1xf32, #tpu.memory_space<vmem>>, vector<4x1xf32>
    %c19_i32 = arith.constant 19 : i32
    %3 = tpu.dynamic_rotate %0 by %c19_i32 dim 1 : vector<4x384xf32>, i32 -> vector<4x384xf32>
    %c18_i32 = arith.constant 18 : i32
    %4 = tpu.dynamic_rotate %0 by %c18_i32 dim 1 : vector<4x384xf32>, i32 -> vector<4x384xf32>
    %c17_i32 = arith.constant 17 : i32
    %5 = tpu.dynamic_rotate %0 by %c17_i32 dim 1 : vector<4x384xf32>, i32 -> vector<4x384xf32>
    %c1_i32 = arith.constant 1 : i32
    %6 = tpu.dynamic_rotate %0 by %c1_i32 dim 1 : vector<4x384xf32>, i32 -> vector<4x384xf32>
    %c383_i32 = arith.constant 383 : i32
    %7 = tpu.dynamic_rotate %0 by %c383_i32 dim 1 : vector<4x384xf32>, i32 -> vector<4x384xf32>
    %c367_i32 = arith.constant 367 : i32
    %8 = tpu.dynamic_rotate %0 by %c367_i32 dim 1 : vector<4x384xf32>, i32 -> vector<4x384xf32>
    %c366_i32 = arith.constant 366 : i32
    %9 = tpu.dynamic_rotate %0 by %c366_i32 dim 1 : vector<4x384xf32>, i32 -> vector<4x384xf32>
    %c365_i32 = arith.constant 365 : i32
    %10 = tpu.dynamic_rotate %0 by %c365_i32 dim 1 : vector<4x384xf32>, i32 -> vector<4x384xf32>
    %11 = tpu.concatenate %3, %4, %5, %6, %0, %7, %8, %9, %10 in 0 : vector<4x384xf32>, vector<4x384xf32>, vector<4x384xf32>, vector<4x384xf32>, vector<4x384xf32>, vector<4x384xf32>, vector<4x384xf32>, vector<4x384xf32>, vector<4x384xf32> -> vector<36x384xf32>
    %12 = arith.truncf %11 : vector<36x384xf32> to vector<36x384xbf16>
    %cst = arith.constant dense<0.000000e+00> : vector<4x384xf32>
    %13 = tpu.matmul %1, %12, %cst {dimension_numbers = #tpu.dot_dimension_numbers<[1], [0], [0], [1], [0, 0, 1, 1], [], []>} : vector<4x36xbf16>, vector<36x384xbf16>, vector<4x384xf32> -> vector<4x384xf32>
    %14 = vector.broadcast %2 : vector<4x1xf32> to vector<4x384xf32>
    %15 = arith.addf %13, %14 : vector<4x384xf32>
    %16 = arith.truncf %15 : vector<4x384xf32> to vector<4x384xbf16>
    %c0_5 = arith.constant 0 : index
    %c0_6 = arith.constant 0 : index
    %17 = vector.load %arg4[%c0_5, %c0_6] : memref<384x128xbf16, #tpu.memory_space<vmem>>, vector<384x128xbf16>
    %cst_7 = arith.constant dense<0.000000e+00> : vector<4x128xf32>
    %18 = tpu.matmul %16, %17, %cst_7 {dimension_numbers = #tpu.dot_dimension_numbers<[1], [0], [0], [1], [0, 0, 1, 1], [], []>} : vector<4x384xbf16>, vector<384x128xbf16>, vector<4x128xf32> -> vector<4x128xf32>
    %c0_8 = arith.constant 0 : index
    %c0_9 = arith.constant 0 : index
    %19 = vector.load %arg5[%c0_8, %c0_9] : memref<4x36xbf16, #tpu.memory_space<vmem>>, vector<4x36xbf16>
    %c0_10 = arith.constant 0 : index
    %c0_11 = arith.constant 0 : index
    %20 = vector.load %arg6[%c0_10, %c0_11] : memref<4x1xf32, #tpu.memory_space<vmem>>, vector<4x1xf32>
    %c11_i32 = arith.constant 11 : i32
    %21 = tpu.dynamic_rotate %18 by %c11_i32 dim 1 : vector<4x128xf32>, i32 -> vector<4x128xf32>
    %c10_i32 = arith.constant 10 : i32
    %22 = tpu.dynamic_rotate %18 by %c10_i32 dim 1 : vector<4x128xf32>, i32 -> vector<4x128xf32>
    %c9_i32 = arith.constant 9 : i32
    %23 = tpu.dynamic_rotate %18 by %c9_i32 dim 1 : vector<4x128xf32>, i32 -> vector<4x128xf32>
    %c1_i32_12 = arith.constant 1 : i32
    %24 = tpu.dynamic_rotate %18 by %c1_i32_12 dim 1 : vector<4x128xf32>, i32 -> vector<4x128xf32>
    %c127_i32 = arith.constant 127 : i32
    %25 = tpu.dynamic_rotate %18 by %c127_i32 dim 1 : vector<4x128xf32>, i32 -> vector<4x128xf32>
    %c119_i32 = arith.constant 119 : i32
    %26 = tpu.dynamic_rotate %18 by %c119_i32 dim 1 : vector<4x128xf32>, i32 -> vector<4x128xf32>
    %c118_i32 = arith.constant 118 : i32
    %27 = tpu.dynamic_rotate %18 by %c118_i32 dim 1 : vector<4x128xf32>, i32 -> vector<4x128xf32>
    %c117_i32 = arith.constant 117 : i32
    %28 = tpu.dynamic_rotate %18 by %c117_i32 dim 1 : vector<4x128xf32>, i32 -> vector<4x128xf32>
    %29 = tpu.concatenate %21, %22, %23, %24, %18, %25, %26, %27, %28 in 0 : vector<4x128xf32>, vector<4x128xf32>, vector<4x128xf32>, vector<4x128xf32>, vector<4x128xf32>, vector<4x128xf32>, vector<4x128xf32>, vector<4x128xf32>, vector<4x128xf32> -> vector<36x128xf32>
    %30 = arith.truncf %29 : vector<36x128xf32> to vector<36x128xbf16>
    %cst_13 = arith.constant dense<0.000000e+00> : vector<4x128xf32>
    %31 = tpu.matmul %19, %30, %cst_13 {dimension_numbers = #tpu.dot_dimension_numbers<[1], [0], [0], [1], [0, 0, 1, 1], [], []>} : vector<4x36xbf16>, vector<36x128xbf16>, vector<4x128xf32> -> vector<4x128xf32>
    %32 = vector.broadcast %20 : vector<4x1xf32> to vector<4x128xf32>
    %33 = arith.addf %31, %32 : vector<4x128xf32>
    %cst_14 = arith.constant 0.000000e+00 : f32
    %34 = vector.broadcast %cst_14 : f32 to vector<4x128xf32>
    %35 = arith.maximumf %33, %34 : vector<4x128xf32>
    %c0_15 = arith.constant 0 : index
    %c0_16 = arith.constant 0 : index
    %36 = vector.load %arg7[%c0_15, %c0_16] : memref<4x4xbf16, #tpu.memory_space<vmem>>, vector<4x4xbf16>
    %c0_17 = arith.constant 0 : index
    %c0_18 = arith.constant 0 : index
    %37 = vector.load %arg8[%c0_17, %c0_18] : memref<4x1xf32, #tpu.memory_space<vmem>>, vector<4x1xf32>
    %38 = arith.truncf %35 : vector<4x128xf32> to vector<4x128xbf16>
    %cst_19 = arith.constant dense<0.000000e+00> : vector<4x128xf32>
    %39 = tpu.matmul %36, %38, %cst_19 {dimension_numbers = #tpu.dot_dimension_numbers<[1], [0], [0], [1], [0, 0, 1, 1], [], []>} : vector<4x4xbf16>, vector<4x128xbf16>, vector<4x128xf32> -> vector<4x128xf32>
    %40 = vector.broadcast %37 : vector<4x1xf32> to vector<4x128xf32>
    %41 = arith.addf %39, %40 : vector<4x128xf32>
    %cst_20 = arith.constant 0.000000e+00 : f32
    %42 = vector.broadcast %cst_20 : f32 to vector<4x128xf32>
    %43 = arith.maximumf %41, %42 : vector<4x128xf32>
    %44 = tpu.concatenate %35, %43 in 0 : vector<4x128xf32>, vector<4x128xf32> -> vector<8x128xf32>
    %c0_21 = arith.constant 0 : index
    %c0_22 = arith.constant 0 : index
    %45 = vector.load %arg9[%c0_21, %c0_22] : memref<1x128xf32, #tpu.memory_space<vmem>>, vector<1x128xf32>
    %46 = vector.broadcast %45 : vector<1x128xf32> to vector<8x128xf32>
    %47 = arith.mulf %44, %46 : vector<8x128xf32>
    %48 = arith.truncf %47 : vector<8x128xf32> to vector<8x128xbf16>
    %c0_23 = arith.constant 0 : index
    %c0_24 = arith.constant 0 : index
    %49 = vector.load %arg10[%c0_23, %c0_24] : memref<8x128xbf16, #tpu.memory_space<vmem>>, vector<8x128xbf16>
    tpu.vector_store %arg10[%c0_23, %c0_24], %48 {strides = array<i32>} : memref<8x128xbf16, #tpu.memory_space<vmem>>, vector<8x128xbf16>,
    return
  }
  func.func @transform_0(%arg0: i32) -> (i32, i32) {
    %c0_i32 = arith.constant 0 : i32
    %c0_i32_0 = arith.constant 0 : i32
    return %c0_i32, %arg0 : i32, i32
  }
  func.func @transform_1(%arg0: i32) -> (i32, i32) {
    %c0_i32 = arith.constant 0 : i32
    %c0_i32_0 = arith.constant 0 : i32
    %c0_i32_1 = arith.constant 0 : i32
    return %c0_i32, %c0_i32_0 : i32, i32
  }
  func.func @transform_2(%arg0: i32) -> (i32, i32) {
    %c0_i32 = arith.constant 0 : i32
    %c0_i32_0 = arith.constant 0 : i32
    %c0_i32_1 = arith.constant 0 : i32
    return %c0_i32, %c0_i32_0 : i32, i32
  }
  func.func @transform_3(%arg0: i32) -> (i32, i32) {
    %c0_i32 = arith.constant 0 : i32
    %c0_i32_0 = arith.constant 0 : i32
    %c0_i32_1 = arith.constant 0 : i32
    return %c0_i32, %c0_i32_0 : i32, i32
  }
  func.func @transform_4(%arg0: i32) -> (i32, i32) {
    %c0_i32 = arith.constant 0 : i32
    %c0_i32_0 = arith.constant 0 : i32
    %c0_i32_1 = arith.constant 0 : i32
    return %c0_i32, %c0_i32_0 : i32, i32
  }
  func.func @transform_5(%arg0: i32) -> (i32, i32) {
    %c0_i32 = arith.constant 0 : i32
    %c0_i32_0 = arith.constant 0 : i32
    %c0_i32_1 = arith.constant 0 : i32
    return %c0_i32, %c0_i32_0 : i32, i32
  }
  func.func @transform_6(%arg0: i32) -> (i32, i32) {
    %c0_i32 = arith.constant 0 : i32
    %c0_i32_0 = arith.constant 0 : i32
    %c0_i32_1 = arith.constant 0 : i32
    return %c0_i32, %c0_i32_0 : i32, i32
  }
  func.func @transform_7(%arg0: i32) -> (i32, i32) {
    %c0_i32 = arith.constant 0 : i32
    %c0_i32_0 = arith.constant 0 : i32
    %c0_i32_1 = arith.constant 0 : i32
    return %c0_i32, %c0_i32_0 : i32, i32
  }
  func.func @transform_8(%arg0: i32) -> (i32, i32) {
    %c0_i32 = arith.constant 0 : i32
    %c0_i32_0 = arith.constant 0 : i32
    %c0_i32_1 = arith.constant 0 : i32
    return %c0_i32, %c0_i32_0 : i32, i32
  }
  func.func @transform_9(%arg0: i32) -> (i32, i32) {
    %c0_i32 = arith.constant 0 : i32
    %c0_i32_0 = arith.constant 0 : i32
    return %c0_i32, %arg0 : i32, i32
  }
}

module attributes {stable_mosaic.version = 11 : i64} {
  func.func @_gate_mid_kernel(%arg0: i32, %arg1: memref<4x128xbf16, #tpu.memory_space<vmem>>, %arg2: memref<4x128xbf16, #tpu.memory_space<vmem>>, %arg3: memref<4x36xbf16, #tpu.memory_space<vmem>>, %arg4: memref<4x1xf32, #tpu.memory_space<vmem>>, %arg5: memref<4x72xbf16, #tpu.memory_space<vmem>>, %arg6: memref<4x1xf32, #tpu.memory_space<vmem>>, %arg7: memref<4x4xbf16, #tpu.memory_space<vmem>>, %arg8: memref<4x1xf32, #tpu.memory_space<vmem>>, %arg9: memref<1x128xf32, #tpu.memory_space<vmem>>, %arg10: memref<4x128xbf16, #tpu.memory_space<vmem>>) attributes {dimension_semantics = [#tpu.dimension_semantics<parallel>], iteration_bounds = array<i64: 2>, scalar_prefetch = 0 : i64, scratch_operands = 0 : i64, tpu.core_type = #tpu.core_type<tc>, window_params = [{transform_indices = @transform_0, window_bounds = array<i64: 4, 128>}, {transform_indices = @transform_1, window_bounds = array<i64: 4, 128>}, {pipeline_mode = #tpu.pipeline_mode<synchronous>, transform_indices = @transform_2, window_bounds = array<i64: 4, 36>}, {pipeline_mode = #tpu.pipeline_mode<synchronous>, transform_indices = @transform_3, window_bounds = array<i64: 4, 1>}, {pipeline_mode = #tpu.pipeline_mode<synchronous>, transform_indices = @transform_4, window_bounds = array<i64: 4, 72>}, {pipeline_mode = #tpu.pipeline_mode<synchronous>, transform_indices = @transform_5, window_bounds = array<i64: 4, 1>}, {pipeline_mode = #tpu.pipeline_mode<synchronous>, transform_indices = @transform_6, window_bounds = array<i64: 4, 4>}, {pipeline_mode = #tpu.pipeline_mode<synchronous>, transform_indices = @transform_7, window_bounds = array<i64: 4, 1>}, {pipeline_mode = #tpu.pipeline_mode<synchronous>, transform_indices = @transform_8, window_bounds = array<i64: 1, 128>}, {transform_indices = @transform_9, window_bounds = array<i64: 4, 128>}]} {
    %c0 = arith.constant 0 : index
    %c0_0 = arith.constant 0 : index
    %0 = vector.load %arg9[%c0, %c0_0] : memref<1x128xf32, #tpu.memory_space<vmem>>, vector<1x128xf32>
    %c0_1 = arith.constant 0 : index
    %c0_2 = arith.constant 0 : index
    %1 = vector.load %arg1[%c0_1, %c0_2] : memref<4x128xbf16, #tpu.memory_space<vmem>>, vector<4x128xbf16>
    %c0_3 = arith.constant 0 : index
    %c0_4 = arith.constant 0 : index
    %2 = vector.load %arg3[%c0_3, %c0_4] : memref<4x36xbf16, #tpu.memory_space<vmem>>, vector<4x36xbf16>
    %c0_5 = arith.constant 0 : index
    %c0_6 = arith.constant 0 : index
    %3 = vector.load %arg4[%c0_5, %c0_6] : memref<4x1xf32, #tpu.memory_space<vmem>>, vector<4x1xf32>
    %4 = arith.extf %1 : vector<4x128xbf16> to vector<4x128xf32>
    %c11_i32 = arith.constant 11 : i32
    %5 = tpu.dynamic_rotate %4 by %c11_i32 dim 1 : vector<4x128xf32>, i32 -> vector<4x128xf32>
    %c10_i32 = arith.constant 10 : i32
    %6 = tpu.dynamic_rotate %4 by %c10_i32 dim 1 : vector<4x128xf32>, i32 -> vector<4x128xf32>
    %c9_i32 = arith.constant 9 : i32
    %7 = tpu.dynamic_rotate %4 by %c9_i32 dim 1 : vector<4x128xf32>, i32 -> vector<4x128xf32>
    %c1_i32 = arith.constant 1 : i32
    %8 = tpu.dynamic_rotate %4 by %c1_i32 dim 1 : vector<4x128xf32>, i32 -> vector<4x128xf32>
    %c127_i32 = arith.constant 127 : i32
    %9 = tpu.dynamic_rotate %4 by %c127_i32 dim 1 : vector<4x128xf32>, i32 -> vector<4x128xf32>
    %c119_i32 = arith.constant 119 : i32
    %10 = tpu.dynamic_rotate %4 by %c119_i32 dim 1 : vector<4x128xf32>, i32 -> vector<4x128xf32>
    %c118_i32 = arith.constant 118 : i32
    %11 = tpu.dynamic_rotate %4 by %c118_i32 dim 1 : vector<4x128xf32>, i32 -> vector<4x128xf32>
    %c117_i32 = arith.constant 117 : i32
    %12 = tpu.dynamic_rotate %4 by %c117_i32 dim 1 : vector<4x128xf32>, i32 -> vector<4x128xf32>
    %13 = tpu.concatenate %5, %6, %7, %8, %4, %9, %10, %11, %12 in 0 : vector<4x128xf32>, vector<4x128xf32>, vector<4x128xf32>, vector<4x128xf32>, vector<4x128xf32>, vector<4x128xf32>, vector<4x128xf32>, vector<4x128xf32>, vector<4x128xf32> -> vector<36x128xf32>
    %14 = arith.truncf %13 : vector<36x128xf32> to vector<36x128xbf16>
    %cst = arith.constant dense<0.000000e+00> : vector<4x128xf32>
    %15 = tpu.matmul %2, %14, %cst {dimension_numbers = #tpu.dot_dimension_numbers<[1], [0], [0], [1], [0, 0, 1, 1], [], []>} : vector<4x36xbf16>, vector<36x128xbf16>, vector<4x128xf32> -> vector<4x128xf32>
    %16 = vector.broadcast %3 : vector<4x1xf32> to vector<4x128xf32>
    %17 = arith.addf %15, %16 : vector<4x128xf32>
    %cst_7 = arith.constant 0.000000e+00 : f32
    %18 = vector.broadcast %cst_7 : f32 to vector<4x128xf32>
    %19 = arith.maximumf %17, %18 : vector<4x128xf32>
    %20 = vector.broadcast %0 : vector<1x128xf32> to vector<4x128xf32>
    %21 = arith.mulf %19, %20 : vector<4x128xf32>
    %c0_8 = arith.constant 0 : index
    %c0_9 = arith.constant 0 : index
    %22 = vector.load %arg2[%c0_8, %c0_9] : memref<4x128xbf16, #tpu.memory_space<vmem>>, vector<4x128xbf16>
    %23 = arith.extf %22 : vector<4x128xbf16> to vector<4x128xf32>
    %24 = arith.negf %23 : vector<4x128xf32>
    %25 = math.exp %24 : vector<4x128xf32>
    %cst_10 = arith.constant 1.000000e+00 : f32
    %26 = vector.broadcast %cst_10 : f32 to vector<4x128xf32>
    %27 = arith.addf %26, %25 : vector<4x128xf32>
    %28 = arith.divf %26, %27 : vector<4x128xf32>
    %29 = arith.mulf %21, %28 : vector<4x128xf32>
    %cst_11 = arith.constant 2.000000e+00 : f32
    %30 = vector.broadcast %cst_11 : f32 to vector<4x128xf32>
    %31 = arith.mulf %29, %30 : vector<4x128xf32>
    %32 = tpu.concatenate %31, %23 in 0 : vector<4x128xf32>, vector<4x128xf32> -> vector<8x128xf32>
    %c0_12 = arith.constant 0 : index
    %c0_13 = arith.constant 0 : index
    %33 = vector.load %arg5[%c0_12, %c0_13] : memref<4x72xbf16, #tpu.memory_space<vmem>>, vector<4x72xbf16>
    %c0_14 = arith.constant 0 : index
    %c0_15 = arith.constant 0 : index
    %34 = vector.load %arg6[%c0_14, %c0_15] : memref<4x1xf32, #tpu.memory_space<vmem>>, vector<4x1xf32>
    %c11_i32_16 = arith.constant 11 : i32
    %35 = tpu.dynamic_rotate %32 by %c11_i32_16 dim 1 : vector<8x128xf32>, i32 -> vector<8x128xf32>
    %c10_i32_17 = arith.constant 10 : i32
    %36 = tpu.dynamic_rotate %32 by %c10_i32_17 dim 1 : vector<8x128xf32>, i32 -> vector<8x128xf32>
    %c9_i32_18 = arith.constant 9 : i32
    %37 = tpu.dynamic_rotate %32 by %c9_i32_18 dim 1 : vector<8x128xf32>, i32 -> vector<8x128xf32>
    %c1_i32_19 = arith.constant 1 : i32
    %38 = tpu.dynamic_rotate %32 by %c1_i32_19 dim 1 : vector<8x128xf32>, i32 -> vector<8x128xf32>
    %c127_i32_20 = arith.constant 127 : i32
    %39 = tpu.dynamic_rotate %32 by %c127_i32_20 dim 1 : vector<8x128xf32>, i32 -> vector<8x128xf32>
    %c119_i32_21 = arith.constant 119 : i32
    %40 = tpu.dynamic_rotate %32 by %c119_i32_21 dim 1 : vector<8x128xf32>, i32 -> vector<8x128xf32>
    %c118_i32_22 = arith.constant 118 : i32
    %41 = tpu.dynamic_rotate %32 by %c118_i32_22 dim 1 : vector<8x128xf32>, i32 -> vector<8x128xf32>
    %c117_i32_23 = arith.constant 117 : i32
    %42 = tpu.dynamic_rotate %32 by %c117_i32_23 dim 1 : vector<8x128xf32>, i32 -> vector<8x128xf32>
    %43 = tpu.concatenate %35, %36, %37, %38, %32, %39, %40, %41, %42 in 0 : vector<8x128xf32>, vector<8x128xf32>, vector<8x128xf32>, vector<8x128xf32>, vector<8x128xf32>, vector<8x128xf32>, vector<8x128xf32>, vector<8x128xf32>, vector<8x128xf32> -> vector<72x128xf32>
    %44 = arith.truncf %43 : vector<72x128xf32> to vector<72x128xbf16>
    %cst_24 = arith.constant dense<0.000000e+00> : vector<4x128xf32>
    %45 = tpu.matmul %33, %44, %cst_24 {dimension_numbers = #tpu.dot_dimension_numbers<[1], [0], [0], [1], [0, 0, 1, 1], [], []>} : vector<4x72xbf16>, vector<72x128xbf16>, vector<4x128xf32> -> vector<4x128xf32>
    %46 = vector.broadcast %34 : vector<4x1xf32> to vector<4x128xf32>
    %47 = arith.addf %45, %46 : vector<4x128xf32>
    %cst_25 = arith.constant 0.000000e+00 : f32
    %48 = vector.broadcast %cst_25 : f32 to vector<4x128xf32>
    %49 = arith.maximumf %47, %48 : vector<4x128xf32>
    %c0_26 = arith.constant 0 : index
    %c0_27 = arith.constant 0 : index
    %50 = vector.load %arg7[%c0_26, %c0_27] : memref<4x4xbf16, #tpu.memory_space<vmem>>, vector<4x4xbf16>
    %c0_28 = arith.constant 0 : index
    %c0_29 = arith.constant 0 : index
    %51 = vector.load %arg8[%c0_28, %c0_29] : memref<4x1xf32, #tpu.memory_space<vmem>>, vector<4x1xf32>
    %52 = arith.truncf %49 : vector<4x128xf32> to vector<4x128xbf16>
    %cst_30 = arith.constant dense<0.000000e+00> : vector<4x128xf32>
    %53 = tpu.matmul %50, %52, %cst_30 {dimension_numbers = #tpu.dot_dimension_numbers<[1], [0], [0], [1], [0, 0, 1, 1], [], []>} : vector<4x4xbf16>, vector<4x128xbf16>, vector<4x128xf32> -> vector<4x128xf32>
    %54 = vector.broadcast %51 : vector<4x1xf32> to vector<4x128xf32>
    %55 = arith.addf %53, %54 : vector<4x128xf32>
    %cst_31 = arith.constant 0.000000e+00 : f32
    %56 = vector.broadcast %cst_31 : f32 to vector<4x128xf32>
    %57 = arith.maximumf %55, %56 : vector<4x128xf32>
    %58 = vector.broadcast %0 : vector<1x128xf32> to vector<4x128xf32>
    %59 = arith.mulf %57, %58 : vector<4x128xf32>
    %60 = arith.truncf %59 : vector<4x128xf32> to vector<4x128xbf16>
    %c0_32 = arith.constant 0 : index
    %c0_33 = arith.constant 0 : index
    %61 = vector.load %arg10[%c0_32, %c0_33] : memref<4x128xbf16, #tpu.memory_space<vmem>>, vector<4x128xbf16>
    tpu.vector_store %arg10[%c0_32, %c0_33], %60 {strides = array<i32>} : memref<4x128xbf16, #tpu.memory_space<vmem>>, vector<4x128xbf16>,
    return
  }
  func.func @transform_0(%arg0: i32) -> (i32, i32) {
    %c0_i32 = arith.constant 0 : i32
    %c0_i32_0 = arith.constant 0 : i32
    return %c0_i32, %arg0 : i32, i32
  }
  func.func @transform_1(%arg0: i32) -> (i32, i32) {
    %c0_i32 = arith.constant 0 : i32
    %c0_i32_0 = arith.constant 0 : i32
    return %c0_i32, %arg0 : i32, i32
  }
  func.func @transform_2(%arg0: i32) -> (i32, i32) {
    %c0_i32 = arith.constant 0 : i32
    %c0_i32_0 = arith.constant 0 : i32
    %c0_i32_1 = arith.constant 0 : i32
    return %c0_i32, %c0_i32_0 : i32, i32
  }
  func.func @transform_3(%arg0: i32) -> (i32, i32) {
    %c0_i32 = arith.constant 0 : i32
    %c0_i32_0 = arith.constant 0 : i32
    %c0_i32_1 = arith.constant 0 : i32
    return %c0_i32, %c0_i32_0 : i32, i32
  }
  func.func @transform_4(%arg0: i32) -> (i32, i32) {
    %c0_i32 = arith.constant 0 : i32
    %c0_i32_0 = arith.constant 0 : i32
    %c0_i32_1 = arith.constant 0 : i32
    return %c0_i32, %c0_i32_0 : i32, i32
  }
  func.func @transform_5(%arg0: i32) -> (i32, i32) {
    %c0_i32 = arith.constant 0 : i32
    %c0_i32_0 = arith.constant 0 : i32
    %c0_i32_1 = arith.constant 0 : i32
    return %c0_i32, %c0_i32_0 : i32, i32
  }
  func.func @transform_6(%arg0: i32) -> (i32, i32) {
    %c0_i32 = arith.constant 0 : i32
    %c0_i32_0 = arith.constant 0 : i32
    %c0_i32_1 = arith.constant 0 : i32
    return %c0_i32, %c0_i32_0 : i32, i32
  }
  func.func @transform_7(%arg0: i32) -> (i32, i32) {
    %c0_i32 = arith.constant 0 : i32
    %c0_i32_0 = arith.constant 0 : i32
    %c0_i32_1 = arith.constant 0 : i32
    return %c0_i32, %c0_i32_0 : i32, i32
  }
  func.func @transform_8(%arg0: i32) -> (i32, i32) {
    %c0_i32 = arith.constant 0 : i32
    %c0_i32_0 = arith.constant 0 : i32
    %c0_i32_1 = arith.constant 0 : i32
    return %c0_i32, %c0_i32_0 : i32, i32
  }
  func.func @transform_9(%arg0: i32) -> (i32, i32) {
    %c0_i32 = arith.constant 0 : i32
    %c0_i32_0 = arith.constant 0 : i32
    return %c0_i32, %arg0 : i32, i32
  }
}

module attributes {stable_mosaic.version = 11 : i64} {
  func.func @_down_block_kernel(%arg0: i32, %arg1: memref<4x128xbf16, #tpu.memory_space<vmem>>, %arg2: memref<4x36xbf16, #tpu.memory_space<vmem>>, %arg3: memref<4x1xf32, #tpu.memory_space<vmem>>, %arg4: memref<128x128xbf16, #tpu.memory_space<vmem>>, %arg5: memref<4x36xbf16, #tpu.memory_space<vmem>>, %arg6: memref<4x1xf32, #tpu.memory_space<vmem>>, %arg7: memref<4x4xbf16, #tpu.memory_space<vmem>>, %arg8: memref<4x1xf32, #tpu.memory_space<vmem>>, %arg9: memref<1x128xf32, #tpu.memory_space<vmem>>, %arg10: memref<8x128xbf16, #tpu.memory_space<vmem>>) attributes {dimension_semantics = [#tpu.dimension_semantics<parallel>], iteration_bounds = array<i64: 2>, scalar_prefetch = 0 : i64, scratch_operands = 0 : i64, tpu.core_type = #tpu.core_type<tc>, window_params = [{transform_indices = @transform_0, window_bounds = array<i64: 4, 128>}, {pipeline_mode = #tpu.pipeline_mode<synchronous>, transform_indices = @transform_1, window_bounds = array<i64: 4, 36>}, {pipeline_mode = #tpu.pipeline_mode<synchronous>, transform_indices = @transform_2, window_bounds = array<i64: 4, 1>}, {pipeline_mode = #tpu.pipeline_mode<synchronous>, transform_indices = @transform_3, window_bounds = array<i64: 128, 128>}, {pipeline_mode = #tpu.pipeline_mode<synchronous>, transform_indices = @transform_4, window_bounds = array<i64: 4, 36>}, {pipeline_mode = #tpu.pipeline_mode<synchronous>, transform_indices = @transform_5, window_bounds = array<i64: 4, 1>}, {pipeline_mode = #tpu.pipeline_mode<synchronous>, transform_indices = @transform_6, window_bounds = array<i64: 4, 4>}, {pipeline_mode = #tpu.pipeline_mode<synchronous>, transform_indices = @transform_7, window_bounds = array<i64: 4, 1>}, {pipeline_mode = #tpu.pipeline_mode<synchronous>, transform_indices = @transform_8, window_bounds = array<i64: 1, 128>}, {transform_indices = @transform_9, window_bounds = array<i64: 8, 128>}]} {
    %c0 = arith.constant 0 : index
    %c0_0 = arith.constant 0 : index
    %0 = vector.load %arg1[%c0, %c0_0] : memref<4x128xbf16, #tpu.memory_space<vmem>>, vector<4x128xbf16>
    %c0_1 = arith.constant 0 : index
    %c0_2 = arith.constant 0 : index
    %1 = vector.load %arg2[%c0_1, %c0_2] : memref<4x36xbf16, #tpu.memory_space<vmem>>, vector<4x36xbf16>
    %c0_3 = arith.constant 0 : index
    %c0_4 = arith.constant 0 : index
    %2 = vector.load %arg3[%c0_3, %c0_4] : memref<4x1xf32, #tpu.memory_space<vmem>>, vector<4x1xf32>
    %3 = arith.extf %0 : vector<4x128xbf16> to vector<4x128xf32>
    %c11_i32 = arith.constant 11 : i32
    %4 = tpu.dynamic_rotate %3 by %c11_i32 dim 1 : vector<4x128xf32>, i32 -> vector<4x128xf32>
    %c10_i32 = arith.constant 10 : i32
    %5 = tpu.dynamic_rotate %3 by %c10_i32 dim 1 : vector<4x128xf32>, i32 -> vector<4x128xf32>
    %c9_i32 = arith.constant 9 : i32
    %6 = tpu.dynamic_rotate %3 by %c9_i32 dim 1 : vector<4x128xf32>, i32 -> vector<4x128xf32>
    %c1_i32 = arith.constant 1 : i32
    %7 = tpu.dynamic_rotate %3 by %c1_i32 dim 1 : vector<4x128xf32>, i32 -> vector<4x128xf32>
    %c127_i32 = arith.constant 127 : i32
    %8 = tpu.dynamic_rotate %3 by %c127_i32 dim 1 : vector<4x128xf32>, i32 -> vector<4x128xf32>
    %c119_i32 = arith.constant 119 : i32
    %9 = tpu.dynamic_rotate %3 by %c119_i32 dim 1 : vector<4x128xf32>, i32 -> vector<4x128xf32>
    %c118_i32 = arith.constant 118 : i32
    %10 = tpu.dynamic_rotate %3 by %c118_i32 dim 1 : vector<4x128xf32>, i32 -> vector<4x128xf32>
    %c117_i32 = arith.constant 117 : i32
    %11 = tpu.dynamic_rotate %3 by %c117_i32 dim 1 : vector<4x128xf32>, i32 -> vector<4x128xf32>
    %12 = tpu.concatenate %4, %5, %6, %7, %3, %8, %9, %10, %11 in 0 : vector<4x128xf32>, vector<4x128xf32>, vector<4x128xf32>, vector<4x128xf32>, vector<4x128xf32>, vector<4x128xf32>, vector<4x128xf32>, vector<4x128xf32>, vector<4x128xf32> -> vector<36x128xf32>
    %13 = arith.truncf %12 : vector<36x128xf32> to vector<36x128xbf16>
    %cst = arith.constant dense<0.000000e+00> : vector<4x128xf32>
    %14 = tpu.matmul %1, %13, %cst {dimension_numbers = #tpu.dot_dimension_numbers<[1], [0], [0], [1], [0, 0, 1, 1], [], []>} : vector<4x36xbf16>, vector<36x128xbf16>, vector<4x128xf32> -> vector<4x128xf32>
    %15 = vector.broadcast %2 : vector<4x1xf32> to vector<4x128xf32>
    %16 = arith.addf %14, %15 : vector<4x128xf32>
    %17 = arith.truncf %16 : vector<4x128xf32> to vector<4x128xbf16>
    %c0_5 = arith.constant 0 : index
    %c0_6 = arith.constant 0 : index
    %18 = vector.load %arg4[%c0_5, %c0_6] : memref<128x128xbf16, #tpu.memory_space<vmem>>, vector<128x128xbf16>
    %cst_7 = arith.constant dense<0.000000e+00> : vector<4x128xf32>
    %19 = tpu.matmul %17, %18, %cst_7 {dimension_numbers = #tpu.dot_dimension_numbers<[1], [0], [0], [1], [0, 0, 1, 1], [], []>} : vector<4x128xbf16>, vector<128x128xbf16>, vector<4x128xf32> -> vector<4x128xf32>
    %c0_8 = arith.constant 0 : index
    %c0_9 = arith.constant 0 : index
    %20 = vector.load %arg5[%c0_8, %c0_9] : memref<4x36xbf16, #tpu.memory_space<vmem>>, vector<4x36xbf16>
    %c0_10 = arith.constant 0 : index
    %c0_11 = arith.constant 0 : index
    %21 = vector.load %arg6[%c0_10, %c0_11] : memref<4x1xf32, #tpu.memory_space<vmem>>, vector<4x1xf32>
    %c7_i32 = arith.constant 7 : i32
    %22 = tpu.dynamic_rotate %19 by %c7_i32 dim 1 : vector<4x128xf32>, i32 -> vector<4x128xf32>
    %c6_i32 = arith.constant 6 : i32
    %23 = tpu.dynamic_rotate %19 by %c6_i32 dim 1 : vector<4x128xf32>, i32 -> vector<4x128xf32>
    %c5_i32 = arith.constant 5 : i32
    %24 = tpu.dynamic_rotate %19 by %c5_i32 dim 1 : vector<4x128xf32>, i32 -> vector<4x128xf32>
    %c1_i32_12 = arith.constant 1 : i32
    %25 = tpu.dynamic_rotate %19 by %c1_i32_12 dim 1 : vector<4x128xf32>, i32 -> vector<4x128xf32>
    %c127_i32_13 = arith.constant 127 : i32
    %26 = tpu.dynamic_rotate %19 by %c127_i32_13 dim 1 : vector<4x128xf32>, i32 -> vector<4x128xf32>
    %c123_i32 = arith.constant 123 : i32
    %27 = tpu.dynamic_rotate %19 by %c123_i32 dim 1 : vector<4x128xf32>, i32 -> vector<4x128xf32>
    %c122_i32 = arith.constant 122 : i32
    %28 = tpu.dynamic_rotate %19 by %c122_i32 dim 1 : vector<4x128xf32>, i32 -> vector<4x128xf32>
    %c121_i32 = arith.constant 121 : i32
    %29 = tpu.dynamic_rotate %19 by %c121_i32 dim 1 : vector<4x128xf32>, i32 -> vector<4x128xf32>
    %30 = tpu.concatenate %22, %23, %24, %25, %19, %26, %27, %28, %29 in 0 : vector<4x128xf32>, vector<4x128xf32>, vector<4x128xf32>, vector<4x128xf32>, vector<4x128xf32>, vector<4x128xf32>, vector<4x128xf32>, vector<4x128xf32>, vector<4x128xf32> -> vector<36x128xf32>
    %31 = arith.truncf %30 : vector<36x128xf32> to vector<36x128xbf16>
    %cst_14 = arith.constant dense<0.000000e+00> : vector<4x128xf32>
    %32 = tpu.matmul %20, %31, %cst_14 {dimension_numbers = #tpu.dot_dimension_numbers<[1], [0], [0], [1], [0, 0, 1, 1], [], []>} : vector<4x36xbf16>, vector<36x128xbf16>, vector<4x128xf32> -> vector<4x128xf32>
    %33 = vector.broadcast %21 : vector<4x1xf32> to vector<4x128xf32>
    %34 = arith.addf %32, %33 : vector<4x128xf32>
    %cst_15 = arith.constant 0.000000e+00 : f32
    %35 = vector.broadcast %cst_15 : f32 to vector<4x128xf32>
    %36 = arith.maximumf %34, %35 : vector<4x128xf32>
    %c0_16 = arith.constant 0 : index
    %c0_17 = arith.constant 0 : index
    %37 = vector.load %arg7[%c0_16, %c0_17] : memref<4x4xbf16, #tpu.memory_space<vmem>>, vector<4x4xbf16>
    %c0_18 = arith.constant 0 : index
    %c0_19 = arith.constant 0 : index
    %38 = vector.load %arg8[%c0_18, %c0_19] : memref<4x1xf32, #tpu.memory_space<vmem>>, vector<4x1xf32>
    %39 = arith.truncf %36 : vector<4x128xf32> to vector<4x128xbf16>
    %cst_20 = arith.constant dense<0.000000e+00> : vector<4x128xf32>
    %40 = tpu.matmul %37, %39, %cst_20 {dimension_numbers = #tpu.dot_dimension_numbers<[1], [0], [0], [1], [0, 0, 1, 1], [], []>} : vector<4x4xbf16>, vector<4x128xbf16>, vector<4x128xf32> -> vector<4x128xf32>
    %41 = vector.broadcast %38 : vector<4x1xf32> to vector<4x128xf32>
    %42 = arith.addf %40, %41 : vector<4x128xf32>
    %cst_21 = arith.constant 0.000000e+00 : f32
    %43 = vector.broadcast %cst_21 : f32 to vector<4x128xf32>
    %44 = arith.maximumf %42, %43 : vector<4x128xf32>
    %45 = tpu.concatenate %36, %44 in 0 : vector<4x128xf32>, vector<4x128xf32> -> vector<8x128xf32>
    %c0_22 = arith.constant 0 : index
    %c0_23 = arith.constant 0 : index
    %46 = vector.load %arg9[%c0_22, %c0_23] : memref<1x128xf32, #tpu.memory_space<vmem>>, vector<1x128xf32>
    %47 = vector.broadcast %46 : vector<1x128xf32> to vector<8x128xf32>
    %48 = arith.mulf %45, %47 : vector<8x128xf32>
    %49 = arith.truncf %48 : vector<8x128xf32> to vector<8x128xbf16>
    %c0_24 = arith.constant 0 : index
    %c0_25 = arith.constant 0 : index
    %50 = vector.load %arg10[%c0_24, %c0_25] : memref<8x128xbf16, #tpu.memory_space<vmem>>, vector<8x128xbf16>
    tpu.vector_store %arg10[%c0_24, %c0_25], %49 {strides = array<i32>} : memref<8x128xbf16, #tpu.memory_space<vmem>>, vector<8x128xbf16>,
    return
  }
  func.func @transform_0(%arg0: i32) -> (i32, i32) {
    %c0_i32 = arith.constant 0 : i32
    %c0_i32_0 = arith.constant 0 : i32
    return %c0_i32, %arg0 : i32, i32
  }
  func.func @transform_1(%arg0: i32) -> (i32, i32) {
    %c0_i32 = arith.constant 0 : i32
    %c0_i32_0 = arith.constant 0 : i32
    %c0_i32_1 = arith.constant 0 : i32
    return %c0_i32, %c0_i32_0 : i32, i32
  }
  func.func @transform_2(%arg0: i32) -> (i32, i32) {
    %c0_i32 = arith.constant 0 : i32
    %c0_i32_0 = arith.constant 0 : i32
    %c0_i32_1 = arith.constant 0 : i32
    return %c0_i32, %c0_i32_0 : i32, i32
  }
  func.func @transform_3(%arg0: i32) -> (i32, i32) {
    %c0_i32 = arith.constant 0 : i32
    %c0_i32_0 = arith.constant 0 : i32
    %c0_i32_1 = arith.constant 0 : i32
    return %c0_i32, %c0_i32_0 : i32, i32
  }
  func.func @transform_4(%arg0: i32) -> (i32, i32) {
    %c0_i32 = arith.constant 0 : i32
    %c0_i32_0 = arith.constant 0 : i32
    %c0_i32_1 = arith.constant 0 : i32
    return %c0_i32, %c0_i32_0 : i32, i32
  }
  func.func @transform_5(%arg0: i32) -> (i32, i32) {
    %c0_i32 = arith.constant 0 : i32
    %c0_i32_0 = arith.constant 0 : i32
    %c0_i32_1 = arith.constant 0 : i32
    return %c0_i32, %c0_i32_0 : i32, i32
  }
  func.func @transform_6(%arg0: i32) -> (i32, i32) {
    %c0_i32 = arith.constant 0 : i32
    %c0_i32_0 = arith.constant 0 : i32
    %c0_i32_1 = arith.constant 0 : i32
    return %c0_i32, %c0_i32_0 : i32, i32
  }
  func.func @transform_7(%arg0: i32) -> (i32, i32) {
    %c0_i32 = arith.constant 0 : i32
    %c0_i32_0 = arith.constant 0 : i32
    %c0_i32_1 = arith.constant 0 : i32
    return %c0_i32, %c0_i32_0 : i32, i32
  }
  func.func @transform_8(%arg0: i32) -> (i32, i32) {
    %c0_i32 = arith.constant 0 : i32
    %c0_i32_0 = arith.constant 0 : i32
    %c0_i32_1 = arith.constant 0 : i32
    return %c0_i32, %c0_i32_0 : i32, i32
  }
  func.func @transform_9(%arg0: i32) -> (i32, i32) {
    %c0_i32 = arith.constant 0 : i32
    %c0_i32_0 = arith.constant 0 : i32
    return %c0_i32, %arg0 : i32, i32
  }
}

module attributes {stable_mosaic.version = 11 : i64} {
  func.func @_final_kernel(%arg0: i32, %arg1: memref<4x128xbf16, #tpu.memory_space<vmem>>, %arg2: memref<4x384xf32, #tpu.memory_space<vmem>>, %arg3: memref<128x384xbf16, #tpu.memory_space<vmem>>, %arg4: memref<4x36xbf16, #tpu.memory_space<vmem>>, %arg5: memref<4x1xf32, #tpu.memory_space<vmem>>, %arg6: memref<4x4xbf16, #tpu.memory_space<vmem>>, %arg7: memref<4x1xf32, #tpu.memory_space<vmem>>, %arg8: memref<4x4xbf16, #tpu.memory_space<vmem>>, %arg9: memref<4x1xf32, #tpu.memory_space<vmem>>, %arg10: memref<4x72xbf16, #tpu.memory_space<vmem>>, %arg11: memref<4x1xf32, #tpu.memory_space<vmem>>, %arg12: memref<1x384xf32, #tpu.memory_space<vmem>>, %arg13: memref<4x384xf32, #tpu.memory_space<vmem>>) attributes {dimension_semantics = [#tpu.dimension_semantics<parallel>], iteration_bounds = array<i64: 2>, scalar_prefetch = 0 : i64, scratch_operands = 0 : i64, tpu.core_type = #tpu.core_type<tc>, window_params = [{transform_indices = @transform_0, window_bounds = array<i64: 4, 128>}, {transform_indices = @transform_1, window_bounds = array<i64: 4, 384>}, {pipeline_mode = #tpu.pipeline_mode<synchronous>, transform_indices = @transform_2, window_bounds = array<i64: 128, 384>}, {pipeline_mode = #tpu.pipeline_mode<synchronous>, transform_indices = @transform_3, window_bounds = array<i64: 4, 36>}, {pipeline_mode = #tpu.pipeline_mode<synchronous>, transform_indices = @transform_4, window_bounds = array<i64: 4, 1>}, {pipeline_mode = #tpu.pipeline_mode<synchronous>, transform_indices = @transform_5, window_bounds = array<i64: 4, 4>}, {pipeline_mode = #tpu.pipeline_mode<synchronous>, transform_indices = @transform_6, window_bounds = array<i64: 4, 1>}, {pipeline_mode = #tpu.pipeline_mode<synchronous>, transform_indices = @transform_7, window_bounds = array<i64: 4, 4>}, {pipeline_mode = #tpu.pipeline_mode<synchronous>, transform_indices = @transform_8, window_bounds = array<i64: 4, 1>}, {pipeline_mode = #tpu.pipeline_mode<synchronous>, transform_indices = @transform_9, window_bounds = array<i64: 4, 72>}, {pipeline_mode = #tpu.pipeline_mode<synchronous>, transform_indices = @transform_10, window_bounds = array<i64: 4, 1>}, {pipeline_mode = #tpu.pipeline_mode<synchronous>, transform_indices = @transform_11, window_bounds = array<i64: 1, 384>}, {transform_indices = @transform_12, window_bounds = array<i64: 4, 384>}]} {
    %c0 = arith.constant 0 : index
    %c0_0 = arith.constant 0 : index
    %0 = vector.load %arg12[%c0, %c0_0] : memref<1x384xf32, #tpu.memory_space<vmem>>, vector<1x384xf32>
    %c0_1 = arith.constant 0 : index
    %c0_2 = arith.constant 0 : index
    %1 = vector.load %arg1[%c0_1, %c0_2] : memref<4x128xbf16, #tpu.memory_space<vmem>>, vector<4x128xbf16>
    %c0_3 = arith.constant 0 : index
    %c0_4 = arith.constant 0 : index
    %2 = vector.load %arg3[%c0_3, %c0_4] : memref<128x384xbf16, #tpu.memory_space<vmem>>, vector<128x384xbf16>
    %cst = arith.constant dense<0.000000e+00> : vector<4x384xf32>
    %3 = tpu.matmul %1, %2, %cst {dimension_numbers = #tpu.dot_dimension_numbers<[1], [0], [0], [1], [0, 0, 1, 1], [], []>} : vector<4x128xbf16>, vector<128x384xbf16>, vector<4x384xf32> -> vector<4x384xf32>
    %c0_5 = arith.constant 0 : index
    %c0_6 = arith.constant 0 : index
    %4 = vector.load %arg4[%c0_5, %c0_6] : memref<4x36xbf16, #tpu.memory_space<vmem>>, vector<4x36xbf16>
    %c0_7 = arith.constant 0 : index
    %c0_8 = arith.constant 0 : index
    %5 = vector.load %arg5[%c0_7, %c0_8] : memref<4x1xf32, #tpu.memory_space<vmem>>, vector<4x1xf32>
    %c19_i32 = arith.constant 19 : i32
    %6 = tpu.dynamic_rotate %3 by %c19_i32 dim 1 : vector<4x384xf32>, i32 -> vector<4x384xf32>
    %c18_i32 = arith.constant 18 : i32
    %7 = tpu.dynamic_rotate %3 by %c18_i32 dim 1 : vector<4x384xf32>, i32 -> vector<4x384xf32>
    %c17_i32 = arith.constant 17 : i32
    %8 = tpu.dynamic_rotate %3 by %c17_i32 dim 1 : vector<4x384xf32>, i32 -> vector<4x384xf32>
    %c1_i32 = arith.constant 1 : i32
    %9 = tpu.dynamic_rotate %3 by %c1_i32 dim 1 : vector<4x384xf32>, i32 -> vector<4x384xf32>
    %c383_i32 = arith.constant 383 : i32
    %10 = tpu.dynamic_rotate %3 by %c383_i32 dim 1 : vector<4x384xf32>, i32 -> vector<4x384xf32>
    %c367_i32 = arith.constant 367 : i32
    %11 = tpu.dynamic_rotate %3 by %c367_i32 dim 1 : vector<4x384xf32>, i32 -> vector<4x384xf32>
    %c366_i32 = arith.constant 366 : i32
    %12 = tpu.dynamic_rotate %3 by %c366_i32 dim 1 : vector<4x384xf32>, i32 -> vector<4x384xf32>
    %c365_i32 = arith.constant 365 : i32
    %13 = tpu.dynamic_rotate %3 by %c365_i32 dim 1 : vector<4x384xf32>, i32 -> vector<4x384xf32>
    %14 = tpu.concatenate %6, %7, %8, %9, %3, %10, %11, %12, %13 in 0 : vector<4x384xf32>, vector<4x384xf32>, vector<4x384xf32>, vector<4x384xf32>, vector<4x384xf32>, vector<4x384xf32>, vector<4x384xf32>, vector<4x384xf32>, vector<4x384xf32> -> vector<36x384xf32>
    %15 = arith.truncf %14 : vector<36x384xf32> to vector<36x384xbf16>
    %cst_9 = arith.constant dense<0.000000e+00> : vector<4x384xf32>
    %16 = tpu.matmul %4, %15, %cst_9 {dimension_numbers = #tpu.dot_dimension_numbers<[1], [0], [0], [1], [0, 0, 1, 1], [], []>} : vector<4x36xbf16>, vector<36x384xbf16>, vector<4x384xf32> -> vector<4x384xf32>
    %17 = vector.broadcast %5 : vector<4x1xf32> to vector<4x384xf32>
    %18 = arith.addf %16, %17 : vector<4x384xf32>
    %c0_10 = arith.constant 0 : index
    %c0_11 = arith.constant 0 : index
    %19 = vector.load %arg6[%c0_10, %c0_11] : memref<4x4xbf16, #tpu.memory_space<vmem>>, vector<4x4xbf16>
    %c0_12 = arith.constant 0 : index
    %c0_13 = arith.constant 0 : index
    %20 = vector.load %arg7[%c0_12, %c0_13] : memref<4x1xf32, #tpu.memory_space<vmem>>, vector<4x1xf32>
    %21 = arith.truncf %18 : vector<4x384xf32> to vector<4x384xbf16>
    %cst_14 = arith.constant dense<0.000000e+00> : vector<4x384xf32>
    %22 = tpu.matmul %19, %21, %cst_14 {dimension_numbers = #tpu.dot_dimension_numbers<[1], [0], [0], [1], [0, 0, 1, 1], [], []>} : vector<4x4xbf16>, vector<4x384xbf16>, vector<4x384xf32> -> vector<4x384xf32>
    %23 = vector.broadcast %20 : vector<4x1xf32> to vector<4x384xf32>
    %24 = arith.addf %22, %23 : vector<4x384xf32>
    %cst_15 = arith.constant 0.000000e+00 : f32
    %25 = vector.broadcast %cst_15 : f32 to vector<4x384xf32>
    %26 = arith.maximumf %24, %25 : vector<4x384xf32>
    %c0_16 = arith.constant 0 : index
    %c0_17 = arith.constant 0 : index
    %27 = vector.load %arg8[%c0_16, %c0_17] : memref<4x4xbf16, #tpu.memory_space<vmem>>, vector<4x4xbf16>
    %c0_18 = arith.constant 0 : index
    %c0_19 = arith.constant 0 : index
    %28 = vector.load %arg9[%c0_18, %c0_19] : memref<4x1xf32, #tpu.memory_space<vmem>>, vector<4x1xf32>
    %29 = arith.truncf %26 : vector<4x384xf32> to vector<4x384xbf16>
    %cst_20 = arith.constant dense<0.000000e+00> : vector<4x384xf32>
    %30 = tpu.matmul %27, %29, %cst_20 {dimension_numbers = #tpu.dot_dimension_numbers<[1], [0], [0], [1], [0, 0, 1, 1], [], []>} : vector<4x4xbf16>, vector<4x384xbf16>, vector<4x384xf32> -> vector<4x384xf32>
    %31 = vector.broadcast %28 : vector<4x1xf32> to vector<4x384xf32>
    %32 = arith.addf %30, %31 : vector<4x384xf32>
    %33 = vector.broadcast %0 : vector<1x384xf32> to vector<4x384xf32>
    %34 = arith.mulf %32, %33 : vector<4x384xf32>
    %c0_21 = arith.constant 0 : index
    %c0_22 = arith.constant 0 : index
    %35 = vector.load %arg2[%c0_21, %c0_22] : memref<4x384xf32, #tpu.memory_space<vmem>>, vector<4x384xf32>
    %36 = arith.negf %34 : vector<4x384xf32>
    %37 = math.exp %36 : vector<4x384xf32>
    %cst_23 = arith.constant 1.000000e+00 : f32
    %38 = vector.broadcast %cst_23 : f32 to vector<4x384xf32>
    %39 = arith.addf %38, %37 : vector<4x384xf32>
    %40 = arith.divf %38, %39 : vector<4x384xf32>
    %41 = arith.mulf %35, %40 : vector<4x384xf32>
    %cst_24 = arith.constant 2.000000e+00 : f32
    %42 = vector.broadcast %cst_24 : f32 to vector<4x384xf32>
    %43 = arith.mulf %41, %42 : vector<4x384xf32>
    %44 = tpu.concatenate %34, %43 in 0 : vector<4x384xf32>, vector<4x384xf32> -> vector<8x384xf32>
    %c0_25 = arith.constant 0 : index
    %c0_26 = arith.constant 0 : index
    %45 = vector.load %arg10[%c0_25, %c0_26] : memref<4x72xbf16, #tpu.memory_space<vmem>>, vector<4x72xbf16>
    %c0_27 = arith.constant 0 : index
    %c0_28 = arith.constant 0 : index
    %46 = vector.load %arg11[%c0_27, %c0_28] : memref<4x1xf32, #tpu.memory_space<vmem>>, vector<4x1xf32>
    %c19_i32_29 = arith.constant 19 : i32
    %47 = tpu.dynamic_rotate %44 by %c19_i32_29 dim 1 : vector<8x384xf32>, i32 -> vector<8x384xf32>
    %c18_i32_30 = arith.constant 18 : i32
    %48 = tpu.dynamic_rotate %44 by %c18_i32_30 dim 1 : vector<8x384xf32>, i32 -> vector<8x384xf32>
    %c17_i32_31 = arith.constant 17 : i32
    %49 = tpu.dynamic_rotate %44 by %c17_i32_31 dim 1 : vector<8x384xf32>, i32 -> vector<8x384xf32>
    %c1_i32_32 = arith.constant 1 : i32
    %50 = tpu.dynamic_rotate %44 by %c1_i32_32 dim 1 : vector<8x384xf32>, i32 -> vector<8x384xf32>
    %c383_i32_33 = arith.constant 383 : i32
    %51 = tpu.dynamic_rotate %44 by %c383_i32_33 dim 1 : vector<8x384xf32>, i32 -> vector<8x384xf32>
    %c367_i32_34 = arith.constant 367 : i32
    %52 = tpu.dynamic_rotate %44 by %c367_i32_34 dim 1 : vector<8x384xf32>, i32 -> vector<8x384xf32>
    %c366_i32_35 = arith.constant 366 : i32
    %53 = tpu.dynamic_rotate %44 by %c366_i32_35 dim 1 : vector<8x384xf32>, i32 -> vector<8x384xf32>
    %c365_i32_36 = arith.constant 365 : i32
    %54 = tpu.dynamic_rotate %44 by %c365_i32_36 dim 1 : vector<8x384xf32>, i32 -> vector<8x384xf32>
    %55 = tpu.concatenate %47, %48, %49, %50, %44, %51, %52, %53, %54 in 0 : vector<8x384xf32>, vector<8x384xf32>, vector<8x384xf32>, vector<8x384xf32>, vector<8x384xf32>, vector<8x384xf32>, vector<8x384xf32>, vector<8x384xf32>, vector<8x384xf32> -> vector<72x384xf32>
    %56 = arith.truncf %55 : vector<72x384xf32> to vector<72x384xbf16>
    %cst_37 = arith.constant dense<0.000000e+00> : vector<4x384xf32>
    %57 = tpu.matmul %45, %56, %cst_37 {dimension_numbers = #tpu.dot_dimension_numbers<[1], [0], [0], [1], [0, 0, 1, 1], [], []>} : vector<4x72xbf16>, vector<72x384xbf16>, vector<4x384xf32> -> vector<4x384xf32>
    %58 = vector.broadcast %46 : vector<4x1xf32> to vector<4x384xf32>
    %59 = arith.addf %57, %58 : vector<4x384xf32>
    %cst_38 = arith.constant 0.000000e+00 : f32
    %60 = vector.broadcast %cst_38 : f32 to vector<4x384xf32>
    %61 = arith.maximumf %59, %60 : vector<4x384xf32>
    %62 = vector.broadcast %0 : vector<1x384xf32> to vector<4x384xf32>
    %63 = arith.mulf %61, %62 : vector<4x384xf32>
    %c0_39 = arith.constant 0 : index
    %c0_40 = arith.constant 0 : index
    %64 = vector.load %arg13[%c0_39, %c0_40] : memref<4x384xf32, #tpu.memory_space<vmem>>, vector<4x384xf32>
    tpu.vector_store %arg13[%c0_39, %c0_40], %63 {strides = array<i32>} : memref<4x384xf32, #tpu.memory_space<vmem>>, vector<4x384xf32>,
    return
  }
  func.func @transform_0(%arg0: i32) -> (i32, i32) {
    %c0_i32 = arith.constant 0 : i32
    %c0_i32_0 = arith.constant 0 : i32
    return %c0_i32, %arg0 : i32, i32
  }
  func.func @transform_1(%arg0: i32) -> (i32, i32) {
    %c0_i32 = arith.constant 0 : i32
    %c0_i32_0 = arith.constant 0 : i32
    return %c0_i32, %arg0 : i32, i32
  }
  func.func @transform_2(%arg0: i32) -> (i32, i32) {
    %c0_i32 = arith.constant 0 : i32
    %c0_i32_0 = arith.constant 0 : i32
    %c0_i32_1 = arith.constant 0 : i32
    return %c0_i32, %c0_i32_0 : i32, i32
  }
  func.func @transform_3(%arg0: i32) -> (i32, i32) {
    %c0_i32 = arith.constant 0 : i32
    %c0_i32_0 = arith.constant 0 : i32
    %c0_i32_1 = arith.constant 0 : i32
    return %c0_i32, %c0_i32_0 : i32, i32
  }
  func.func @transform_4(%arg0: i32) -> (i32, i32) {
    %c0_i32 = arith.constant 0 : i32
    %c0_i32_0 = arith.constant 0 : i32
    %c0_i32_1 = arith.constant 0 : i32
    return %c0_i32, %c0_i32_0 : i32, i32
  }
  func.func @transform_5(%arg0: i32) -> (i32, i32) {
    %c0_i32 = arith.constant 0 : i32
    %c0_i32_0 = arith.constant 0 : i32
    %c0_i32_1 = arith.constant 0 : i32
    return %c0_i32, %c0_i32_0 : i32, i32
  }
  func.func @transform_6(%arg0: i32) -> (i32, i32) {
    %c0_i32 = arith.constant 0 : i32
    %c0_i32_0 = arith.constant 0 : i32
    %c0_i32_1 = arith.constant 0 : i32
    return %c0_i32, %c0_i32_0 : i32, i32
  }
  func.func @transform_7(%arg0: i32) -> (i32, i32) {
    %c0_i32 = arith.constant 0 : i32
    %c0_i32_0 = arith.constant 0 : i32
    %c0_i32_1 = arith.constant 0 : i32
    return %c0_i32, %c0_i32_0 : i32, i32
  }
  func.func @transform_8(%arg0: i32) -> (i32, i32) {
    %c0_i32 = arith.constant 0 : i32
    %c0_i32_0 = arith.constant 0 : i32
    %c0_i32_1 = arith.constant 0 : i32
    return %c0_i32, %c0_i32_0 : i32, i32
  }
  func.func @transform_9(%arg0: i32) -> (i32, i32) {
    %c0_i32 = arith.constant 0 : i32
    %c0_i32_0 = arith.constant 0 : i32
    %c0_i32_1 = arith.constant 0 : i32
    return %c0_i32, %c0_i32_0 : i32, i32
  }
  func.func @transform_10(%arg0: i32) -> (i32, i32) {
    %c0_i32 = arith.constant 0 : i32
    %c0_i32_0 = arith.constant 0 : i32
    %c0_i32_1 = arith.constant 0 : i32
    return %c0_i32, %c0_i32_0 : i32, i32
  }
  func.func @transform_11(%arg0: i32) -> (i32, i32) {
    %c0_i32 = arith.constant 0 : i32
    %c0_i32_0 = arith.constant 0 : i32
    %c0_i32_1 = arith.constant 0 : i32
    return %c0_i32, %c0_i32_0 : i32, i32
  }
  func.func @transform_12(%arg0: i32) -> (i32, i32) {
    %c0_i32 = arith.constant 0 : i32
    %c0_i32_0 = arith.constant 0 : i32
    return %c0_i32, %arg0 : i32, i32
  }
}

</mosaic_0001>

<llo_original>
// kernel: _lambda_.7
$region0: #{_lambda_.7}
  #allocation0 [shape = 'u32[]', space=smem, size = 0x4, offset = 0x4, fixed_abs, tag = 'smem constant byte address 0x4 - core index']
  #allocation1 [shape = 'u32[144,128]{1,0:T(1,128)}', space=vmem, size = 0x12000, scoped, tag = 'internal scratch']
  %s0 = inlined_call_operand.vmem [shape: bf16[4,256], index: 0, kind: input, shape index: {}]
  %s1 = inlined_call_operand.vmem [shape: bf16[128,128], index: 1, kind: input, shape index: {}]
  %s2 = inlined_call_operand.vmem [shape: bf16[4,36], index: 2, kind: input, shape index: {}]
  %s3 = inlined_call_operand.vmem [shape: f32[4,1], index: 3, kind: input, shape index: {}]
  %s4 = inlined_call_operand.vmem [shape: bf16[4,4], index: 4, kind: input, shape index: {}]
  %s5 = inlined_call_operand.vmem [shape: f32[4,1], index: 5, kind: input, shape index: {}]
  %s6 = inlined_call_operand.vmem [shape: bf16[4,4], index: 6, kind: input, shape index: {}]
  %s7 = inlined_call_operand.vmem [shape: f32[4,1], index: 7, kind: input, shape index: {}]
  %s8 = inlined_call_operand.vmem [shape: f32[1,128], index: 8, kind: input, shape index: {}]
  %s9 = inlined_call_operand.vmem [shape: bf16[4,256], index: 9, kind: output, shape index: {}]
  %s10 = sld [smem:[#allocation0]]
  $region69: #{_lambda_.7} parent=0
    _
  %s12 = ssub.s32 1, %s10
  %s13 = scalar_select 0, %s12, %s10
  loop: start=0, step=1, limit=4
  $region2: #{_lambda_.7} parent=0 // loop_pre_header
    _
  $region3: #{_lambda_.7} parent=0 // loop_header
    %s15 = sphi 0, %s19
    %p16 = scmp.ge.s32.totalorder %s15, 4
    %s25 = sphi 0, %s27
    %s28 = sphi 0, %s25
    %s29 = sphi 0, %s28
    %s45 = sphi 0, %s29
    %s49 = sphi 0, %s49
    %s51 = sphi 0, %s49
    %s52 = sphi 0, %s51
    %s66 = sphi 0, %s52
    %s70 = sphi 0, %s70
    %s72 = sphi 0, %s70
    %s73 = sphi 0, %s72
    %s87 = sphi 0, %s73
    %s91 = sphi 0, %s91
    %s93 = sphi 0, %s91
    %s94 = sphi 0, %s93
    %s108 = sphi 0, %s94
    %s112 = sphi 0, %s112
    %s114 = sphi 0, %s112
    %s115 = sphi 0, %s114
    %s129 = sphi 0, %s115
    %s133 = sphi 0, %s133
    %s135 = sphi 0, %s133
    %s136 = sphi 0, %s135
    %s150 = sphi 0, %s136
    %s154 = sphi 0, %s154
    %s156 = sphi 0, %s154
    %s157 = sphi 0, %s156
    %s171 = sphi 0, %s157
    %s175 = sphi 0, %s175
    %s177 = sphi 0, %s175
    %s178 = sphi 0, %s177
    %s192 = sphi 0, %s178
    %s196 = sphi 0, %s196
    %s198 = sphi 0, %s196
    %s199 = sphi 0, %s198
    %s213 = sphi 0, %s199
    %s219 = sphi 0, %s221
    %s222 = sphi 0, %s219
    %s223 = sphi 0, %s222
    %s239 = sphi 0, %s223
  $region4: #{_lambda_.7} parent=0 // loop_header_branch
    %18 = sbr.rel (%p16) target = $region8
  $region5: #{_lambda_.7} parent=0 // loop_body
    %s20 = ssub.s32 %s15, 1
    %s21 = ssub.s32 %s15, 2
    %s22 = sadd.s32 %s15, 1
    %s23 = ssub.s32 %s15, %s22
    %p24 = scmp.eq.s32.totalorder %s23, 0
    %s26 = sadd.s32 %s25, 1
    %s27 = scalar_select %p24, %s25, %s26
    %p30 = pneg %p24
    %p31 = scmp.eq.s32.totalorder %s15, 1
    %p32 = por %p30, %p31
    %p33 = scmp.ne.s32.totalorder %s25, %s28
    %p34 = scmp.eq.s32.totalorder %s15, 0
    %p35 = por %p33, %p34
    %p36 = scmp.ne.s32.totalorder %s25, %s28
    %p37 = scmp.eq.s32.totalorder %s20, 1
    %p38 = por %p36, %p37
    %p39 = scmp.ne.s32.totalorder %s28, %s29
    %p40 = scmp.eq.s32.totalorder %s20, 0
    %p41 = por %p39, %p40
    %p42 = scmp.ne.s32.totalorder %s28, %s29
    %p43 = scmp.eq.s32.totalorder %s21, 1
    %p44 = por %p42, %p43
    %p46 = scmp.ne.s32.totalorder %s29, %s45
    %p47 = scmp.eq.s32.totalorder %s21, 0
    %p48 = por %p46, %p47
    %s50 = sadd.s32 %s49, 1
    %p53 = scmp.eq.s32.totalorder %s15, 1
    %p54 = scmp.ne.s32.totalorder %s49, %s51
    %p55 = scmp.eq.s32.totalorder %s15, 0
    %p56 = por %p54, %p55
    %p57 = scmp.ne.s32.totalorder %s49, %s51
    %p58 = scmp.eq.s32.totalorder %s20, 1
    %p59 = por %p57, %p58
    %p60 = scmp.ne.s32.totalorder %s51, %s52
    %p61 = scmp.eq.s32.totalorder %s20, 0
    %p62 = por %p60, %p61
    %p63 = scmp.ne.s32.totalorder %s51, %s52
    %p64 = scmp.eq.s32.totalorder %s21, 1
    %p65 = por %p63, %p64
    %p67 = scmp.ne.s32.totalorder %s52, %s66
    %p68 = scmp.eq.s32.totalorder %s21, 0
    %p69 = por %p67, %p68
    %s71 = sadd.s32 %s70, 1
    %p74 = scmp.eq.s32.totalorder %s15, 1
    %p75 = scmp.ne.s32.totalorder %s70, %s72
    %p76 = scmp.eq.s32.totalorder %s15, 0
    %p77 = por %p75, %p76
    %p78 = scmp.ne.s32.totalorder %s70, %s72
    %p79 = scmp.eq.s32.totalorder %s20, 1
    %p80 = por %p78, %p79
    %p81 = scmp.ne.s32.totalorder %s72, %s73
    %p82 = scmp.eq.s32.totalorder %s20, 0
    %p83 = por %p81, %p82
    %p84 = scmp.ne.s32.totalorder %s72, %s73
    %p85 = scmp.eq.s32.totalorder %s21, 1
    %p86 = por %p84, %p85
    %p88 = scmp.ne.s32.totalorder %s73, %s87
    %p89 = scmp.eq.s32.totalorder %s21, 0
    %p90 = por %p88, %p89
    %s92 = sadd.s32 %s91, 1
    %p95 = scmp.eq.s32.totalorder %s15, 1
    %p96 = scmp.ne.s32.totalorder %s91, %s93
    %p97 = scmp.eq.s32.totalorder %s15, 0
    %p98 = por %p96, %p97
    %p99 = scmp.ne.s32.totalorder %s91, %s93
    %p100 = scmp.eq.s32.totalorder %s20, 1
    %p101 = por %p99, %p100
    %p102 = scmp.ne.s32.totalorder %s93, %s94
    %p103 = scmp.eq.s32.totalorder %s20, 0
    %p104 = por %p102, %p103
    %p105 = scmp.ne.s32.totalorder %s93, %s94
    %p106 = scmp.eq.s32.totalorder %s21, 1
    %p107 = por %p105, %p106
    %p109 = scmp.ne.s32.totalorder %s94, %s108
    %p110 = scmp.eq.s32.totalorder %s21, 0
    %p111 = por %p109, %p110
    %s113 = sadd.s32 %s112, 1
    %p116 = scmp.eq.s32.totalorder %s15, 1
    %p117 = scmp.ne.s32.totalorder %s112, %s114
    %p118 = scmp.eq.s32.totalorder %s15, 0
    %p119 = por %p117, %p118
    %p120 = scmp.ne.s32.totalorder %s112, %s114
    %p121 = scmp.eq.s32.totalorder %s20, 1
    %p122 = por %p120, %p121
    %p123 = scmp.ne.s32.totalorder %s114, %s115
    %p124 = scmp.eq.s32.totalorder %s20, 0
    %p125 = por %p123, %p124
    %p126 = scmp.ne.s32.totalorder %s114, %s115
    %p127 = scmp.eq.s32.totalorder %s21, 1
    %p128 = por %p126, %p127
    %p130 = scmp.ne.s32.totalorder %s115, %s129
    %p131 = scmp.eq.s32.totalorder %s21, 0
    %p132 = por %p130, %p131
    %s134 = sadd.s32 %s133, 1
    %p137 = scmp.eq.s32.totalorder %s15, 1
    %p138 = scmp.ne.s32.totalorder %s133, %s135
    %p139 = scmp.eq.s32.totalorder %s15, 0
    %p140 = por %p138, %p139
    %p141 = scmp.ne.s32.totalorder %s133, %s135
    %p142 = scmp.eq.s32.totalorder %s20, 1
    %p143 = por %p141, %p142
    %p144 = scmp.ne.s32.totalorder %s135, %s136
    %p145 = scmp.eq.s32.totalorder %s20, 0
    %p146 = por %p144, %p145
    %p147 = scmp.ne.s32.totalorder %s135, %s136
    %p148 = scmp.eq.s32.totalorder %s21, 1
    %p149 = por %p147, %p148
    %p151 = scmp.ne.s32.totalorder %s136, %s150
    %p152 = scmp.eq.s32.totalorder %s21, 0
    %p153 = por %p151, %p152
    %s155 = sadd.s32 %s154, 1
    %p158 = scmp.eq.s32.totalorder %s15, 1
    %p159 = scmp.ne.s32.totalorder %s154, %s156
    %p160 = scmp.eq.s32.totalorder %s15, 0
    %p161 = por %p159, %p160
    %p162 = scmp.ne.s32.totalorder %s154, %s156
    %p163 = scmp.eq.s32.totalorder %s20, 1
    %p164 = por %p162, %p163
    %p165 = scmp.ne.s32.totalorder %s156, %s157
    %p166 = scmp.eq.s32.totalorder %s20, 0
    %p167 = por %p165, %p166
    %p168 = scmp.ne.s32.totalorder %s156, %s157
    %p169 = scmp.eq.s32.totalorder %s21, 1
    %p170 = por %p168, %p169
    %p172 = scmp.ne.s32.totalorder %s157, %s171
    %p173 = scmp.eq.s32.totalorder %s21, 0
    %p174 = por %p172, %p173
    %s176 = sadd.s32 %s175, 1
    %p179 = scmp.eq.s32.totalorder %s15, 1
    %p180 = scmp.ne.s32.totalorder %s175, %s177
    %p181 = scmp.eq.s32.totalorder %s15, 0
    %p182 = por %p180, %p181
    %p183 = scmp.ne.s32.totalorder %s175, %s177
    %p184 = scmp.eq.s32.totalorder %s20, 1
    %p185 = por %p183, %p184
    %p186 = scmp.ne.s32.totalorder %s177, %s178
    %p187 = scmp.eq.s32.totalorder %s20, 0
    %p188 = por %p186, %p187
    %p189 = scmp.ne.s32.totalorder %s177, %s178
    %p190 = scmp.eq.s32.totalorder %s21, 1
    %p191 = por %p189, %p190
    %p193 = scmp.ne.s32.totalorder %s178, %s192
    %p194 = scmp.eq.s32.totalorder %s21, 0
    %p195 = por %p193, %p194
    %s197 = sadd.s32 %s196, 1
    %p200 = scmp.eq.s32.totalorder %s15, 1
    %p201 = scmp.ne.s32.totalorder %s196, %s198
    %p202 = scmp.eq.s32.totalorder %s15, 0
    %p203 = por %p201, %p202
    %p204 = scmp.ne.s32.totalorder %s196, %s198
    %p205 = scmp.eq.s32.totalorder %s20, 1
    %p206 = por %p204, %p205
    %p207 = scmp.ne.s32.totalorder %s198, %s199
    %p208 = scmp.eq.s32.totalorder %s20, 0
    %p209 = por %p207, %p208
    %p210 = scmp.ne.s32.totalorder %s198, %s199
    %p211 = scmp.eq.s32.totalorder %s21, 1
    %p212 = por %p210, %p211
    %p214 = scmp.ne.s32.totalorder %s199, %s213
    %p215 = scmp.eq.s32.totalorder %s21, 0
    %p216 = por %p214, %p215
    %s217 = ssub.s32 %s15, %s22
    %p218 = scmp.eq.s32.totalorder %s217, 0
    %s220 = sadd.s32 %s219, 1
    %s221 = scalar_select %p218, %s219, %s220
    %p224 = pneg %p218
    %p225 = scmp.eq.s32.totalorder %s15, 1
    %p226 = por %p224, %p225
    %p227 = scmp.ne.s32.totalorder %s219, %s222
    %p228 = scmp.eq.s32.totalorder %s15, 0
    %p229 = por %p227, %p228
    %p230 = scmp.ne.s32.totalorder %s219, %s222
    %p231 = scmp.eq.s32.totalorder %s20, 1
    %p232 = por %p230, %p231
    %p233 = scmp.ne.s32.totalorder %s222, %s223
    %p234 = scmp.eq.s32.totalorder %s20, 0
    %p235 = por %p233, %p234
    %p236 = scmp.ne.s32.totalorder %s222, %s223
    %p237 = scmp.eq.s32.totalorder %s21, 1
    %p238 = por %p236, %p237
    %p240 = scmp.ne.s32.totalorder %s223, %s239
    %p241 = scmp.eq.s32.totalorder %s21, 0
    %p242 = por %p240, %p241
    %p243 = scmp.le.s32.totalorder 1, %s15
    %p244 = scmp.lt.s32.totalorder %s15, 3
    %p245 = pnand %p243, %p244
    %p246 = pneg %p245
    // Predicated region
    $region9: #{_lambda_.7} parent=5 // pred_check
      _
    $region10: #{_lambda_.7} parent=5 // pred_check_branch
      %248 = sbr.rel (%p245) target = $region12
    $region11: #{_lambda_.7} parent=5 // pred_region
      %s249 = ssub.s32 %s15, 1
      // Predicated region
      $region13: #{_lambda_.7} parent=11 // pred_check
        %p250 = pneg %p62
      $region14: #{_lambda_.7} parent=11 // pred_check_branch
        %252 = sbr.rel (%p250) target = $region16
      $region15: #{_lambda_.7} parent=11 // pred_region
        _
      $region16: #{_lambda_.7} parent=11 // pred_fallthru
        _
      // Predicated region
      $region17: #{_lambda_.7} parent=11 // pred_check
        %p253 = pneg %p83
      $region18: #{_lambda_.7} parent=11 // pred_check_branch
        %255 = sbr.rel (%p253) target = $region20
      $region19: #{_lambda_.7} parent=11 // pred_region
        _
      $region20: #{_lambda_.7} parent=11 // pred_fallthru
        _
      // Predicated region
      $region21: #{_lambda_.7} parent=11 // pred_check
        %p256 = pneg %p104
      $region22: #{_lambda_.7} parent=11 // pred_check_branch
        %258 = sbr.rel (%p256) target = $region24
      $region23: #{_lambda_.7} parent=11 // pred_region
        _
      $region24: #{_lambda_.7} parent=11 // pred_fallthru
        _
      // Predicated region
      $region25: #{_lambda_.7} parent=11 // pred_check
        %p259 = pneg %p125
      $region26: #{_lambda_.7} parent=11 // pred_check_branch
        %261 = sbr.rel (%p259) target = $region28
      $region27: #{_lambda_.7} parent=11 // pred_region
        _
      $region28: #{_lambda_.7} parent=11 // pred_fallthru
        _
      // Predicated region
      $region29: #{_lambda_.7} parent=11 // pred_check
        %p262 = pneg %p146
      $region30: #{_lambda_.7} parent=11 // pred_check_branch
        %264 = sbr.rel (%p262) target = $region32
      $region31: #{_lambda_.7} parent=11 // pred_region
        _
      $region32: #{_lambda_.7} parent=11 // pred_fallthru
        _
      // Predicated region
      $region33: #{_lambda_.7} parent=11 // pred_check
        %p265 = pneg %p167
      $region34: #{_lambda_.7} parent=11 // pred_check_branch
        %267 = sbr.rel (%p265) target = $region36
      $region35: #{_lambda_.7} parent=11 // pred_region
        _
      $region36: #{_lambda_.7} parent=11 // pred_fallthru
        _
      // Predicated region
      $region37: #{_lambda_.7} parent=11 // pred_check
        %p268 = pneg %p188
      $region38: #{_lambda_.7} parent=11 // pred_check_branch
        %270 = sbr.rel (%p268) target = $region40
      $region39: #{_lambda_.7} parent=11 // pred_region
        _
      $region40: #{_lambda_.7} parent=11 // pred_fallthru
        _
      // Predicated region
      $region41: #{_lambda_.7} parent=11 // pred_check
        %p271 = pneg %p209
      $region42: #{_lambda_.7} parent=11 // pred_check_branch
        %273 = sbr.rel (%p271) target = $region44
      $region43: #{_lambda_.7} parent=11 // pred_region
        _
      $region44: #{_lambda_.7} parent=11 // pred_fallthru
        _
    $region12: #{_lambda_.7} parent=5 // pred_fallthru
      _
    %p274 = scmp.lt.s32.totalorder %s15, 2
    // Predicated region
    $region45: #{_lambda_.7} parent=5 // pred_check
      %p275 = pneg %p274
    $region46: #{_lambda_.7} parent=5 // pred_check_branch
      %277 = sbr.rel (%p275) target = $region48
    $region47: #{_lambda_.7} parent=5 // pred_region
      // Predicated region
      $region49: #{_lambda_.7} parent=47 // pred_check
        %p278 = pneg %p35
      $region50: #{_lambda_.7} parent=47 // pred_check_branch
        %280 = sbr.rel (%p278) target = $region52
      $region51: #{_lambda_.7} parent=47 // pred_region
        %p281 = scmp.lt.s32.totalorder %s15, 1
        %s282 = scalar_select %p281, %s15, 1
        %s283 = smul.addr %s282, 2
        %s284 = scalar_lea.vmem %s0, %s283
      $region52: #{_lambda_.7} parent=47 // pred_fallthru
        _
    $region48: #{_lambda_.7} parent=5 // pred_fallthru
      _
    %p285 = scmp.le.s32.totalorder 1, %s15
    %p286 = scmp.lt.s32.totalorder %s15, 3
    %p287 = pnand %p285, %p286
    %p288 = pneg %p287
    // Predicated region
    $region53: #{_lambda_.7} parent=5 // pred_check
      _
    $region54: #{_lambda_.7} parent=5 // pred_check_branch
      %290 = sbr.rel (%p287) target = $region56
    $region55: #{_lambda_.7} parent=5 // pred_region
      %s291 = ssub.s32 %s15, 1
      %p292 = scmp.lt.s32.totalorder %s20, 1
      %s293 = scalar_select %p292, %s20, 1
      %s294 = smul.addr %s293, 2
      %s295 = scalar_lea.vmem %s0, %s294
      %p296 = pneg %p41
      %p297 = pneg %p38
      %p298 = pneg %p62
      %p299 = pneg %p59
      %p300 = pneg %p83
      %p301 = pneg %p80
      %p302 = pneg %p104
      %p303 = pneg %p101
      %p304 = pneg %p125
      %p305 = pneg %p122
      %p306 = pneg %p146
      %p307 = pneg %p143
      %p308 = pneg %p167
      %p309 = pneg %p164
      %p310 = pneg %p188
      %p311 = pneg %p185
      %p312 = pneg %p209
      %p313 = pneg %p206
      %p314 = pneg %p235
      %p315 = pneg %p232
      %p316 = scmp.lt.s32.totalorder %s20, 1
      %s317 = scalar_select %p316, %s20, 1
      %s318 = smul.addr %s317, 2
      %s319 = scalar_lea.vmem %s9, %s318
      %p320 = scmp.lt.s32.totalorder %s20, 1
      %s321 = scalar_select %p320, %s20, 1
      %s322 = smul.addr %s321, 2
      %s323 = scalar_lea.vmem %s0, %s322
      %p324 = scmp.lt.s32.totalorder %s20, 1
      %s325 = scalar_select %p324, %s20, 1
      %s326 = smul.addr %s325, 2
      %s327 = scalar_lea.vmem %s9, %s326
      %v329 = vld [vmem:[%s323] sm:$0x3]
      %v330 = vld [vmem:[%s1] sm:$0xf]
      %v331 = vld [vmem:[%s1 + $0x4] sm:$0xf]
      %v332 = vld [vmem:[%s1 + $0x8] sm:$0xf]
      %v333 = vld [vmem:[%s1 + $0xc] sm:$0xf]
      %v334 = vld [vmem:[%s1 + $0x10] sm:$0xf]
      %v335 = vld [vmem:[%s1 + $0x14] sm:$0xf]
      %v336 = vld [vmem:[%s1 + $0x18] sm:$0xf]
      %v337 = vld [vmem:[%s1 + $0x1c] sm:$0xf]
      %v338 = vld [vmem:[%s1 + $0x20] sm:$0xf]
      %v339 = vld [vmem:[%s1 + $0x24] sm:$0xf]
      %v340 = vld [vmem:[%s1 + $0x28] sm:$0xf]
      %v341 = vld [vmem:[%s1 + $0x2c] sm:$0xf]
      %v342 = vld [vmem:[%s1 + $0x30] sm:$0xf]
      %v343 = vld [vmem:[%s1 + $0x34] sm:$0xf]
      %v344 = vld [vmem:[%s1 + $0x38] sm:$0xf]
      %v345 = vld [vmem:[%s1 + $0x3c] sm:$0xf]
      %v362 = vunpack.c.l.b16 %v330
      %v363 = vunpack.c.l.b16 %v331
      %v364 = vunpack.c.l.b16 %v332
      %v365 = vunpack.c.l.b16 %v333
      %v366 = vunpack.c.l.b16 %v334
      %v367 = vunpack.c.l.b16 %v335
      %v368 = vunpack.c.l.b16 %v336
      %v369 = vunpack.c.l.b16 %v337
      %v370 = vunpack.c.l.b16 %v338
      %v371 = vunpack.c.l.b16 %v339
      %v372 = vunpack.c.l.b16 %v340
      %v373 = vunpack.c.l.b16 %v341
      %v374 = vunpack.c.l.b16 %v342
      %v375 = vunpack.c.l.b16 %v343
      %v376 = vunpack.c.l.b16 %v344
      %v377 = vunpack.c.l.b16 %v345
      %v378 = vpack.c.b16 %v363, %v362
      %v379 = vpack.c.b16 %v365, %v364
      %v380 = vpack.c.b16 %v367, %v366
      %v381 = vpack.c.b16 %v369, %v368
      %v382 = vpack.c.b16 %v371, %v370
      %v383 = vpack.c.b16 %v373, %v372
      %v384 = vpack.c.b16 %v375, %v374
      %v385 = vpack.c.b16 %v377, %v376
      %394 = vmatprep.subr.bf16.mxu0 0
      %395 = vmatpush1.bf16.msra.mxu0 %v378
      %396 = vmatprep.subr.bf16.mxu0 0
      %397 = vmatpush1.bf16.msra.mxu0 %v379
      %398 = vmatprep.subr.bf16.mxu0 0
      %399 = vmatpush1.bf16.msra.mxu0 %v380
      %400 = vmatprep.subr.bf16.mxu0 0
      %401 = vmatpush1.bf16.msra.mxu0 %v381
      %402 = vmatprep.subr.bf16.mxu0 0
      %403 = vmatpush1.bf16.msra.mxu0 %v382
      %404 = vmatprep.subr.bf16.mxu0 0
      %405 = vmatpush1.bf16.msra.mxu0 %v383
      %406 = vmatprep.subr.bf16.mxu0 0
      %407 = vmatpush1.bf16.msra.mxu0 %v384
      %408 = vmatprep.subr.bf16.mxu0 0
      %409 = vmatpush1.bf16.msra.mxu0 %v385
      %410 = vmatprep.subr.bf16.mxu0 0
      %411 = vmatpush1.bf16.msra.mxu0 0
      %412 = vmatprep.subr.bf16.mxu0 0
      %413 = vmatpush1.bf16.msra.mxu0 0
      %414 = vmatprep.subr.bf16.mxu0 0
      %415 = vmatpush1.bf16.msra.mxu0 0
      %416 = vmatprep.subr.bf16.mxu0 0
      %417 = vmatpush1.bf16.msra.mxu0 0
      %418 = vmatprep.subr.bf16.mxu0 0
      %419 = vmatpush1.bf16.msra.mxu0 0
      %420 = vmatprep.subr.bf16.mxu0 0
      %421 = vmatpush1.bf16.msra.mxu0 0
      %422 = vmatprep.subr.bf16.mxu0 0
      %423 = vmatpush1.bf16.msra.mxu0 0
      %424 = vmatprep.subr.bf16.mxu0 0
      %425 = vmatpush1.bf16.msra.mxu0 0
      %426 = vmatprep.mubr.bf16.mxu0 0
      %427 = vmatmul.mubr.bf16.gmra.mrb[0].mxu0 %v329
      %v428 = vpop.f32.mrb[0].mxu0
      %v429 = vadd.f32 0.0, %v428
      %v430 = vpop.f32.mrb[0].mxu0
      %v431 = vpop.f32.mrb[0].mxu0
      %v432 = vpop.f32.mrb[0].mxu0
      %433 = vdwg.mxu0
      %v434 = vld [vmem:[%s2] sm:$0x3]
      %v435 = vld [vmem:[%s3] sm:$0xf]
      %436 = vrot.lane.b32.xlu0 %v429, 11
      %v437 = vpop.permute.xlu0 %436
      %438 = vrot.lane.b32.xlu0 %v429, 10
      %v439 = vpop.permute.xlu0 %438
      %440 = vrot.lane.b32.xlu0 %v429, 9
      %v441 = vpop.permute.xlu0 %440
      %442 = vrot.lane.b32.xlu0 %v429, 1
      %v443 = vpop.permute.xlu0 %442
      %444 = vrot.lane.b32.xlu0 %v429, 127
      %v445 = vpop.permute.xlu0 %444
      %446 = vrot.lane.b32.xlu0 %v429, 119
      %v447 = vpop.permute.xlu0 %446
      %448 = vrot.lane.b32.xlu0 %v429, 118
      %v449 = vpop.permute.xlu0 %448
      %450 = vrot.lane.b32.xlu0 %v429, 117
      %v451 = vpop.permute.xlu0 %450
      %v453 = vrot.slane %v439, 4
      %v456 = vrot.slane %v443, 4
      %v459 = vrot.slane %v445, 4
      %v462 = vrot.slane %v449, 4
      %vm464 = vcmask 1043456
      %v465 = vsel %vm464, %v437, %v453
      %v466 = vsel %vm464, %v441, %v456
      %v467 = vsel %vm464, %v429, %v459
      %v468 = vsel %vm464, %v447, %v462
      %v469 = vpack.c.bf16 %v466, %v465
      %v470 = vpack.c.bf16 %v468, %v467
      %v471 = vpack.c.bf16 %v451, %v451
      %473 = vset.pattern.permute.xlu0 0
      %474 = vperm.xlu0 %473, %v435
      %v475 = vpop.permute.xlu0 %474
      %vm477 = vcmask 293888
      %v479 = vsel %vm477, %v434, 0
      %vm481 = vcmask 1041408
      %v483 = vsel %vm481, %v471, 0
      %485 = vmatprep.subr.bf16.mxu0 0
      %486 = vmatpush1.bf16.msra.mxu0 %v469
      %487 = vmatprep.subr.bf16.mxu0 0
      %488 = vmatpush1.bf16.msra.mxu0 %v470
      %489 = vmatprep.subr.bf16.mxu0 0
      %490 = vmatpush1.bf16.msra.mxu0 %v483
      %491 = vmatprep.subr.bf16.mxu0 0
      %492 = vmatpush1.bf16.msra.mxu0 0
      %493 = vmatprep.subr.bf16.mxu0 0
      %494 = vmatpush1.bf16.msra.mxu0 0
      %495 = vmatprep.subr.bf16.mxu0 0
      %496 = vmatpush1.bf16.msra.mxu0 0
      %497 = vmatprep.subr.bf16.mxu0 0
      %498 = vmatpush1.bf16.msra.mxu0 0
      %499 = vmatprep.subr.bf16.mxu0 0
      %500 = vmatpush1.bf16.msra.mxu0 0
      %501 = vmatprep.subr.bf16.mxu0 0
      %502 = vmatpush1.bf16.msra.mxu0 0
      %503 = vmatprep.subr.bf16.mxu0 0
      %504 = vmatpush1.bf16.msra.mxu0 0
      %505 = vmatprep.subr.bf16.mxu0 0
      %506 = vmatpush1.bf16.msra.mxu0 0
      %507 = vmatprep.subr.bf16.mxu0 0
      %508 = vmatpush1.bf16.msra.mxu0 0
      %509 = vmatprep.subr.bf16.mxu0 0
      %510 = vmatpush1.bf16.msra.mxu0 0
      %511 = vmatprep.subr.bf16.mxu0 0
      %512 = vmatpush1.bf16.msra.mxu0 0
      %513 = vmatprep.subr.bf16.mxu0 0
      %514 = vmatpush1.bf16.msra.mxu0 0
      %515 = vmatprep.subr.bf16.mxu0 0
      %516 = vmatpush1.bf16.msra.mxu0 0
      %517 = vmatprep.mubr.bf16.mxu0 0
      %518 = vmatmul.mubr.bf16.gmra.mrb[0].mxu0 %v479
      %v519 = vpop.f32.mrb[0].mxu0
      %v520 = vadd.f32 %v475, %v519
      %v521 = vpop.f32.mrb[0].mxu0
      %v522 = vpop.f32.mrb[0].mxu0
      %v523 = vpop.f32.mrb[0].mxu0
      %524 = vdwg.mxu0
      %v525 = vld [vmem:[%s4] sm:$0x3]
      %v526 = vld [vmem:[%s5] sm:$0xf]
      %v527 = vpack.c.bf16 %v520, %v520
      %529 = vset.pattern.permute.xlu0 0
      %530 = vperm.xlu0 %529, %v526
      %v531 = vpop.permute.xlu0 %530
      %vm533 = vcmask 31744
      %v535 = vsel %vm533, %v525, 0
      %v538 = vsel %vm481, %v527, 0
      %540 = vmatprep.subr.bf16.mxu0 0
      %541 = vmatpush1.bf16.msra.mxu0 %v538
      %542 = vmatprep.subr.bf16.mxu0 0
      %543 = vmatpush1.bf16.msra.mxu0 0
      %544 = vmatprep.subr.bf16.mxu0 0
      %545 = vmatpush1.bf16.msra.mxu0 0
      %546 = vmatprep.subr.bf16.mxu0 0
      %547 = vmatpush1.bf16.msra.mxu0 0
      %548 = vmatprep.subr.bf16.mxu0 0
      %549 = vmatpush1.bf16.msra.mxu0 0
      %550 = vmatprep.subr.bf16.mxu0 0
      %551 = vmatpush1.bf16.msra.mxu0 0
      %552 = vmatprep.subr.bf16.mxu0 0
      %553 = vmatpush1.bf16.msra.mxu0 0
      %554 = vmatprep.subr.bf16.mxu0 0
      %555 = vmatpush1.bf16.msra.mxu0 0
      %556 = vmatprep.subr.bf16.mxu0 0
      %557 = vmatpush1.bf16.msra.mxu0 0
      %558 = vmatprep.subr.bf16.mxu0 0
      %559 = vmatpush1.bf16.msra.mxu0 0
      %560 = vmatprep.subr.bf16.mxu0 0
      %561 = vmatpush1.bf16.msra.mxu0 0
      %562 = vmatprep.subr.bf16.mxu0 0
      %563 = vmatpush1.bf16.msra.mxu0 0
      %564 = vmatprep.subr.bf16.mxu0 0
      %565 = vmatpush1.bf16.msra.mxu0 0
      %566 = vmatprep.subr.bf16.mxu0 0
      %567 = vmatpush1.bf16.msra.mxu0 0
      %568 = vmatprep.subr.bf16.mxu0 0
      %569 = vmatpush1.bf16.msra.mxu0 0
      %570 = vmatprep.subr.bf16.mxu0 0
      %571 = vmatpush1.bf16.msra.mxu0 0
      %572 = vmatprep.mubr.bf16.mxu0 0
      %573 = vmatmul.mubr.bf16.gmra.mrb[0].mxu0 %v535
      %v574 = vpop.f32.mrb[0].mxu0
      %v575 = vadd.f32 %v531, %v574
      %v576 = vpop.f32.mrb[0].mxu0
      %v577 = vpop.f32.mrb[0].mxu0
      %v578 = vpop.f32.mrb[0].mxu0
      %579 = vdwg.mxu0
      %v580 = vmax.f32 %v575, 0.0
      %v581 = vld [vmem:[%s6] sm:$0x3]
      %v582 = vld [vmem:[%s7] sm:$0xf]
      %v583 = vpack.c.bf16 %v580, %v580
      %585 = vset.pattern.permute.xlu0 0
      %586 = vperm.xlu0 %585, %v582
      %v587 = vpop.permute.xlu0 %586
      %v590 = vsel %vm533, %v581, 0
      %v593 = vsel %vm481, %v583, 0
      %595 = vmatprep.subr.bf16.mxu0 0
      %596 = vmatpush1.bf16.msra.mxu0 %v593
      %597 = vmatprep.subr.bf16.mxu0 0
      %598 = vmatpush1.bf16.msra.mxu0 0
      %599 = vmatprep.subr.bf16.mxu0 0
      %600 = vmatpush1.bf16.msra.mxu0 0
      %601 = vmatprep.subr.bf16.mxu0 0
      %602 = vmatpush1.bf16.msra.mxu0 0
      %603 = vmatprep.subr.bf16.mxu0 0
      %604 = vmatpush1.bf16.msra.mxu0 0
      %605 = vmatprep.subr.bf16.mxu0 0
      %606 = vmatpush1.bf16.msra.mxu0 0
      %607 = vmatprep.subr.bf16.mxu0 0
      %608 = vmatpush1.bf16.msra.mxu0 0
      %609 = vmatprep.subr.bf16.mxu0 0
      %610 = vmatpush1.bf16.msra.mxu0 0
      %611 = vmatprep.subr.bf16.mxu0 0
      %612 = vmatpush1.bf16.msra.mxu0 0
      %613 = vmatprep.subr.bf16.mxu0 0
      %614 = vmatpush1.bf16.msra.mxu0 0
      %615 = vmatprep.subr.bf16.mxu0 0
      %616 = vmatpush1.bf16.msra.mxu0 0
      %617 = vmatprep.subr.bf16.mxu0 0
      %618 = vmatpush1.bf16.msra.mxu0 0
      %619 = vmatprep.subr.bf16.mxu0 0
      %620 = vmatpush1.bf16.msra.mxu0 0
      %621 = vmatprep.subr.bf16.mxu0 0
      %622 = vmatpush1.bf16.msra.mxu0 0
      %623 = vmatprep.subr.bf16.mxu0 0
      %624 = vmatpush1.bf16.msra.mxu0 0
      %625 = vmatprep.subr.bf16.mxu0 0
      %626 = vmatpush1.bf16.msra.mxu0 0
      %627 = vmatprep.mubr.bf16.mxu0 0
      %628 = vmatmul.mubr.bf16.gmra.mrb[0].mxu0 %v590
      %v629 = vpop.f32.mrb[0].mxu0
      %v630 = vadd.f32 %v587, %v629
      %v631 = vpop.f32.mrb[0].mxu0
      %v632 = vpop.f32.mrb[0].mxu0
      %v633 = vpop.f32.mrb[0].mxu0
      %634 = vdwg.mxu0
      %v635 = vld [vmem:[%s8] sm:$0x1]
      %v637 = vlaneseq
      %v638 = vshrl.u32 %v637, 7
      %v639 = vsub.s32 0, %v638
      %v640 = vrot.slane %v635, %v639
      %v642 = vmul.f32 %v630, %v640
      %v643 = vpack.c.bf16 %v642, %v642
      %644 = vst [vmem:[%s327] sm:$0x3] %v643
      %p645 = scmp.lt.s32.totalorder %s20, 1
      %s646 = scalar_select %p645, %s20, 1
      %s647 = smul.addr %s646, 2
      %s648 = scalar_lea.vmem %s9, %s647
      // Predicated region
      $region57: #{_lambda_.7} parent=55 // pred_check
        %p649 = pneg %p232
      $region58: #{_lambda_.7} parent=55 // pred_check_branch
        %651 = sbr.rel (%p649) target = $region60
      $region59: #{_lambda_.7} parent=55 // pred_region
        _
      $region60: #{_lambda_.7} parent=55 // pred_fallthru
        _
    $region56: #{_lambda_.7} parent=5 // pred_fallthru
      _
    %p652 = scmp.le.s32.totalorder 2, %s15
    // Predicated region
    $region61: #{_lambda_.7} parent=5 // pred_check
      %p653 = pneg %p652
    $region62: #{_lambda_.7} parent=5 // pred_check_branch
      %655 = sbr.rel (%p653) target = $region64
    $region63: #{_lambda_.7} parent=5 // pred_region
      %s656 = ssub.s32 %s15, 2
      // Predicated region
      $region65: #{_lambda_.7} parent=63 // pred_check
        %p657 = pneg %p238
      $region66: #{_lambda_.7} parent=63 // pred_check_branch
        %659 = sbr.rel (%p657) target = $region68
      $region67: #{_lambda_.7} parent=63 // pred_region
        %p660 = scmp.lt.s32.totalorder %s21, 1
        %s661 = scalar_select %p660, %s21, 1
        %s662 = smul.addr %s661, 2
        %s663 = scalar_lea.vmem %s9, %s662
      $region68: #{_lambda_.7} parent=63 // pred_fallthru
        _
    $region64: #{_lambda_.7} parent=5 // pred_fallthru
      _
  $region6: #{_lambda_.7} parent=0 // loop_footer
    %s19 = sadd.s32 1, %s15
  $region7: #{_lambda_.7} parent=0 // loop_footer_branch
    %14 = sbr.rel target = $region3
  $region8: #{_lambda_.7} parent=0 // loop_exit
    _

// kernel: _lambda_.8
$region0: #{_lambda_.8}
  #allocation0 [shape = 'u32[]', space=smem, size = 0x4, offset = 0x4, fixed_abs, tag = 'smem constant byte address 0x4 - core index']
  #allocation1 [shape = 'u32[144,128]{1,0:T(1,128)}', space=vmem, size = 0x12000, scoped, tag = 'internal scratch']
  %s0 = inlined_call_operand.vmem [shape: bf16[4,256], index: 0, kind: input, shape index: {}]
  %s1 = inlined_call_operand.vmem [shape: bf16[4,256], index: 1, kind: input, shape index: {}]
  %s2 = inlined_call_operand.vmem [shape: bf16[4,36], index: 2, kind: input, shape index: {}]
  %s3 = inlined_call_operand.vmem [shape: f32[4,1], index: 3, kind: input, shape index: {}]
  %s4 = inlined_call_operand.vmem [shape: bf16[4,72], index: 4, kind: input, shape index: {}]
  %s5 = inlined_call_operand.vmem [shape: f32[4,1], index: 5, kind: input, shape index: {}]
  %s6 = inlined_call_operand.vmem [shape: bf16[4,4], index: 6, kind: input, shape index: {}]
  %s7 = inlined_call_operand.vmem [shape: f32[4,1], index: 7, kind: input, shape index: {}]
  %s8 = inlined_call_operand.vmem [shape: f32[1,128], index: 8, kind: input, shape index: {}]
  %s9 = inlined_call_operand.vmem [shape: bf16[4,256], index: 9, kind: output, shape index: {}]
  %s10 = sld [smem:[#allocation0]]
  $region69: #{_lambda_.8} parent=0
    _
  %s12 = ssub.s32 1, %s10
  %s13 = scalar_select 0, %s12, %s10
  loop: start=0, step=1, limit=4
  $region2: #{_lambda_.8} parent=0 // loop_pre_header
    _
  $region3: #{_lambda_.8} parent=0 // loop_header
    %s15 = sphi 0, %s19
    %p16 = scmp.ge.s32.totalorder %s15, 4
    %s25 = sphi 0, %s27
    %s28 = sphi 0, %s25
    %s29 = sphi 0, %s28
    %s45 = sphi 0, %s29
    %s51 = sphi 0, %s53
    %s54 = sphi 0, %s51
    %s55 = sphi 0, %s54
    %s71 = sphi 0, %s55
    %s75 = sphi 0, %s75
    %s77 = sphi 0, %s75
    %s78 = sphi 0, %s77
    %s92 = sphi 0, %s78
    %s96 = sphi 0, %s96
    %s98 = sphi 0, %s96
    %s99 = sphi 0, %s98
    %s113 = sphi 0, %s99
    %s117 = sphi 0, %s117
    %s119 = sphi 0, %s117
    %s120 = sphi 0, %s119
    %s134 = sphi 0, %s120
    %s138 = sphi 0, %s138
    %s140 = sphi 0, %s138
    %s141 = sphi 0, %s140
    %s155 = sphi 0, %s141
    %s159 = sphi 0, %s159
    %s161 = sphi 0, %s159
    %s162 = sphi 0, %s161
    %s176 = sphi 0, %s162
    %s180 = sphi 0, %s180
    %s182 = sphi 0, %s180
    %s183 = sphi 0, %s182
    %s197 = sphi 0, %s183
    %s201 = sphi 0, %s201
    %s203 = sphi 0, %s201
    %s204 = sphi 0, %s203
    %s218 = sphi 0, %s204
    %s224 = sphi 0, %s226
    %s227 = sphi 0, %s224
    %s228 = sphi 0, %s227
    %s244 = sphi 0, %s228
  $region4: #{_lambda_.8} parent=0 // loop_header_branch
    %18 = sbr.rel (%p16) target = $region8
  $region5: #{_lambda_.8} parent=0 // loop_body
    %s20 = ssub.s32 %s15, 1
    %s21 = ssub.s32 %s15, 2
    %s22 = sadd.s32 %s15, 1
    %s23 = ssub.s32 %s15, %s22
    %p24 = scmp.eq.s32.totalorder %s23, 0
    %s26 = sadd.s32 %s25, 1
    %s27 = scalar_select %p24, %s25, %s26
    %p30 = pneg %p24
    %p31 = scmp.eq.s32.totalorder %s15, 1
    %p32 = por %p30, %p31
    %p33 = scmp.ne.s32.totalorder %s25, %s28
    %p34 = scmp.eq.s32.totalorder %s15, 0
    %p35 = por %p33, %p34
    %p36 = scmp.ne.s32.totalorder %s25, %s28
    %p37 = scmp.eq.s32.totalorder %s20, 1
    %p38 = por %p36, %p37
    %p39 = scmp.ne.s32.totalorder %s28, %s29
    %p40 = scmp.eq.s32.totalorder %s20, 0
    %p41 = por %p39, %p40
    %p42 = scmp.ne.s32.totalorder %s28, %s29
    %p43 = scmp.eq.s32.totalorder %s21, 1
    %p44 = por %p42, %p43
    %p46 = scmp.ne.s32.totalorder %s29, %s45
    %p47 = scmp.eq.s32.totalorder %s21, 0
    %p48 = por %p46, %p47
    %s49 = ssub.s32 %s15, %s22
    %p50 = scmp.eq.s32.totalorder %s49, 0
    %s52 = sadd.s32 %s51, 1
    %s53 = scalar_select %p50, %s51, %s52
    %p56 = pneg %p50
    %p57 = scmp.eq.s32.totalorder %s15, 1
    %p58 = por %p56, %p57
    %p59 = scmp.ne.s32.totalorder %s51, %s54
    %p60 = scmp.eq.s32.totalorder %s15, 0
    %p61 = por %p59, %p60
    %p62 = scmp.ne.s32.totalorder %s51, %s54
    %p63 = scmp.eq.s32.totalorder %s20, 1
    %p64 = por %p62, %p63
    %p65 = scmp.ne.s32.totalorder %s54, %s55
    %p66 = scmp.eq.s32.totalorder %s20, 0
    %p67 = por %p65, %p66
    %p68 = scmp.ne.s32.totalorder %s54, %s55
    %p69 = scmp.eq.s32.totalorder %s21, 1
    %p70 = por %p68, %p69
    %p72 = scmp.ne.s32.totalorder %s55, %s71
    %p73 = scmp.eq.s32.totalorder %s21, 0
    %p74 = por %p72, %p73
    %s76 = sadd.s32 %s75, 1
    %p79 = scmp.eq.s32.totalorder %s15, 1
    %p80 = scmp.ne.s32.totalorder %s75, %s77
    %p81 = scmp.eq.s32.totalorder %s15, 0
    %p82 = por %p80, %p81
    %p83 = scmp.ne.s32.totalorder %s75, %s77
    %p84 = scmp.eq.s32.totalorder %s20, 1
    %p85 = por %p83, %p84
    %p86 = scmp.ne.s32.totalorder %s77, %s78
    %p87 = scmp.eq.s32.totalorder %s20, 0
    %p88 = por %p86, %p87
    %p89 = scmp.ne.s32.totalorder %s77, %s78
    %p90 = scmp.eq.s32.totalorder %s21, 1
    %p91 = por %p89, %p90
    %p93 = scmp.ne.s32.totalorder %s78, %s92
    %p94 = scmp.eq.s32.totalorder %s21, 0
    %p95 = por %p93, %p94
    %s97 = sadd.s32 %s96, 1
    %p100 = scmp.eq.s32.totalorder %s15, 1
    %p101 = scmp.ne.s32.totalorder %s96, %s98
    %p102 = scmp.eq.s32.totalorder %s15, 0
    %p103 = por %p101, %p102
    %p104 = scmp.ne.s32.totalorder %s96, %s98
    %p105 = scmp.eq.s32.totalorder %s20, 1
    %p106 = por %p104, %p105
    %p107 = scmp.ne.s32.totalorder %s98, %s99
    %p108 = scmp.eq.s32.totalorder %s20, 0
    %p109 = por %p107, %p108
    %p110 = scmp.ne.s32.totalorder %s98, %s99
    %p111 = scmp.eq.s32.totalorder %s21, 1
    %p112 = por %p110, %p111
    %p114 = scmp.ne.s32.totalorder %s99, %s113
    %p115 = scmp.eq.s32.totalorder %s21, 0
    %p116 = por %p114, %p115
    %s118 = sadd.s32 %s117, 1
    %p121 = scmp.eq.s32.totalorder %s15, 1
    %p122 = scmp.ne.s32.totalorder %s117, %s119
    %p123 = scmp.eq.s32.totalorder %s15, 0
    %p124 = por %p122, %p123
    %p125 = scmp.ne.s32.totalorder %s117, %s119
    %p126 = scmp.eq.s32.totalorder %s20, 1
    %p127 = por %p125, %p126
    %p128 = scmp.ne.s32.totalorder %s119, %s120
    %p129 = scmp.eq.s32.totalorder %s20, 0
    %p130 = por %p128, %p129
    %p131 = scmp.ne.s32.totalorder %s119, %s120
    %p132 = scmp.eq.s32.totalorder %s21, 1
    %p133 = por %p131, %p132
    %p135 = scmp.ne.s32.totalorder %s120, %s134
    %p136 = scmp.eq.s32.totalorder %s21, 0
    %p137 = por %p135, %p136
    %s139 = sadd.s32 %s138, 1
    %p142 = scmp.eq.s32.totalorder %s15, 1
    %p143 = scmp.ne.s32.totalorder %s138, %s140
    %p144 = scmp.eq.s32.totalorder %s15, 0
    %p145 = por %p143, %p144
    %p146 = scmp.ne.s32.totalorder %s138, %s140
    %p147 = scmp.eq.s32.totalorder %s20, 1
    %p148 = por %p146, %p147
    %p149 = scmp.ne.s32.totalorder %s140, %s141
    %p150 = scmp.eq.s32.totalorder %s20, 0
    %p151 = por %p149, %p150
    %p152 = scmp.ne.s32.totalorder %s140, %s141
    %p153 = scmp.eq.s32.totalorder %s21, 1
    %p154 = por %p152, %p153
    %p156 = scmp.ne.s32.totalorder %s141, %s155
    %p157 = scmp.eq.s32.totalorder %s21, 0
    %p158 = por %p156, %p157
    %s160 = sadd.s32 %s159, 1
    %p163 = scmp.eq.s32.totalorder %s15, 1
    %p164 = scmp.ne.s32.totalorder %s159, %s161
    %p165 = scmp.eq.s32.totalorder %s15, 0
    %p166 = por %p164, %p165
    %p167 = scmp.ne.s32.totalorder %s159, %s161
    %p168 = scmp.eq.s32.totalorder %s20, 1
    %p169 = por %p167, %p168
    %p170 = scmp.ne.s32.totalorder %s161, %s162
    %p171 = scmp.eq.s32.totalorder %s20, 0
    %p172 = por %p170, %p171
    %p173 = scmp.ne.s32.totalorder %s161, %s162
    %p174 = scmp.eq.s32.totalorder %s21, 1
    %p175 = por %p173, %p174
    %p177 = scmp.ne.s32.totalorder %s162, %s176
    %p178 = scmp.eq.s32.totalorder %s21, 0
    %p179 = por %p177, %p178
    %s181 = sadd.s32 %s180, 1
    %p184 = scmp.eq.s32.totalorder %s15, 1
    %p185 = scmp.ne.s32.totalorder %s180, %s182
    %p186 = scmp.eq.s32.totalorder %s15, 0
    %p187 = por %p185, %p186
    %p188 = scmp.ne.s32.totalorder %s180, %s182
    %p189 = scmp.eq.s32.totalorder %s20, 1
    %p190 = por %p188, %p189
    %p191 = scmp.ne.s32.totalorder %s182, %s183
    %p192 = scmp.eq.s32.totalorder %s20, 0
    %p193 = por %p191, %p192
    %p194 = scmp.ne.s32.totalorder %s182, %s183
    %p195 = scmp.eq.s32.totalorder %s21, 1
    %p196 = por %p194, %p195
    %p198 = scmp.ne.s32.totalorder %s183, %s197
    %p199 = scmp.eq.s32.totalorder %s21, 0
    %p200 = por %p198, %p199
    %s202 = sadd.s32 %s201, 1
    %p205 = scmp.eq.s32.totalorder %s15, 1
    %p206 = scmp.ne.s32.totalorder %s201, %s203
    %p207 = scmp.eq.s32.totalorder %s15, 0
    %p208 = por %p206, %p207
    %p209 = scmp.ne.s32.totalorder %s201, %s203
    %p210 = scmp.eq.s32.totalorder %s20, 1
    %p211 = por %p209, %p210
    %p212 = scmp.ne.s32.totalorder %s203, %s204
    %p213 = scmp.eq.s32.totalorder %s20, 0
    %p214 = por %p212, %p213
    %p215 = scmp.ne.s32.totalorder %s203, %s204
    %p216 = scmp.eq.s32.totalorder %s21, 1
    %p217 = por %p215, %p216
    %p219 = scmp.ne.s32.totalorder %s204, %s218
    %p220 = scmp.eq.s32.totalorder %s21, 0
    %p221 = por %p219, %p220
    %s222 = ssub.s32 %s15, %s22
    %p223 = scmp.eq.s32.totalorder %s222, 0
    %s225 = sadd.s32 %s224, 1
    %s226 = scalar_select %p223, %s224, %s225
    %p229 = pneg %p223
    %p230 = scmp.eq.s32.totalorder %s15, 1
    %p231 = por %p229, %p230
    %p232 = scmp.ne.s32.totalorder %s224, %s227
    %p233 = scmp.eq.s32.totalorder %s15, 0
    %p234 = por %p232, %p233
    %p235 = scmp.ne.s32.totalorder %s224, %s227
    %p236 = scmp.eq.s32.totalorder %s20, 1
    %p237 = por %p235, %p236
    %p238 = scmp.ne.s32.totalorder %s227, %s228
    %p239 = scmp.eq.s32.totalorder %s20, 0
    %p240 = por %p238, %p239
    %p241 = scmp.ne.s32.totalorder %s227, %s228
    %p242 = scmp.eq.s32.totalorder %s21, 1
    %p243 = por %p241, %p242
    %p245 = scmp.ne.s32.totalorder %s228, %s244
    %p246 = scmp.eq.s32.totalorder %s21, 0
    %p247 = por %p245, %p246
    %p248 = scmp.le.s32.totalorder 1, %s15
    %p249 = scmp.lt.s32.totalorder %s15, 3
    %p250 = pnand %p248, %p249
    %p251 = pneg %p250
    // Predicated region
    $region9: #{_lambda_.8} parent=5 // pred_check
      _
    $region10: #{_lambda_.8} parent=5 // pred_check_branch
      %253 = sbr.rel (%p250) target = $region12
    $region11: #{_lambda_.8} parent=5 // pred_region
      %s254 = ssub.s32 %s15, 1
      // Predicated region
      $region13: #{_lambda_.8} parent=11 // pred_check
        %p255 = pneg %p88
      $region14: #{_lambda_.8} parent=11 // pred_check_branch
        %257 = sbr.rel (%p255) target = $region16
      $region15: #{_lambda_.8} parent=11 // pred_region
        _
      $region16: #{_lambda_.8} parent=11 // pred_fallthru
        _
      // Predicated region
      $region17: #{_lambda_.8} parent=11 // pred_check
        %p258 = pneg %p109
      $region18: #{_lambda_.8} parent=11 // pred_check_branch
        %260 = sbr.rel (%p258) target = $region20
      $region19: #{_lambda_.8} parent=11 // pred_region
        _
      $region20: #{_lambda_.8} parent=11 // pred_fallthru
        _
      // Predicated region
      $region21: #{_lambda_.8} parent=11 // pred_check
        %p261 = pneg %p130
      $region22: #{_lambda_.8} parent=11 // pred_check_branch
        %263 = sbr.rel (%p261) target = $region24
      $region23: #{_lambda_.8} parent=11 // pred_region
        _
      $region24: #{_lambda_.8} parent=11 // pred_fallthru
        _
      // Predicated region
      $region25: #{_lambda_.8} parent=11 // pred_check
        %p264 = pneg %p151
      $region26: #{_lambda_.8} parent=11 // pred_check_branch
        %266 = sbr.rel (%p264) target = $region28
      $region27: #{_lambda_.8} parent=11 // pred_region
        _
      $region28: #{_lambda_.8} parent=11 // pred_fallthru
        _
      // Predicated region
      $region29: #{_lambda_.8} parent=11 // pred_check
        %p267 = pneg %p172
      $region30: #{_lambda_.8} parent=11 // pred_check_branch
        %269 = sbr.rel (%p267) target = $region32
      $region31: #{_lambda_.8} parent=11 // pred_region
        _
      $region32: #{_lambda_.8} parent=11 // pred_fallthru
        _
      // Predicated region
      $region33: #{_lambda_.8} parent=11 // pred_check
        %p270 = pneg %p193
      $region34: #{_lambda_.8} parent=11 // pred_check_branch
        %272 = sbr.rel (%p270) target = $region36
      $region35: #{_lambda_.8} parent=11 // pred_region
        _
      $region36: #{_lambda_.8} parent=11 // pred_fallthru
        _
      // Predicated region
      $region37: #{_lambda_.8} parent=11 // pred_check
        %p273 = pneg %p214
      $region38: #{_lambda_.8} parent=11 // pred_check_branch
        %275 = sbr.rel (%p273) target = $region40
      $region39: #{_lambda_.8} parent=11 // pred_region
        _
      $region40: #{_lambda_.8} parent=11 // pred_fallthru
        _
    $region12: #{_lambda_.8} parent=5 // pred_fallthru
      _
    %p276 = scmp.lt.s32.totalorder %s15, 2
    // Predicated region
    $region41: #{_lambda_.8} parent=5 // pred_check
      %p277 = pneg %p276
    $region42: #{_lambda_.8} parent=5 // pred_check_branch
      %279 = sbr.rel (%p277) target = $region44
    $region43: #{_lambda_.8} parent=5 // pred_region
      // Predicated region
      $region45: #{_lambda_.8} parent=43 // pred_check
        %p280 = pneg %p35
      $region46: #{_lambda_.8} parent=43 // pred_check_branch
        %282 = sbr.rel (%p280) target = $region48
      $region47: #{_lambda_.8} parent=43 // pred_region
        %p283 = scmp.lt.s32.totalorder %s15, 1
        %s284 = scalar_select %p283, %s15, 1
        %s285 = smul.addr %s284, 2
        %s286 = scalar_lea.vmem %s0, %s285
      $region48: #{_lambda_.8} parent=43 // pred_fallthru
        _
      // Predicated region
      $region49: #{_lambda_.8} parent=43 // pred_check
        %p287 = pneg %p61
      $region50: #{_lambda_.8} parent=43 // pred_check_branch
        %289 = sbr.rel (%p287) target = $region52
      $region51: #{_lambda_.8} parent=43 // pred_region
        %p290 = scmp.lt.s32.totalorder %s15, 1
        %s291 = scalar_select %p290, %s15, 1
        %s292 = smul.addr %s291, 2
        %s293 = scalar_lea.vmem %s1, %s292
      $region52: #{_lambda_.8} parent=43 // pred_fallthru
        _
    $region44: #{_lambda_.8} parent=5 // pred_fallthru
      _
    %p294 = scmp.le.s32.totalorder 1, %s15
    %p295 = scmp.lt.s32.totalorder %s15, 3
    %p296 = pnand %p294, %p295
    %p297 = pneg %p296
    // Predicated region
    $region53: #{_lambda_.8} parent=5 // pred_check
      _
    $region54: #{_lambda_.8} parent=5 // pred_check_branch
      %299 = sbr.rel (%p296) target = $region56
    $region55: #{_lambda_.8} parent=5 // pred_region
      %s300 = ssub.s32 %s15, 1
      %p301 = scmp.lt.s32.totalorder %s20, 1
      %s302 = scalar_select %p301, %s20, 1
      %s303 = smul.addr %s302, 2
      %s304 = scalar_lea.vmem %s0, %s303
      %p305 = pneg %p41
      %p306 = pneg %p38
      %p307 = scmp.lt.s32.totalorder %s20, 1
      %s308 = scalar_select %p307, %s20, 1
      %s309 = smul.addr %s308, 2
      %s310 = scalar_lea.vmem %s1, %s309
      %p311 = pneg %p67
      %p312 = pneg %p64
      %p313 = pneg %p88
      %p314 = pneg %p85
      %p315 = pneg %p109
      %p316 = pneg %p106
      %p317 = pneg %p130
      %p318 = pneg %p127
      %p319 = pneg %p151
      %p320 = pneg %p148
      %p321 = pneg %p172
      %p322 = pneg %p169
      %p323 = pneg %p193
      %p324 = pneg %p190
      %p325 = pneg %p214
      %p326 = pneg %p211
      %p327 = pneg %p240
      %p328 = pneg %p237
      %p329 = scmp.lt.s32.totalorder %s20, 1
      %s330 = scalar_select %p329, %s20, 1
      %s331 = smul.addr %s330, 2
      %s332 = scalar_lea.vmem %s9, %s331
      %p333 = scmp.lt.s32.totalorder %s20, 1
      %s334 = scalar_select %p333, %s20, 1
      %s335 = smul.addr %s334, 2
      %s336 = scalar_lea.vmem %s0, %s335
      %p337 = scmp.lt.s32.totalorder %s20, 1
      %s338 = scalar_select %p337, %s20, 1
      %s339 = smul.addr %s338, 2
      %s340 = scalar_lea.vmem %s1, %s339
      %p341 = scmp.lt.s32.totalorder %s20, 1
      %s342 = scalar_select %p341, %s20, 1
      %s343 = smul.addr %s342, 2
      %s344 = scalar_lea.vmem %s9, %s343
      %v346 = vld [vmem:[%s8] sm:$0x1]
      %v347 = vld [vmem:[%s336] sm:$0x3]
      %v348 = vld [vmem:[%s2] sm:$0x3]
      %v349 = vld [vmem:[%s3] sm:$0xf]
      %v350 = vunpack.c.l.bf16 %v347
      %351 = vrot.lane.b32.xlu0 %v350, 11
      %v352 = vpop.permute.xlu0 %351
      %353 = vrot.lane.b32.xlu0 %v350, 10
      %v354 = vpop.permute.xlu0 %353
      %355 = vrot.lane.b32.xlu0 %v350, 9
      %v356 = vpop.permute.xlu0 %355
      %357 = vrot.lane.b32.xlu0 %v350, 1
      %v358 = vpop.permute.xlu0 %357
      %359 = vrot.lane.b32.xlu0 %v350, 127
      %v360 = vpop.permute.xlu0 %359
      %361 = vrot.lane.b32.xlu0 %v350, 119
      %v362 = vpop.permute.xlu0 %361
      %363 = vrot.lane.b32.xlu0 %v350, 118
      %v364 = vpop.permute.xlu0 %363
      %365 = vrot.lane.b32.xlu0 %v350, 117
      %v366 = vpop.permute.xlu0 %365
      %v368 = vrot.slane %v354, 4
      %v371 = vrot.slane %v358, 4
      %v374 = vrot.slane %v360, 4
      %v377 = vrot.slane %v364, 4
      %vm379 = vcmask 1043456
      %v380 = vsel %vm379, %v352, %v368
      %v381 = vsel %vm379, %v356, %v371
      %v382 = vsel %vm379, %v350, %v374
      %v383 = vsel %vm379, %v362, %v377
      %v384 = vpack.c.bf16 %v381, %v380
      %v385 = vpack.c.bf16 %v383, %v382
      %v386 = vpack.c.bf16 %v366, %v366
      %388 = vset.pattern.permute.xlu0 0
      %389 = vperm.xlu0 %388, %v349
      %v390 = vpop.permute.xlu0 %389
      %vm392 = vcmask 293888
      %v394 = vsel %vm392, %v348, 0
      %vm396 = vcmask 1041408
      %v398 = vsel %vm396, %v386, 0
      %400 = vmatprep.subr.bf16.mxu0 0
      %401 = vmatpush1.bf16.msra.mxu0 %v384
      %402 = vmatprep.subr.bf16.mxu0 0
      %403 = vmatpush1.bf16.msra.mxu0 %v385
      %404 = vmatprep.subr.bf16.mxu0 0
      %405 = vmatpush1.bf16.msra.mxu0 %v398
      %406 = vmatprep.subr.bf16.mxu0 0
      %407 = vmatpush1.bf16.msra.mxu0 0
      %408 = vmatprep.subr.bf16.mxu0 0
      %409 = vmatpush1.bf16.msra.mxu0 0
      %410 = vmatprep.subr.bf16.mxu0 0
      %411 = vmatpush1.bf16.msra.mxu0 0
      %412 = vmatprep.subr.bf16.mxu0 0
      %413 = vmatpush1.bf16.msra.mxu0 0
      %414 = vmatprep.subr.bf16.mxu0 0
      %415 = vmatpush1.bf16.msra.mxu0 0
      %416 = vmatprep.subr.bf16.mxu0 0
      %417 = vmatpush1.bf16.msra.mxu0 0
      %418 = vmatprep.subr.bf16.mxu0 0
      %419 = vmatpush1.bf16.msra.mxu0 0
      %420 = vmatprep.subr.bf16.mxu0 0
      %421 = vmatpush1.bf16.msra.mxu0 0
      %422 = vmatprep.subr.bf16.mxu0 0
      %423 = vmatpush1.bf16.msra.mxu0 0
      %424 = vmatprep.subr.bf16.mxu0 0
      %425 = vmatpush1.bf16.msra.mxu0 0
      %426 = vmatprep.subr.bf16.mxu0 0
      %427 = vmatpush1.bf16.msra.mxu0 0
      %428 = vmatprep.subr.bf16.mxu0 0
      %429 = vmatpush1.bf16.msra.mxu0 0
      %430 = vmatprep.subr.bf16.mxu0 0
      %431 = vmatpush1.bf16.msra.mxu0 0
      %432 = vmatprep.mubr.bf16.mxu0 0
      %433 = vmatmul.mubr.bf16.gmra.mrb[0].mxu0 %v394
      %v434 = vpop.f32.mrb[0].mxu0
      %v435 = vadd.f32 %v390, %v434
      %v436 = vpop.f32.mrb[0].mxu0
      %v437 = vpop.f32.mrb[0].mxu0
      %v438 = vpop.f32.mrb[0].mxu0
      %439 = vdwg.mxu0
      %v440 = vmax.f32 %v435, 0.0
      %v442 = vlaneseq
      %v443 = vshrl.u32 %v442, 7
      %v444 = vsub.s32 0, %v443
      %v445 = vrot.slane %v346, %v444
      %v447 = vmul.f32 %v440, %v445
      %v448 = vld [vmem:[%s340] sm:$0x3]
      %v449 = vunpack.c.l.bf16 %v448
      %v450 = vxor.u32 %v449, 2147483648
      %v451 = vmul.f32 %v450, 1.442695
      %v452 = vpow.pop %v451
      %v453 = vadd.f32 %v452, 1.0
      %v454 = vrcp.pop %v453
      %v455 = vmul.f32 1.0, %v454
      %v456 = vmul.f32 %v447, %v455
      %v457 = vmul.f32 %v456, 2.0
      %v459 = vcombine.low %v449, %v449
      %v461 = vsel %vm379, %v457, %v459
      %v462 = vld [vmem:[%s4] sm:$0x3]
      %v463 = vld [vmem:[%s5] sm:$0xf]
      %464 = vrot.lane.b32.xlu0 %v461, 11
      %v465 = vpop.permute.xlu0 %464
      %466 = vrot.lane.b32.xlu0 %v461, 10
      %v467 = vpop.permute.xlu0 %466
      %468 = vrot.lane.b32.xlu0 %v461, 9
      %v469 = vpop.permute.xlu0 %468
      %470 = vrot.lane.b32.xlu0 %v461, 1
      %v471 = vpop.permute.xlu0 %470
      %472 = vrot.lane.b32.xlu0 %v461, 127
      %v473 = vpop.permute.xlu0 %472
      %474 = vrot.lane.b32.xlu0 %v461, 119
      %v475 = vpop.permute.xlu0 %474
      %476 = vrot.lane.b32.xlu0 %v461, 118
      %v477 = vpop.permute.xlu0 %476
      %478 = vrot.lane.b32.xlu0 %v461, 117
      %v479 = vpop.permute.xlu0 %478
      %v480 = vpack.c.bf16 %v467, %v465
      %v481 = vpack.c.bf16 %v471, %v469
      %v482 = vpack.c.bf16 %v473, %v461
      %v483 = vpack.c.bf16 %v477, %v475
      %v484 = vpack.c.bf16 %v479, %v479
      %486 = vset.pattern.permute.xlu0 0
      %487 = vperm.xlu0 %486, %v463
      %v488 = vpop.permute.xlu0 %487
      %vm490 = vcmask 588800
      %v492 = vsel %vm490, %v462, 0
      %v495 = vsel %vm379, %v484, 0
      %497 = vmatprep.subr.bf16.mxu0 0
      %498 = vmatpush1.bf16.msra.mxu0 %v480
      %499 = vmatprep.subr.bf16.mxu0 0
      %500 = vmatpush1.bf16.msra.mxu0 %v481
      %501 = vmatprep.subr.bf16.mxu0 0
      %502 = vmatpush1.bf16.msra.mxu0 %v482
      %503 = vmatprep.subr.bf16.mxu0 0
      %504 = vmatpush1.bf16.msra.mxu0 %v483
      %505 = vmatprep.subr.bf16.mxu0 0
      %506 = vmatpush1.bf16.msra.mxu0 %v495
      %507 = vmatprep.subr.bf16.mxu0 0
      %508 = vmatpush1.bf16.msra.mxu0 0
      %509 = vmatprep.subr.bf16.mxu0 0
      %510 = vmatpush1.bf16.msra.mxu0 0
      %511 = vmatprep.subr.bf16.mxu0 0
      %512 = vmatpush1.bf16.msra.mxu0 0
      %513 = vmatprep.subr.bf16.mxu0 0
      %514 = vmatpush1.bf16.msra.mxu0 0
      %515 = vmatprep.subr.bf16.mxu0 0
      %516 = vmatpush1.bf16.msra.mxu0 0
      %517 = vmatprep.subr.bf16.mxu0 0
      %518 = vmatpush1.bf16.msra.mxu0 0
      %519 = vmatprep.subr.bf16.mxu0 0
      %520 = vmatpush1.bf16.msra.mxu0 0
      %521 = vmatprep.subr.bf16.mxu0 0
      %522 = vmatpush1.bf16.msra.mxu0 0
      %523 = vmatprep.subr.bf16.mxu0 0
      %524 = vmatpush1.bf16.msra.mxu0 0
      %525 = vmatprep.subr.bf16.mxu0 0
      %526 = vmatpush1.bf16.msra.mxu0 0
      %527 = vmatprep.subr.bf16.mxu0 0
      %528 = vmatpush1.bf16.msra.mxu0 0
      %529 = vmatprep.mubr.bf16.mxu0 0
      %530 = vmatmul.mubr.bf16.gmra.mrb[0].mxu0 %v492
      %v531 = vpop.f32.mrb[0].mxu0
      %v532 = vadd.f32 %v488, %v531
      %v533 = vpop.f32.mrb[0].mxu0
      %v534 = vpop.f32.mrb[0].mxu0
      %v535 = vpop.f32.mrb[0].mxu0
      %536 = vdwg.mxu0
      %v537 = vmax.f32 %v532, 0.0
      %v538 = vld [vmem:[%s6] sm:$0x3]
      %v539 = vld [vmem:[%s7] sm:$0xf]
      %v540 = vpack.c.bf16 %v537, %v537
      %542 = vset.pattern.permute.xlu0 0
      %543 = vperm.xlu0 %542, %v539
      %v544 = vpop.permute.xlu0 %543
      %vm546 = vcmask 31744
      %v548 = vsel %vm546, %v538, 0
      %v551 = vsel %vm396, %v540, 0
      %553 = vmatprep.subr.bf16.mxu0 0
      %554 = vmatpush1.bf16.msra.mxu0 %v551
      %555 = vmatprep.subr.bf16.mxu0 0
      %556 = vmatpush1.bf16.msra.mxu0 0
      %557 = vmatprep.subr.bf16.mxu0 0
      %558 = vmatpush1.bf16.msra.mxu0 0
      %559 = vmatprep.subr.bf16.mxu0 0
      %560 = vmatpush1.bf16.msra.mxu0 0
      %561 = vmatprep.subr.bf16.mxu0 0
      %562 = vmatpush1.bf16.msra.mxu0 0
      %563 = vmatprep.subr.bf16.mxu0 0
      %564 = vmatpush1.bf16.msra.mxu0 0
      %565 = vmatprep.subr.bf16.mxu0 0
      %566 = vmatpush1.bf16.msra.mxu0 0
      %567 = vmatprep.subr.bf16.mxu0 0
      %568 = vmatpush1.bf16.msra.mxu0 0
      %569 = vmatprep.subr.bf16.mxu0 0
      %570 = vmatpush1.bf16.msra.mxu0 0
      %571 = vmatprep.subr.bf16.mxu0 0
      %572 = vmatpush1.bf16.msra.mxu0 0
      %573 = vmatprep.subr.bf16.mxu0 0
      %574 = vmatpush1.bf16.msra.mxu0 0
      %575 = vmatprep.subr.bf16.mxu0 0
      %576 = vmatpush1.bf16.msra.mxu0 0
      %577 = vmatprep.subr.bf16.mxu0 0
      %578 = vmatpush1.bf16.msra.mxu0 0
      %579 = vmatprep.subr.bf16.mxu0 0
      %580 = vmatpush1.bf16.msra.mxu0 0
      %581 = vmatprep.subr.bf16.mxu0 0
      %582 = vmatpush1.bf16.msra.mxu0 0
      %583 = vmatprep.subr.bf16.mxu0 0
      %584 = vmatpush1.bf16.msra.mxu0 0
      %585 = vmatprep.mubr.bf16.mxu0 0
      %586 = vmatmul.mubr.bf16.gmra.mrb[0].mxu0 %v548
      %v587 = vpop.f32.mrb[0].mxu0
      %v588 = vadd.f32 %v544, %v587
      %v589 = vpop.f32.mrb[0].mxu0
      %v590 = vpop.f32.mrb[0].mxu0
      %v591 = vpop.f32.mrb[0].mxu0
      %592 = vdwg.mxu0
      %v593 = vmax.f32 %v588, 0.0
      %v594 = vmul.f32 %v593, %v445
      %v595 = vpack.c.bf16 %v594, %v594
      %596 = vst [vmem:[%s344] sm:$0x3] %v595
      %p597 = scmp.lt.s32.totalorder %s20, 1
      %s598 = scalar_select %p597, %s20, 1
      %s599 = smul.addr %s598, 2
      %s600 = scalar_lea.vmem %s9, %s599
      // Predicated region
      $region57: #{_lambda_.8} parent=55 // pred_check
        %p601 = pneg %p237
      $region58: #{_lambda_.8} parent=55 // pred_check_branch
        %603 = sbr.rel (%p601) target = $region60
      $region59: #{_lambda_.8} parent=55 // pred_region
        _
      $region60: #{_lambda_.8} parent=55 // pred_fallthru
        _
    $region56: #{_lambda_.8} parent=5 // pred_fallthru
      _
    %p604 = scmp.le.s32.totalorder 2, %s15
    // Predicated region
    $region61: #{_lambda_.8} parent=5 // pred_check
      %p605 = pneg %p604
    $region62: #{_lambda_.8} parent=5 // pred_check_branch
      %607 = sbr.rel (%p605) target = $region64
    $region63: #{_lambda_.8} parent=5 // pred_region
      %s608 = ssub.s32 %s15, 2
      // Predicated region
      $region65: #{_lambda_.8} parent=63 // pred_check
        %p609 = pneg %p243
      $region66: #{_lambda_.8} parent=63 // pred_check_branch
        %611 = sbr.rel (%p609) target = $region68
      $region67: #{_lambda_.8} parent=63 // pred_region
        %p612 = scmp.lt.s32.totalorder %s21, 1
        %s613 = scalar_select %p612, %s21, 1
        %s614 = smul.addr %s613, 2
        %s615 = scalar_lea.vmem %s9, %s614
      $region68: #{_lambda_.8} parent=63 // pred_fallthru
        _
    $region64: #{_lambda_.8} parent=5 // pred_fallthru
      _
  $region6: #{_lambda_.8} parent=0 // loop_footer
    %s19 = sadd.s32 1, %s15
  $region7: #{_lambda_.8} parent=0 // loop_footer_branch
    %14 = sbr.rel target = $region3
  $region8: #{_lambda_.8} parent=0 // loop_exit
    _

// kernel: _lambda_.6
$region0: #{_lambda_.6}
  #allocation0 [shape = 'u32[]', space=smem, size = 0x4, offset = 0x4, fixed_abs, tag = 'smem constant byte address 0x4 - core index']
  #allocation1 [shape = 'u32[144,128]{1,0:T(1,128)}', space=vmem, size = 0x12000, scoped, tag = 'internal scratch']
  %s0 = inlined_call_operand.vmem [shape: bf16[4,256], index: 0, kind: input, shape index: {}]
  %s1 = inlined_call_operand.vmem [shape: bf16[4,36], index: 1, kind: input, shape index: {}]
  %s2 = inlined_call_operand.vmem [shape: f32[4,1], index: 2, kind: input, shape index: {}]
  %s3 = inlined_call_operand.vmem [shape: bf16[128,128], index: 3, kind: input, shape index: {}]
  %s4 = inlined_call_operand.vmem [shape: bf16[4,36], index: 4, kind: input, shape index: {}]
  %s5 = inlined_call_operand.vmem [shape: f32[4,1], index: 5, kind: input, shape index: {}]
  %s6 = inlined_call_operand.vmem [shape: bf16[4,4], index: 6, kind: input, shape index: {}]
  %s7 = inlined_call_operand.vmem [shape: f32[4,1], index: 7, kind: input, shape index: {}]
  %s8 = inlined_call_operand.vmem [shape: f32[1,128], index: 8, kind: input, shape index: {}]
  %s9 = inlined_call_operand.vmem [shape: bf16[8,256], index: 9, kind: output, shape index: {}]
  %s10 = sld [smem:[#allocation0]]
  $region69: #{_lambda_.6} parent=0
    _
  %s12 = ssub.s32 1, %s10
  %s13 = scalar_select 0, %s12, %s10
  loop: start=0, step=1, limit=4
  $region2: #{_lambda_.6} parent=0 // loop_pre_header
    _
  $region3: #{_lambda_.6} parent=0 // loop_header
    %s15 = sphi 0, %s19
    %p16 = scmp.ge.s32.totalorder %s15, 4
    %s25 = sphi 0, %s27
    %s28 = sphi 0, %s25
    %s29 = sphi 0, %s28
    %s45 = sphi 0, %s29
    %s49 = sphi 0, %s49
    %s51 = sphi 0, %s49
    %s52 = sphi 0, %s51
    %s66 = sphi 0, %s52
    %s70 = sphi 0, %s70
    %s72 = sphi 0, %s70
    %s73 = sphi 0, %s72
    %s87 = sphi 0, %s73
    %s91 = sphi 0, %s91
    %s93 = sphi 0, %s91
    %s94 = sphi 0, %s93
    %s108 = sphi 0, %s94
    %s112 = sphi 0, %s112
    %s114 = sphi 0, %s112
    %s115 = sphi 0, %s114
    %s129 = sphi 0, %s115
    %s133 = sphi 0, %s133
    %s135 = sphi 0, %s133
    %s136 = sphi 0, %s135
    %s150 = sphi 0, %s136
    %s154 = sphi 0, %s154
    %s156 = sphi 0, %s154
    %s157 = sphi 0, %s156
    %s171 = sphi 0, %s157
    %s175 = sphi 0, %s175
    %s177 = sphi 0, %s175
    %s178 = sphi 0, %s177
    %s192 = sphi 0, %s178
    %s196 = sphi 0, %s196
    %s198 = sphi 0, %s196
    %s199 = sphi 0, %s198
    %s213 = sphi 0, %s199
    %s219 = sphi 0, %s221
    %s222 = sphi 0, %s219
    %s223 = sphi 0, %s222
    %s239 = sphi 0, %s223
  $region4: #{_lambda_.6} parent=0 // loop_header_branch
    %18 = sbr.rel (%p16) target = $region8
  $region5: #{_lambda_.6} parent=0 // loop_body
    %s20 = ssub.s32 %s15, 1
    %s21 = ssub.s32 %s15, 2
    %s22 = sadd.s32 %s15, 1
    %s23 = ssub.s32 %s15, %s22
    %p24 = scmp.eq.s32.totalorder %s23, 0
    %s26 = sadd.s32 %s25, 1
    %s27 = scalar_select %p24, %s25, %s26
    %p30 = pneg %p24
    %p31 = scmp.eq.s32.totalorder %s15, 1
    %p32 = por %p30, %p31
    %p33 = scmp.ne.s32.totalorder %s25, %s28
    %p34 = scmp.eq.s32.totalorder %s15, 0
    %p35 = por %p33, %p34
    %p36 = scmp.ne.s32.totalorder %s25, %s28
    %p37 = scmp.eq.s32.totalorder %s20, 1
    %p38 = por %p36, %p37
    %p39 = scmp.ne.s32.totalorder %s28, %s29
    %p40 = scmp.eq.s32.totalorder %s20, 0
    %p41 = por %p39, %p40
    %p42 = scmp.ne.s32.totalorder %s28, %s29
    %p43 = scmp.eq.s32.totalorder %s21, 1
    %p44 = por %p42, %p43
    %p46 = scmp.ne.s32.totalorder %s29, %s45
    %p47 = scmp.eq.s32.totalorder %s21, 0
    %p48 = por %p46, %p47
    %s50 = sadd.s32 %s49, 1
    %p53 = scmp.eq.s32.totalorder %s15, 1
    %p54 = scmp.ne.s32.totalorder %s49, %s51
    %p55 = scmp.eq.s32.totalorder %s15, 0
    %p56 = por %p54, %p55
    %p57 = scmp.ne.s32.totalorder %s49, %s51
    %p58 = scmp.eq.s32.totalorder %s20, 1
    %p59 = por %p57, %p58
    %p60 = scmp.ne.s32.totalorder %s51, %s52
    %p61 = scmp.eq.s32.totalorder %s20, 0
    %p62 = por %p60, %p61
    %p63 = scmp.ne.s32.totalorder %s51, %s52
    %p64 = scmp.eq.s32.totalorder %s21, 1
    %p65 = por %p63, %p64
    %p67 = scmp.ne.s32.totalorder %s52, %s66
    %p68 = scmp.eq.s32.totalorder %s21, 0
    %p69 = por %p67, %p68
    %s71 = sadd.s32 %s70, 1
    %p74 = scmp.eq.s32.totalorder %s15, 1
    %p75 = scmp.ne.s32.totalorder %s70, %s72
    %p76 = scmp.eq.s32.totalorder %s15, 0
    %p77 = por %p75, %p76
    %p78 = scmp.ne.s32.totalorder %s70, %s72
    %p79 = scmp.eq.s32.totalorder %s20, 1
    %p80 = por %p78, %p79
    %p81 = scmp.ne.s32.totalorder %s72, %s73
    %p82 = scmp.eq.s32.totalorder %s20, 0
    %p83 = por %p81, %p82
    %p84 = scmp.ne.s32.totalorder %s72, %s73
    %p85 = scmp.eq.s32.totalorder %s21, 1
    %p86 = por %p84, %p85
    %p88 = scmp.ne.s32.totalorder %s73, %s87
    %p89 = scmp.eq.s32.totalorder %s21, 0
    %p90 = por %p88, %p89
    %s92 = sadd.s32 %s91, 1
    %p95 = scmp.eq.s32.totalorder %s15, 1
    %p96 = scmp.ne.s32.totalorder %s91, %s93
    %p97 = scmp.eq.s32.totalorder %s15, 0
    %p98 = por %p96, %p97
    %p99 = scmp.ne.s32.totalorder %s91, %s93
    %p100 = scmp.eq.s32.totalorder %s20, 1
    %p101 = por %p99, %p100
    %p102 = scmp.ne.s32.totalorder %s93, %s94
    %p103 = scmp.eq.s32.totalorder %s20, 0
    %p104 = por %p102, %p103
    %p105 = scmp.ne.s32.totalorder %s93, %s94
    %p106 = scmp.eq.s32.totalorder %s21, 1
    %p107 = por %p105, %p106
    %p109 = scmp.ne.s32.totalorder %s94, %s108
    %p110 = scmp.eq.s32.totalorder %s21, 0
    %p111 = por %p109, %p110
    %s113 = sadd.s32 %s112, 1
    %p116 = scmp.eq.s32.totalorder %s15, 1
    %p117 = scmp.ne.s32.totalorder %s112, %s114
    %p118 = scmp.eq.s32.totalorder %s15, 0
    %p119 = por %p117, %p118
    %p120 = scmp.ne.s32.totalorder %s112, %s114
    %p121 = scmp.eq.s32.totalorder %s20, 1
    %p122 = por %p120, %p121
    %p123 = scmp.ne.s32.totalorder %s114, %s115
    %p124 = scmp.eq.s32.totalorder %s20, 0
    %p125 = por %p123, %p124
    %p126 = scmp.ne.s32.totalorder %s114, %s115
    %p127 = scmp.eq.s32.totalorder %s21, 1
    %p128 = por %p126, %p127
    %p130 = scmp.ne.s32.totalorder %s115, %s129
    %p131 = scmp.eq.s32.totalorder %s21, 0
    %p132 = por %p130, %p131
    %s134 = sadd.s32 %s133, 1
    %p137 = scmp.eq.s32.totalorder %s15, 1
    %p138 = scmp.ne.s32.totalorder %s133, %s135
    %p139 = scmp.eq.s32.totalorder %s15, 0
    %p140 = por %p138, %p139
    %p141 = scmp.ne.s32.totalorder %s133, %s135
    %p142 = scmp.eq.s32.totalorder %s20, 1
    %p143 = por %p141, %p142
    %p144 = scmp.ne.s32.totalorder %s135, %s136
    %p145 = scmp.eq.s32.totalorder %s20, 0
    %p146 = por %p144, %p145
    %p147 = scmp.ne.s32.totalorder %s135, %s136
    %p148 = scmp.eq.s32.totalorder %s21, 1
    %p149 = por %p147, %p148
    %p151 = scmp.ne.s32.totalorder %s136, %s150
    %p152 = scmp.eq.s32.totalorder %s21, 0
    %p153 = por %p151, %p152
    %s155 = sadd.s32 %s154, 1
    %p158 = scmp.eq.s32.totalorder %s15, 1
    %p159 = scmp.ne.s32.totalorder %s154, %s156
    %p160 = scmp.eq.s32.totalorder %s15, 0
    %p161 = por %p159, %p160
    %p162 = scmp.ne.s32.totalorder %s154, %s156
    %p163 = scmp.eq.s32.totalorder %s20, 1
    %p164 = por %p162, %p163
    %p165 = scmp.ne.s32.totalorder %s156, %s157
    %p166 = scmp.eq.s32.totalorder %s20, 0
    %p167 = por %p165, %p166
    %p168 = scmp.ne.s32.totalorder %s156, %s157
    %p169 = scmp.eq.s32.totalorder %s21, 1
    %p170 = por %p168, %p169
    %p172 = scmp.ne.s32.totalorder %s157, %s171
    %p173 = scmp.eq.s32.totalorder %s21, 0
    %p174 = por %p172, %p173
    %s176 = sadd.s32 %s175, 1
    %p179 = scmp.eq.s32.totalorder %s15, 1
    %p180 = scmp.ne.s32.totalorder %s175, %s177
    %p181 = scmp.eq.s32.totalorder %s15, 0
    %p182 = por %p180, %p181
    %p183 = scmp.ne.s32.totalorder %s175, %s177
    %p184 = scmp.eq.s32.totalorder %s20, 1
    %p185 = por %p183, %p184
    %p186 = scmp.ne.s32.totalorder %s177, %s178
    %p187 = scmp.eq.s32.totalorder %s20, 0
    %p188 = por %p186, %p187
    %p189 = scmp.ne.s32.totalorder %s177, %s178
    %p190 = scmp.eq.s32.totalorder %s21, 1
    %p191 = por %p189, %p190
    %p193 = scmp.ne.s32.totalorder %s178, %s192
    %p194 = scmp.eq.s32.totalorder %s21, 0
    %p195 = por %p193, %p194
    %s197 = sadd.s32 %s196, 1
    %p200 = scmp.eq.s32.totalorder %s15, 1
    %p201 = scmp.ne.s32.totalorder %s196, %s198
    %p202 = scmp.eq.s32.totalorder %s15, 0
    %p203 = por %p201, %p202
    %p204 = scmp.ne.s32.totalorder %s196, %s198
    %p205 = scmp.eq.s32.totalorder %s20, 1
    %p206 = por %p204, %p205
    %p207 = scmp.ne.s32.totalorder %s198, %s199
    %p208 = scmp.eq.s32.totalorder %s20, 0
    %p209 = por %p207, %p208
    %p210 = scmp.ne.s32.totalorder %s198, %s199
    %p211 = scmp.eq.s32.totalorder %s21, 1
    %p212 = por %p210, %p211
    %p214 = scmp.ne.s32.totalorder %s199, %s213
    %p215 = scmp.eq.s32.totalorder %s21, 0
    %p216 = por %p214, %p215
    %s217 = ssub.s32 %s15, %s22
    %p218 = scmp.eq.s32.totalorder %s217, 0
    %s220 = sadd.s32 %s219, 1
    %s221 = scalar_select %p218, %s219, %s220
    %p224 = pneg %p218
    %p225 = scmp.eq.s32.totalorder %s15, 1
    %p226 = por %p224, %p225
    %p227 = scmp.ne.s32.totalorder %s219, %s222
    %p228 = scmp.eq.s32.totalorder %s15, 0
    %p229 = por %p227, %p228
    %p230 = scmp.ne.s32.totalorder %s219, %s222
    %p231 = scmp.eq.s32.totalorder %s20, 1
    %p232 = por %p230, %p231
    %p233 = scmp.ne.s32.totalorder %s222, %s223
    %p234 = scmp.eq.s32.totalorder %s20, 0
    %p235 = por %p233, %p234
    %p236 = scmp.ne.s32.totalorder %s222, %s223
    %p237 = scmp.eq.s32.totalorder %s21, 1
    %p238 = por %p236, %p237
    %p240 = scmp.ne.s32.totalorder %s223, %s239
    %p241 = scmp.eq.s32.totalorder %s21, 0
    %p242 = por %p240, %p241
    %p243 = scmp.le.s32.totalorder 1, %s15
    %p244 = scmp.lt.s32.totalorder %s15, 3
    %p245 = pnand %p243, %p244
    %p246 = pneg %p245
    // Predicated region
    $region9: #{_lambda_.6} parent=5 // pred_check
      _
    $region10: #{_lambda_.6} parent=5 // pred_check_branch
      %248 = sbr.rel (%p245) target = $region12
    $region11: #{_lambda_.6} parent=5 // pred_region
      %s249 = ssub.s32 %s15, 1
      // Predicated region
      $region13: #{_lambda_.6} parent=11 // pred_check
        %p250 = pneg %p62
      $region14: #{_lambda_.6} parent=11 // pred_check_branch
        %252 = sbr.rel (%p250) target = $region16
      $region15: #{_lambda_.6} parent=11 // pred_region
        _
      $region16: #{_lambda_.6} parent=11 // pred_fallthru
        _
      // Predicated region
      $region17: #{_lambda_.6} parent=11 // pred_check
        %p253 = pneg %p83
      $region18: #{_lambda_.6} parent=11 // pred_check_branch
        %255 = sbr.rel (%p253) target = $region20
      $region19: #{_lambda_.6} parent=11 // pred_region
        _
      $region20: #{_lambda_.6} parent=11 // pred_fallthru
        _
      // Predicated region
      $region21: #{_lambda_.6} parent=11 // pred_check
        %p256 = pneg %p104
      $region22: #{_lambda_.6} parent=11 // pred_check_branch
        %258 = sbr.rel (%p256) target = $region24
      $region23: #{_lambda_.6} parent=11 // pred_region
        _
      $region24: #{_lambda_.6} parent=11 // pred_fallthru
        _
      // Predicated region
      $region25: #{_lambda_.6} parent=11 // pred_check
        %p259 = pneg %p125
      $region26: #{_lambda_.6} parent=11 // pred_check_branch
        %261 = sbr.rel (%p259) target = $region28
      $region27: #{_lambda_.6} parent=11 // pred_region
        _
      $region28: #{_lambda_.6} parent=11 // pred_fallthru
        _
      // Predicated region
      $region29: #{_lambda_.6} parent=11 // pred_check
        %p262 = pneg %p146
      $region30: #{_lambda_.6} parent=11 // pred_check_branch
        %264 = sbr.rel (%p262) target = $region32
      $region31: #{_lambda_.6} parent=11 // pred_region
        _
      $region32: #{_lambda_.6} parent=11 // pred_fallthru
        _
      // Predicated region
      $region33: #{_lambda_.6} parent=11 // pred_check
        %p265 = pneg %p167
      $region34: #{_lambda_.6} parent=11 // pred_check_branch
        %267 = sbr.rel (%p265) target = $region36
      $region35: #{_lambda_.6} parent=11 // pred_region
        _
      $region36: #{_lambda_.6} parent=11 // pred_fallthru
        _
      // Predicated region
      $region37: #{_lambda_.6} parent=11 // pred_check
        %p268 = pneg %p188
      $region38: #{_lambda_.6} parent=11 // pred_check_branch
        %270 = sbr.rel (%p268) target = $region40
      $region39: #{_lambda_.6} parent=11 // pred_region
        _
      $region40: #{_lambda_.6} parent=11 // pred_fallthru
        _
      // Predicated region
      $region41: #{_lambda_.6} parent=11 // pred_check
        %p271 = pneg %p209
      $region42: #{_lambda_.6} parent=11 // pred_check_branch
        %273 = sbr.rel (%p271) target = $region44
      $region43: #{_lambda_.6} parent=11 // pred_region
        _
      $region44: #{_lambda_.6} parent=11 // pred_fallthru
        _
    $region12: #{_lambda_.6} parent=5 // pred_fallthru
      _
    %p274 = scmp.lt.s32.totalorder %s15, 2
    // Predicated region
    $region45: #{_lambda_.6} parent=5 // pred_check
      %p275 = pneg %p274
    $region46: #{_lambda_.6} parent=5 // pred_check_branch
      %277 = sbr.rel (%p275) target = $region48
    $region47: #{_lambda_.6} parent=5 // pred_region
      // Predicated region
      $region49: #{_lambda_.6} parent=47 // pred_check
        %p278 = pneg %p35
      $region50: #{_lambda_.6} parent=47 // pred_check_branch
        %280 = sbr.rel (%p278) target = $region52
      $region51: #{_lambda_.6} parent=47 // pred_region
        %p281 = scmp.lt.s32.totalorder %s15, 1
        %s282 = scalar_select %p281, %s15, 1
        %s283 = smul.addr %s282, 2
        %s284 = scalar_lea.vmem %s0, %s283
      $region52: #{_lambda_.6} parent=47 // pred_fallthru
        _
    $region48: #{_lambda_.6} parent=5 // pred_fallthru
      _
    %p285 = scmp.le.s32.totalorder 1, %s15
    %p286 = scmp.lt.s32.totalorder %s15, 3
    %p287 = pnand %p285, %p286
    %p288 = pneg %p287
    // Predicated region
    $region53: #{_lambda_.6} parent=5 // pred_check
      _
    $region54: #{_lambda_.6} parent=5 // pred_check_branch
      %290 = sbr.rel (%p287) target = $region56
    $region55: #{_lambda_.6} parent=5 // pred_region
      %s291 = ssub.s32 %s15, 1
      %p292 = scmp.lt.s32.totalorder %s20, 1
      %s293 = scalar_select %p292, %s20, 1
      %s294 = smul.addr %s293, 2
      %s295 = scalar_lea.vmem %s0, %s294
      %p296 = pneg %p41
      %p297 = pneg %p38
      %p298 = pneg %p62
      %p299 = pneg %p59
      %p300 = pneg %p83
      %p301 = pneg %p80
      %p302 = pneg %p104
      %p303 = pneg %p101
      %p304 = pneg %p125
      %p305 = pneg %p122
      %p306 = pneg %p146
      %p307 = pneg %p143
      %p308 = pneg %p167
      %p309 = pneg %p164
      %p310 = pneg %p188
      %p311 = pneg %p185
      %p312 = pneg %p209
      %p313 = pneg %p206
      %p314 = pneg %p235
      %p315 = pneg %p232
      %p316 = scmp.lt.s32.totalorder %s20, 1
      %s317 = scalar_select %p316, %s20, 1
      %s318 = smul.addr %s317, 4
      %s319 = scalar_lea.vmem %s9, %s318
      %p320 = scmp.lt.s32.totalorder %s20, 1
      %s321 = scalar_select %p320, %s20, 1
      %s322 = smul.addr %s321, 2
      %s323 = scalar_lea.vmem %s0, %s322
      %p324 = scmp.lt.s32.totalorder %s20, 1
      %s325 = scalar_select %p324, %s20, 1
      %s326 = smul.addr %s325, 4
      %s327 = scalar_lea.vmem %s9, %s326
      %v329 = vld [vmem:[%s323] sm:$0x3]
      %v330 = vld [vmem:[%s1] sm:$0x3]
      %v331 = vld [vmem:[%s2] sm:$0xf]
      %v332 = vunpack.c.l.bf16 %v329
      %333 = vrot.lane.b32.xlu0 %v332, 11
      %v334 = vpop.permute.xlu0 %333
      %335 = vrot.lane.b32.xlu0 %v332, 10
      %v336 = vpop.permute.xlu0 %335
      %337 = vrot.lane.b32.xlu0 %v332, 9
      %v338 = vpop.permute.xlu0 %337
      %339 = vrot.lane.b32.xlu0 %v332, 1
      %v340 = vpop.permute.xlu0 %339
      %341 = vrot.lane.b32.xlu0 %v332, 127
      %v342 = vpop.permute.xlu0 %341
      %343 = vrot.lane.b32.xlu0 %v332, 119
      %v344 = vpop.permute.xlu0 %343
      %345 = vrot.lane.b32.xlu0 %v332, 118
      %v346 = vpop.permute.xlu0 %345
      %347 = vrot.lane.b32.xlu0 %v332, 117
      %v348 = vpop.permute.xlu0 %347
      %v350 = vrot.slane %v336, 4
      %v353 = vrot.slane %v340, 4
      %v356 = vrot.slane %v342, 4
      %v359 = vrot.slane %v346, 4
      %vm361 = vcmask 1043456
      %v362 = vsel %vm361, %v334, %v350
      %v363 = vsel %vm361, %v338, %v353
      %v364 = vsel %vm361, %v332, %v356
      %v365 = vsel %vm361, %v344, %v359
      %v366 = vpack.c.bf16 %v363, %v362
      %v367 = vpack.c.bf16 %v365, %v364
      %v368 = vpack.c.bf16 %v348, %v348
      %370 = vset.pattern.permute.xlu0 0
      %371 = vperm.xlu0 %370, %v331
      %v372 = vpop.permute.xlu0 %371
      %vm374 = vcmask 293888
      %v376 = vsel %vm374, %v330, 0
      %vm378 = vcmask 1041408
      %v380 = vsel %vm378, %v368, 0
      %382 = vmatprep.subr.bf16.mxu0 0
      %383 = vmatpush1.bf16.msra.mxu0 %v366
      %384 = vmatprep.subr.bf16.mxu0 0
      %385 = vmatpush1.bf16.msra.mxu0 %v367
      %386 = vmatprep.subr.bf16.mxu0 0
      %387 = vmatpush1.bf16.msra.mxu0 %v380
      %388 = vmatprep.subr.bf16.mxu0 0
      %389 = vmatpush1.bf16.msra.mxu0 0
      %390 = vmatprep.subr.bf16.mxu0 0
      %391 = vmatpush1.bf16.msra.mxu0 0
      %392 = vmatprep.subr.bf16.mxu0 0
      %393 = vmatpush1.bf16.msra.mxu0 0
      %394 = vmatprep.subr.bf16.mxu0 0
      %395 = vmatpush1.bf16.msra.mxu0 0
      %396 = vmatprep.subr.bf16.mxu0 0
      %397 = vmatpush1.bf16.msra.mxu0 0
      %398 = vmatprep.subr.bf16.mxu0 0
      %399 = vmatpush1.bf16.msra.mxu0 0
      %400 = vmatprep.subr.bf16.mxu0 0
      %401 = vmatpush1.bf16.msra.mxu0 0
      %402 = vmatprep.subr.bf16.mxu0 0
      %403 = vmatpush1.bf16.msra.mxu0 0
      %404 = vmatprep.subr.bf16.mxu0 0
      %405 = vmatpush1.bf16.msra.mxu0 0
      %406 = vmatprep.subr.bf16.mxu0 0
      %407 = vmatpush1.bf16.msra.mxu0 0
      %408 = vmatprep.subr.bf16.mxu0 0
      %409 = vmatpush1.bf16.msra.mxu0 0
      %410 = vmatprep.subr.bf16.mxu0 0
      %411 = vmatpush1.bf16.msra.mxu0 0
      %412 = vmatprep.subr.bf16.mxu0 0
      %413 = vmatpush1.bf16.msra.mxu0 0
      %414 = vmatprep.mubr.bf16.mxu0 0
      %415 = vmatmul.mubr.bf16.gmra.mrb[0].mxu0 %v376
      %v416 = vpop.f32.mrb[0].mxu0
      %v417 = vadd.f32 %v372, %v416
      %v418 = vpop.f32.mrb[0].mxu0
      %v419 = vpop.f32.mrb[0].mxu0
      %v420 = vpop.f32.mrb[0].mxu0
      %421 = vdwg.mxu0
      %v422 = vpack.c.bf16 %v417, %v417
      %v423 = vld [vmem:[%s3] sm:$0xf]
      %v424 = vld [vmem:[%s3 + $0x4] sm:$0xf]
      %v425 = vld [vmem:[%s3 + $0x8] sm:$0xf]
      %v426 = vld [vmem:[%s3 + $0xc] sm:$0xf]
      %v427 = vld [vmem:[%s3 + $0x10] sm:$0xf]
      %v428 = vld [vmem:[%s3 + $0x14] sm:$0xf]
      %v429 = vld [vmem:[%s3 + $0x18] sm:$0xf]
      %v430 = vld [vmem:[%s3 + $0x1c] sm:$0xf]
      %v431 = vld [vmem:[%s3 + $0x20] sm:$0xf]
      %v432 = vld [vmem:[%s3 + $0x24] sm:$0xf]
      %v433 = vld [vmem:[%s3 + $0x28] sm:$0xf]
      %v434 = vld [vmem:[%s3 + $0x2c] sm:$0xf]
      %v435 = vld [vmem:[%s3 + $0x30] sm:$0xf]
      %v436 = vld [vmem:[%s3 + $0x34] sm:$0xf]
      %v437 = vld [vmem:[%s3 + $0x38] sm:$0xf]
      %v438 = vld [vmem:[%s3 + $0x3c] sm:$0xf]
      %v455 = vunpack.c.l.b16 %v423
      %v456 = vunpack.c.l.b16 %v424
      %v457 = vunpack.c.l.b16 %v425
      %v458 = vunpack.c.l.b16 %v426
      %v459 = vunpack.c.l.b16 %v427
      %v460 = vunpack.c.l.b16 %v428
      %v461 = vunpack.c.l.b16 %v429
      %v462 = vunpack.c.l.b16 %v430
      %v463 = vunpack.c.l.b16 %v431
      %v464 = vunpack.c.l.b16 %v432
      %v465 = vunpack.c.l.b16 %v433
      %v466 = vunpack.c.l.b16 %v434
      %v467 = vunpack.c.l.b16 %v435
      %v468 = vunpack.c.l.b16 %v436
      %v469 = vunpack.c.l.b16 %v437
      %v470 = vunpack.c.l.b16 %v438
      %v471 = vpack.c.b16 %v456, %v455
      %v472 = vpack.c.b16 %v458, %v457
      %v473 = vpack.c.b16 %v460, %v459
      %v474 = vpack.c.b16 %v462, %v461
      %v475 = vpack.c.b16 %v464, %v463
      %v476 = vpack.c.b16 %v466, %v465
      %v477 = vpack.c.b16 %v468, %v467
      %v478 = vpack.c.b16 %v470, %v469
      %487 = vmatprep.subr.bf16.mxu0 0
      %488 = vmatpush1.bf16.msra.mxu0 %v471
      %489 = vmatprep.subr.bf16.mxu0 0
      %490 = vmatpush1.bf16.msra.mxu0 %v472
      %491 = vmatprep.subr.bf16.mxu0 0
      %492 = vmatpush1.bf16.msra.mxu0 %v473
      %493 = vmatprep.subr.bf16.mxu0 0
      %494 = vmatpush1.bf16.msra.mxu0 %v474
      %495 = vmatprep.subr.bf16.mxu0 0
      %496 = vmatpush1.bf16.msra.mxu0 %v475
      %497 = vmatprep.subr.bf16.mxu0 0
      %498 = vmatpush1.bf16.msra.mxu0 %v476
      %499 = vmatprep.subr.bf16.mxu0 0
      %500 = vmatpush1.bf16.msra.mxu0 %v477
      %501 = vmatprep.subr.bf16.mxu0 0
      %502 = vmatpush1.bf16.msra.mxu0 %v478
      %503 = vmatprep.subr.bf16.mxu0 0
      %504 = vmatpush1.bf16.msra.mxu0 0
      %505 = vmatprep.subr.bf16.mxu0 0
      %506 = vmatpush1.bf16.msra.mxu0 0
      %507 = vmatprep.subr.bf16.mxu0 0
      %508 = vmatpush1.bf16.msra.mxu0 0
      %509 = vmatprep.subr.bf16.mxu0 0
      %510 = vmatpush1.bf16.msra.mxu0 0
      %511 = vmatprep.subr.bf16.mxu0 0
      %512 = vmatpush1.bf16.msra.mxu0 0
      %513 = vmatprep.subr.bf16.mxu0 0
      %514 = vmatpush1.bf16.msra.mxu0 0
      %515 = vmatprep.subr.bf16.mxu0 0
      %516 = vmatpush1.bf16.msra.mxu0 0
      %517 = vmatprep.subr.bf16.mxu0 0
      %518 = vmatpush1.bf16.msra.mxu0 0
      %519 = vmatprep.mubr.bf16.mxu0 0
      %520 = vmatmul.mubr.bf16.gmra.mrb[0].mxu0 %v422
      %v521 = vpop.f32.mrb[0].mxu0
      %v522 = vadd.f32 0.0, %v521
      %v523 = vpop.f32.mrb[0].mxu0
      %v524 = vpop.f32.mrb[0].mxu0
      %v525 = vpop.f32.mrb[0].mxu0
      %526 = vdwg.mxu0
      %v527 = vld [vmem:[%s4] sm:$0x3]
      %v528 = vld [vmem:[%s5] sm:$0xf]
      %529 = vrot.lane.b32.xlu0 %v522, 7
      %v530 = vpop.permute.xlu0 %529
      %531 = vrot.lane.b32.xlu0 %v522, 6
      %v532 = vpop.permute.xlu0 %531
      %533 = vrot.lane.b32.xlu0 %v522, 5
      %v534 = vpop.permute.xlu0 %533
      %535 = vrot.lane.b32.xlu0 %v522, 1
      %v536 = vpop.permute.xlu0 %535
      %537 = vrot.lane.b32.xlu0 %v522, 127
      %v538 = vpop.permute.xlu0 %537
      %539 = vrot.lane.b32.xlu0 %v522, 123
      %v540 = vpop.permute.xlu0 %539
      %541 = vrot.lane.b32.xlu0 %v522, 122
      %v542 = vpop.permute.xlu0 %541
      %543 = vrot.lane.b32.xlu0 %v522, 121
      %v544 = vpop.permute.xlu0 %543
      %v546 = vrot.slane %v532, 4
      %v549 = vrot.slane %v536, 4
      %v552 = vrot.slane %v538, 4
      %v555 = vrot.slane %v542, 4
      %v557 = vsel %vm361, %v530, %v546
      %v558 = vsel %vm361, %v534, %v549
      %v559 = vsel %vm361, %v522, %v552
      %v560 = vsel %vm361, %v540, %v555
      %v561 = vpack.c.bf16 %v558, %v557
      %v562 = vpack.c.bf16 %v560, %v559
      %v563 = vpack.c.bf16 %v544, %v544
      %565 = vset.pattern.permute.xlu0 0
      %566 = vperm.xlu0 %565, %v528
      %v567 = vpop.permute.xlu0 %566
      %v570 = vsel %vm374, %v527, 0
      %v573 = vsel %vm378, %v563, 0
      %575 = vmatprep.subr.bf16.mxu0 0
      %576 = vmatpush1.bf16.msra.mxu0 %v561
      %577 = vmatprep.subr.bf16.mxu0 0
      %578 = vmatpush1.bf16.msra.mxu0 %v562
      %579 = vmatprep.subr.bf16.mxu0 0
      %580 = vmatpush1.bf16.msra.mxu0 %v573
      %581 = vmatprep.subr.bf16.mxu0 0
      %582 = vmatpush1.bf16.msra.mxu0 0
      %583 = vmatprep.subr.bf16.mxu0 0
      %584 = vmatpush1.bf16.msra.mxu0 0
      %585 = vmatprep.subr.bf16.mxu0 0
      %586 = vmatpush1.bf16.msra.mxu0 0
      %587 = vmatprep.subr.bf16.mxu0 0
      %588 = vmatpush1.bf16.msra.mxu0 0
      %589 = vmatprep.subr.bf16.mxu0 0
      %590 = vmatpush1.bf16.msra.mxu0 0
      %591 = vmatprep.subr.bf16.mxu0 0
      %592 = vmatpush1.bf16.msra.mxu0 0
      %593 = vmatprep.subr.bf16.mxu0 0
      %594 = vmatpush1.bf16.msra.mxu0 0
      %595 = vmatprep.subr.bf16.mxu0 0
      %596 = vmatpush1.bf16.msra.mxu0 0
      %597 = vmatprep.subr.bf16.mxu0 0
      %598 = vmatpush1.bf16.msra.mxu0 0
      %599 = vmatprep.subr.bf16.mxu0 0
      %600 = vmatpush1.bf16.msra.mxu0 0
      %601 = vmatprep.subr.bf16.mxu0 0
      %602 = vmatpush1.bf16.msra.mxu0 0
      %603 = vmatprep.subr.bf16.mxu0 0
      %604 = vmatpush1.bf16.msra.mxu0 0
      %605 = vmatprep.subr.bf16.mxu0 0
      %606 = vmatpush1.bf16.msra.mxu0 0
      %607 = vmatprep.mubr.bf16.mxu0 0
      %608 = vmatmul.mubr.bf16.gmra.mrb[0].mxu0 %v570
      %v609 = vpop.f32.mrb[0].mxu0
      %v610 = vadd.f32 %v567, %v609
      %v611 = vpop.f32.mrb[0].mxu0
      %v612 = vpop.f32.mrb[0].mxu0
      %v613 = vpop.f32.mrb[0].mxu0
      %614 = vdwg.mxu0
      %v615 = vmax.f32 %v610, 0.0
      %v616 = vld [vmem:[%s6] sm:$0x3]
      %v617 = vld [vmem:[%s7] sm:$0xf]
      %v618 = vpack.c.bf16 %v615, %v615
      %620 = vset.pattern.permute.xlu0 0
      %621 = vperm.xlu0 %620, %v617
      %v622 = vpop.permute.xlu0 %621
      %vm624 = vcmask 31744
      %v626 = vsel %vm624, %v616, 0
      %v629 = vsel %vm378, %v618, 0
      %631 = vmatprep.subr.bf16.mxu0 0
      %632 = vmatpush1.bf16.msra.mxu0 %v629
      %633 = vmatprep.subr.bf16.mxu0 0
      %634 = vmatpush1.bf16.msra.mxu0 0
      %635 = vmatprep.subr.bf16.mxu0 0
      %636 = vmatpush1.bf16.msra.mxu0 0
      %637 = vmatprep.subr.bf16.mxu0 0
      %638 = vmatpush1.bf16.msra.mxu0 0
      %639 = vmatprep.subr.bf16.mxu0 0
      %640 = vmatpush1.bf16.msra.mxu0 0
      %641 = vmatprep.subr.bf16.mxu0 0
      %642 = vmatpush1.bf16.msra.mxu0 0
      %643 = vmatprep.subr.bf16.mxu0 0
      %644 = vmatpush1.bf16.msra.mxu0 0
      %645 = vmatprep.subr.bf16.mxu0 0
      %646 = vmatpush1.bf16.msra.mxu0 0
      %647 = vmatprep.subr.bf16.mxu0 0
      %648 = vmatpush1.bf16.msra.mxu0 0
      %649 = vmatprep.subr.bf16.mxu0 0
      %650 = vmatpush1.bf16.msra.mxu0 0
      %651 = vmatprep.subr.bf16.mxu0 0
      %652 = vmatpush1.bf16.msra.mxu0 0
      %653 = vmatprep.subr.bf16.mxu0 0
      %654 = vmatpush1.bf16.msra.mxu0 0
      %655 = vmatprep.subr.bf16.mxu0 0
      %656 = vmatpush1.bf16.msra.mxu0 0
      %657 = vmatprep.subr.bf16.mxu0 0
      %658 = vmatpush1.bf16.msra.mxu0 0
      %659 = vmatprep.subr.bf16.mxu0 0
      %660 = vmatpush1.bf16.msra.mxu0 0
      %661 = vmatprep.subr.bf16.mxu0 0
      %662 = vmatpush1.bf16.msra.mxu0 0
      %663 = vmatprep.mubr.bf16.mxu0 0
      %664 = vmatmul.mubr.bf16.gmra.mrb[0].mxu0 %v626
      %v665 = vpop.f32.mrb[0].mxu0
      %v666 = vadd.f32 %v622, %v665
      %v667 = vpop.f32.mrb[0].mxu0
      %v668 = vpop.f32.mrb[0].mxu0
      %v669 = vpop.f32.mrb[0].mxu0
      %670 = vdwg.mxu0
      %v671 = vmax.f32 %v666, 0.0
      %v673 = vrot.slane %v671, 4
      %v675 = vsel %vm361, %v615, %v673
      %v676 = vld [vmem:[%s8] sm:$0x1]
      %v678 = vlaneseq
      %v679 = vshrl.u32 %v678, 7
      %v680 = vsub.s32 0, %v679
      %v681 = vrot.slane %v676, %v680
      %v683 = vmul.f32 %v675, %v681
      %v684 = vpack.c.bf16 %v683, %v683
      %685 = vst [vmem:[%s327] sm:$0xf] %v684
      %p686 = scmp.lt.s32.totalorder %s20, 1
      %s687 = scalar_select %p686, %s20, 1
      %s688 = smul.addr %s687, 4
      %s689 = scalar_lea.vmem %s9, %s688
      // Predicated region
      $region57: #{_lambda_.6} parent=55 // pred_check
        %p690 = pneg %p232
      $region58: #{_lambda_.6} parent=55 // pred_check_branch
        %692 = sbr.rel (%p690) target = $region60
      $region59: #{_lambda_.6} parent=55 // pred_region
        _
      $region60: #{_lambda_.6} parent=55 // pred_fallthru
        _
    $region56: #{_lambda_.6} parent=5 // pred_fallthru
      _
    %p693 = scmp.le.s32.totalorder 2, %s15
    // Predicated region
    $region61: #{_lambda_.6} parent=5 // pred_check
      %p694 = pneg %p693
    $region62: #{_lambda_.6} parent=5 // pred_check_branch
      %696 = sbr.rel (%p694) target = $region64
    $region63: #{_lambda_.6} parent=5 // pred_region
      %s697 = ssub.s32 %s15, 2
      // Predicated region
      $region65: #{_lambda_.6} parent=63 // pred_check
        %p698 = pneg %p238
      $region66: #{_lambda_.6} parent=63 // pred_check_branch
        %700 = sbr.rel (%p698) target = $region68
      $region67: #{_lambda_.6} parent=63 // pred_region
        %p701 = scmp.lt.s32.totalorder %s21, 1
        %s702 = scalar_select %p701, %s21, 1
        %s703 = smul.addr %s702, 4
        %s704 = scalar_lea.vmem %s9, %s703
      $region68: #{_lambda_.6} parent=63 // pred_fallthru
        _
    $region64: #{_lambda_.6} parent=5 // pred_fallthru
      _
  $region6: #{_lambda_.6} parent=0 // loop_footer
    %s19 = sadd.s32 1, %s15
  $region7: #{_lambda_.6} parent=0 // loop_footer_branch
    %14 = sbr.rel target = $region3
  $region8: #{_lambda_.6} parent=0 // loop_exit
    _

// kernel: _lambda_.5
$region0: #{_lambda_.5}
  #allocation0 [shape = 'u32[]', space=smem, size = 0x4, offset = 0x4, fixed_abs, tag = 'smem constant byte address 0x4 - core index']
  #allocation1 [shape = 'u32[144,128]{1,0:T(1,128)}', space=vmem, size = 0x12000, scoped, tag = 'internal scratch']
  %s0 = inlined_call_operand.vmem [shape: f32[4,768], index: 0, kind: input, shape index: {}]
  %s1 = inlined_call_operand.vmem [shape: bf16[4,36], index: 1, kind: input, shape index: {}]
  %s2 = inlined_call_operand.vmem [shape: f32[4,1], index: 2, kind: input, shape index: {}]
  %s3 = inlined_call_operand.vmem [shape: bf16[384,128], index: 3, kind: input, shape index: {}]
  %s4 = inlined_call_operand.vmem [shape: bf16[4,36], index: 4, kind: input, shape index: {}]
  %s5 = inlined_call_operand.vmem [shape: f32[4,1], index: 5, kind: input, shape index: {}]
  %s6 = inlined_call_operand.vmem [shape: bf16[4,4], index: 6, kind: input, shape index: {}]
  %s7 = inlined_call_operand.vmem [shape: f32[4,1], index: 7, kind: input, shape index: {}]
  %s8 = inlined_call_operand.vmem [shape: f32[1,128], index: 8, kind: input, shape index: {}]
  %s9 = inlined_call_operand.vmem [shape: bf16[8,256], index: 9, kind: output, shape index: {}]
  %s10 = sld [smem:[#allocation0]]
  $region69: #{_lambda_.5} parent=0
    _
  %s12 = ssub.s32 1, %s10
  %s13 = scalar_select 0, %s12, %s10
  loop: start=0, step=1, limit=4
  $region2: #{_lambda_.5} parent=0 // loop_pre_header
    _
  $region3: #{_lambda_.5} parent=0 // loop_header
    %s15 = sphi 0, %s19
    %p16 = scmp.ge.s32.totalorder %s15, 4
    %s25 = sphi 0, %s27
    %s28 = sphi 0, %s25
    %s29 = sphi 0, %s28
    %s45 = sphi 0, %s29
    %s49 = sphi 0, %s49
    %s51 = sphi 0, %s49
    %s52 = sphi 0, %s51
    %s66 = sphi 0, %s52
    %s70 = sphi 0, %s70
    %s72 = sphi 0, %s70
    %s73 = sphi 0, %s72
    %s87 = sphi 0, %s73
    %s91 = sphi 0, %s91
    %s93 = sphi 0, %s91
    %s94 = sphi 0, %s93
    %s108 = sphi 0, %s94
    %s112 = sphi 0, %s112
    %s114 = sphi 0, %s112
    %s115 = sphi 0, %s114
    %s129 = sphi 0, %s115
    %s133 = sphi 0, %s133
    %s135 = sphi 0, %s133
    %s136 = sphi 0, %s135
    %s150 = sphi 0, %s136
    %s154 = sphi 0, %s154
    %s156 = sphi 0, %s154
    %s157 = sphi 0, %s156
    %s171 = sphi 0, %s157
    %s175 = sphi 0, %s175
    %s177 = sphi 0, %s175
    %s178 = sphi 0, %s177
    %s192 = sphi 0, %s178
    %s196 = sphi 0, %s196
    %s198 = sphi 0, %s196
    %s199 = sphi 0, %s198
    %s213 = sphi 0, %s199
    %s219 = sphi 0, %s221
    %s222 = sphi 0, %s219
    %s223 = sphi 0, %s222
    %s239 = sphi 0, %s223
  $region4: #{_lambda_.5} parent=0 // loop_header_branch
    %18 = sbr.rel (%p16) target = $region8
  $region5: #{_lambda_.5} parent=0 // loop_body
    %s20 = ssub.s32 %s15, 1
    %s21 = ssub.s32 %s15, 2
    %s22 = sadd.s32 %s15, 1
    %s23 = ssub.s32 %s15, %s22
    %p24 = scmp.eq.s32.totalorder %s23, 0
    %s26 = sadd.s32 %s25, 1
    %s27 = scalar_select %p24, %s25, %s26
    %p30 = pneg %p24
    %p31 = scmp.eq.s32.totalorder %s15, 1
    %p32 = por %p30, %p31
    %p33 = scmp.ne.s32.totalorder %s25, %s28
    %p34 = scmp.eq.s32.totalorder %s15, 0
    %p35 = por %p33, %p34
    %p36 = scmp.ne.s32.totalorder %s25, %s28
    %p37 = scmp.eq.s32.totalorder %s20, 1
    %p38 = por %p36, %p37
    %p39 = scmp.ne.s32.totalorder %s28, %s29
    %p40 = scmp.eq.s32.totalorder %s20, 0
    %p41 = por %p39, %p40
    %p42 = scmp.ne.s32.totalorder %s28, %s29
    %p43 = scmp.eq.s32.totalorder %s21, 1
    %p44 = por %p42, %p43
    %p46 = scmp.ne.s32.totalorder %s29, %s45
    %p47 = scmp.eq.s32.totalorder %s21, 0
    %p48 = por %p46, %p47
    %s50 = sadd.s32 %s49, 1
    %p53 = scmp.eq.s32.totalorder %s15, 1
    %p54 = scmp.ne.s32.totalorder %s49, %s51
    %p55 = scmp.eq.s32.totalorder %s15, 0
    %p56 = por %p54, %p55
    %p57 = scmp.ne.s32.totalorder %s49, %s51
    %p58 = scmp.eq.s32.totalorder %s20, 1
    %p59 = por %p57, %p58
    %p60 = scmp.ne.s32.totalorder %s51, %s52
    %p61 = scmp.eq.s32.totalorder %s20, 0
    %p62 = por %p60, %p61
    %p63 = scmp.ne.s32.totalorder %s51, %s52
    %p64 = scmp.eq.s32.totalorder %s21, 1
    %p65 = por %p63, %p64
    %p67 = scmp.ne.s32.totalorder %s52, %s66
    %p68 = scmp.eq.s32.totalorder %s21, 0
    %p69 = por %p67, %p68
    %s71 = sadd.s32 %s70, 1
    %p74 = scmp.eq.s32.totalorder %s15, 1
    %p75 = scmp.ne.s32.totalorder %s70, %s72
    %p76 = scmp.eq.s32.totalorder %s15, 0
    %p77 = por %p75, %p76
    %p78 = scmp.ne.s32.totalorder %s70, %s72
    %p79 = scmp.eq.s32.totalorder %s20, 1
    %p80 = por %p78, %p79
    %p81 = scmp.ne.s32.totalorder %s72, %s73
    %p82 = scmp.eq.s32.totalorder %s20, 0
    %p83 = por %p81, %p82
    %p84 = scmp.ne.s32.totalorder %s72, %s73
    %p85 = scmp.eq.s32.totalorder %s21, 1
    %p86 = por %p84, %p85
    %p88 = scmp.ne.s32.totalorder %s73, %s87
    %p89 = scmp.eq.s32.totalorder %s21, 0
    %p90 = por %p88, %p89
    %s92 = sadd.s32 %s91, 1
    %p95 = scmp.eq.s32.totalorder %s15, 1
    %p96 = scmp.ne.s32.totalorder %s91, %s93
    %p97 = scmp.eq.s32.totalorder %s15, 0
    %p98 = por %p96, %p97
    %p99 = scmp.ne.s32.totalorder %s91, %s93
    %p100 = scmp.eq.s32.totalorder %s20, 1
    %p101 = por %p99, %p100
    %p102 = scmp.ne.s32.totalorder %s93, %s94
    %p103 = scmp.eq.s32.totalorder %s20, 0
    %p104 = por %p102, %p103
    %p105 = scmp.ne.s32.totalorder %s93, %s94
    %p106 = scmp.eq.s32.totalorder %s21, 1
    %p107 = por %p105, %p106
    %p109 = scmp.ne.s32.totalorder %s94, %s108
    %p110 = scmp.eq.s32.totalorder %s21, 0
    %p111 = por %p109, %p110
    %s113 = sadd.s32 %s112, 1
    %p116 = scmp.eq.s32.totalorder %s15, 1
    %p117 = scmp.ne.s32.totalorder %s112, %s114
    %p118 = scmp.eq.s32.totalorder %s15, 0
    %p119 = por %p117, %p118
    %p120 = scmp.ne.s32.totalorder %s112, %s114
    %p121 = scmp.eq.s32.totalorder %s20, 1
    %p122 = por %p120, %p121
    %p123 = scmp.ne.s32.totalorder %s114, %s115
    %p124 = scmp.eq.s32.totalorder %s20, 0
    %p125 = por %p123, %p124
    %p126 = scmp.ne.s32.totalorder %s114, %s115
    %p127 = scmp.eq.s32.totalorder %s21, 1
    %p128 = por %p126, %p127
    %p130 = scmp.ne.s32.totalorder %s115, %s129
    %p131 = scmp.eq.s32.totalorder %s21, 0
    %p132 = por %p130, %p131
    %s134 = sadd.s32 %s133, 1
    %p137 = scmp.eq.s32.totalorder %s15, 1
    %p138 = scmp.ne.s32.totalorder %s133, %s135
    %p139 = scmp.eq.s32.totalorder %s15, 0
    %p140 = por %p138, %p139
    %p141 = scmp.ne.s32.totalorder %s133, %s135
    %p142 = scmp.eq.s32.totalorder %s20, 1
    %p143 = por %p141, %p142
    %p144 = scmp.ne.s32.totalorder %s135, %s136
    %p145 = scmp.eq.s32.totalorder %s20, 0
    %p146 = por %p144, %p145
    %p147 = scmp.ne.s32.totalorder %s135, %s136
    %p148 = scmp.eq.s32.totalorder %s21, 1
    %p149 = por %p147, %p148
    %p151 = scmp.ne.s32.totalorder %s136, %s150
    %p152 = scmp.eq.s32.totalorder %s21, 0
    %p153 = por %p151, %p152
    %s155 = sadd.s32 %s154, 1
    %p158 = scmp.eq.s32.totalorder %s15, 1
    %p159 = scmp.ne.s32.totalorder %s154, %s156
    %p160 = scmp.eq.s32.totalorder %s15, 0
    %p161 = por %p159, %p160
    %p162 = scmp.ne.s32.totalorder %s154, %s156
    %p163 = scmp.eq.s32.totalorder %s20, 1
    %p164 = por %p162, %p163
    %p165 = scmp.ne.s32.totalorder %s156, %s157
    %p166 = scmp.eq.s32.totalorder %s20, 0
    %p167 = por %p165, %p166
    %p168 = scmp.ne.s32.totalorder %s156, %s157
    %p169 = scmp.eq.s32.totalorder %s21, 1
    %p170 = por %p168, %p169
    %p172 = scmp.ne.s32.totalorder %s157, %s171
    %p173 = scmp.eq.s32.totalorder %s21, 0
    %p174 = por %p172, %p173
    %s176 = sadd.s32 %s175, 1
    %p179 = scmp.eq.s32.totalorder %s15, 1
    %p180 = scmp.ne.s32.totalorder %s175, %s177
    %p181 = scmp.eq.s32.totalorder %s15, 0
    %p182 = por %p180, %p181
    %p183 = scmp.ne.s32.totalorder %s175, %s177
    %p184 = scmp.eq.s32.totalorder %s20, 1
    %p185 = por %p183, %p184
    %p186 = scmp.ne.s32.totalorder %s177, %s178
    %p187 = scmp.eq.s32.totalorder %s20, 0
    %p188 = por %p186, %p187
    %p189 = scmp.ne.s32.totalorder %s177, %s178
    %p190 = scmp.eq.s32.totalorder %s21, 1
    %p191 = por %p189, %p190
    %p193 = scmp.ne.s32.totalorder %s178, %s192
    %p194 = scmp.eq.s32.totalorder %s21, 0
    %p195 = por %p193, %p194
    %s197 = sadd.s32 %s196, 1
    %p200 = scmp.eq.s32.totalorder %s15, 1
    %p201 = scmp.ne.s32.totalorder %s196, %s198
    %p202 = scmp.eq.s32.totalorder %s15, 0
    %p203 = por %p201, %p202
    %p204 = scmp.ne.s32.totalorder %s196, %s198
    %p205 = scmp.eq.s32.totalorder %s20, 1
    %p206 = por %p204, %p205
    %p207 = scmp.ne.s32.totalorder %s198, %s199
    %p208 = scmp.eq.s32.totalorder %s20, 0
    %p209 = por %p207, %p208
    %p210 = scmp.ne.s32.totalorder %s198, %s199
    %p211 = scmp.eq.s32.totalorder %s21, 1
    %p212 = por %p210, %p211
    %p214 = scmp.ne.s32.totalorder %s199, %s213
    %p215 = scmp.eq.s32.totalorder %s21, 0
    %p216 = por %p214, %p215
    %s217 = ssub.s32 %s15, %s22
    %p218 = scmp.eq.s32.totalorder %s217, 0
    %s220 = sadd.s32 %s219, 1
    %s221 = scalar_select %p218, %s219, %s220
    %p224 = pneg %p218
    %p225 = scmp.eq.s32.totalorder %s15, 1
    %p226 = por %p224, %p225
    %p227 = scmp.ne.s32.totalorder %s219, %s222
    %p228 = scmp.eq.s32.totalorder %s15, 0
    %p229 = por %p227, %p228
    %p230 = scmp.ne.s32.totalorder %s219, %s222
    %p231 = scmp.eq.s32.totalorder %s20, 1
    %p232 = por %p230, %p231
    %p233 = scmp.ne.s32.totalorder %s222, %s223
    %p234 = scmp.eq.s32.totalorder %s20, 0
    %p235 = por %p233, %p234
    %p236 = scmp.ne.s32.totalorder %s222, %s223
    %p237 = scmp.eq.s32.totalorder %s21, 1
    %p238 = por %p236, %p237
    %p240 = scmp.ne.s32.totalorder %s223, %s239
    %p241 = scmp.eq.s32.totalorder %s21, 0
    %p242 = por %p240, %p241
    %p243 = scmp.le.s32.totalorder 1, %s15
    %p244 = scmp.lt.s32.totalorder %s15, 3
    %p245 = pnand %p243, %p244
    %p246 = pneg %p245
    // Predicated region
    $region9: #{_lambda_.5} parent=5 // pred_check
      _
    $region10: #{_lambda_.5} parent=5 // pred_check_branch
      %248 = sbr.rel (%p245) target = $region12
    $region11: #{_lambda_.5} parent=5 // pred_region
      %s249 = ssub.s32 %s15, 1
      // Predicated region
      $region13: #{_lambda_.5} parent=11 // pred_check
        %p250 = pneg %p62
      $region14: #{_lambda_.5} parent=11 // pred_check_branch
        %252 = sbr.rel (%p250) target = $region16
      $region15: #{_lambda_.5} parent=11 // pred_region
        _
      $region16: #{_lambda_.5} parent=11 // pred_fallthru
        _
      // Predicated region
      $region17: #{_lambda_.5} parent=11 // pred_check
        %p253 = pneg %p83
      $region18: #{_lambda_.5} parent=11 // pred_check_branch
        %255 = sbr.rel (%p253) target = $region20
      $region19: #{_lambda_.5} parent=11 // pred_region
        _
      $region20: #{_lambda_.5} parent=11 // pred_fallthru
        _
      // Predicated region
      $region21: #{_lambda_.5} parent=11 // pred_check
        %p256 = pneg %p104
      $region22: #{_lambda_.5} parent=11 // pred_check_branch
        %258 = sbr.rel (%p256) target = $region24
      $region23: #{_lambda_.5} parent=11 // pred_region
        _
      $region24: #{_lambda_.5} parent=11 // pred_fallthru
        _
      // Predicated region
      $region25: #{_lambda_.5} parent=11 // pred_check
        %p259 = pneg %p125
      $region26: #{_lambda_.5} parent=11 // pred_check_branch
        %261 = sbr.rel (%p259) target = $region28
      $region27: #{_lambda_.5} parent=11 // pred_region
        _
      $region28: #{_lambda_.5} parent=11 // pred_fallthru
        _
      // Predicated region
      $region29: #{_lambda_.5} parent=11 // pred_check
        %p262 = pneg %p146
      $region30: #{_lambda_.5} parent=11 // pred_check_branch
        %264 = sbr.rel (%p262) target = $region32
      $region31: #{_lambda_.5} parent=11 // pred_region
        _
      $region32: #{_lambda_.5} parent=11 // pred_fallthru
        _
      // Predicated region
      $region33: #{_lambda_.5} parent=11 // pred_check
        %p265 = pneg %p167
      $region34: #{_lambda_.5} parent=11 // pred_check_branch
        %267 = sbr.rel (%p265) target = $region36
      $region35: #{_lambda_.5} parent=11 // pred_region
        _
      $region36: #{_lambda_.5} parent=11 // pred_fallthru
        _
      // Predicated region
      $region37: #{_lambda_.5} parent=11 // pred_check
        %p268 = pneg %p188
      $region38: #{_lambda_.5} parent=11 // pred_check_branch
        %270 = sbr.rel (%p268) target = $region40
      $region39: #{_lambda_.5} parent=11 // pred_region
        _
      $region40: #{_lambda_.5} parent=11 // pred_fallthru
        _
      // Predicated region
      $region41: #{_lambda_.5} parent=11 // pred_check
        %p271 = pneg %p209
      $region42: #{_lambda_.5} parent=11 // pred_check_branch
        %273 = sbr.rel (%p271) target = $region44
      $region43: #{_lambda_.5} parent=11 // pred_region
        _
      $region44: #{_lambda_.5} parent=11 // pred_fallthru
        _
    $region12: #{_lambda_.5} parent=5 // pred_fallthru
      _
    %p274 = scmp.lt.s32.totalorder %s15, 2
    // Predicated region
    $region45: #{_lambda_.5} parent=5 // pred_check
      %p275 = pneg %p274
    $region46: #{_lambda_.5} parent=5 // pred_check_branch
      %277 = sbr.rel (%p275) target = $region48
    $region47: #{_lambda_.5} parent=5 // pred_region
      // Predicated region
      $region49: #{_lambda_.5} parent=47 // pred_check
        %p278 = pneg %p35
      $region50: #{_lambda_.5} parent=47 // pred_check_branch
        %280 = sbr.rel (%p278) target = $region52
      $region51: #{_lambda_.5} parent=47 // pred_region
        %s281 = smul.u32 3, %s15
        %p282 = scmp.lt.s32.totalorder %s281, 5
        %s283 = scalar_select %p282, %s281, 5
        %s284 = smul.addr %s283, 4
        %s285 = scalar_lea.vmem %s0, %s284
        %s286 = smul.u32 3, %s15
      $region52: #{_lambda_.5} parent=47 // pred_fallthru
        _
    $region48: #{_lambda_.5} parent=5 // pred_fallthru
      _
    %p287 = scmp.le.s32.totalorder 1, %s15
    %p288 = scmp.lt.s32.totalorder %s15, 3
    %p289 = pnand %p287, %p288
    %p290 = pneg %p289
    // Predicated region
    $region53: #{_lambda_.5} parent=5 // pred_check
      _
    $region54: #{_lambda_.5} parent=5 // pred_check_branch
      %292 = sbr.rel (%p289) target = $region56
    $region55: #{_lambda_.5} parent=5 // pred_region
      %s293 = ssub.s32 %s15, 1
      %s294 = smul.u32 3, %s20
      %p295 = scmp.lt.s32.totalorder %s294, 5
      %s296 = scalar_select %p295, %s294, 5
      %s297 = smul.addr %s296, 4
      %s298 = scalar_lea.vmem %s0, %s297
      %p299 = pneg %p41
      %p300 = pneg %p38
      %p301 = pneg %p62
      %p302 = pneg %p59
      %p303 = pneg %p83
      %p304 = pneg %p80
      %p305 = pneg %p104
      %p306 = pneg %p101
      %p307 = pneg %p125
      %p308 = pneg %p122
      %p309 = pneg %p146
      %p310 = pneg %p143
      %p311 = pneg %p167
      %p312 = pneg %p164
      %p313 = pneg %p188
      %p314 = pneg %p185
      %p315 = pneg %p209
      %p316 = pneg %p206
      %p317 = pneg %p235
      %p318 = pneg %p232
      %p319 = scmp.lt.s32.totalorder %s20, 1
      %s320 = scalar_select %p319, %s20, 1
      %s321 = smul.addr %s320, 4
      %s322 = scalar_lea.vmem %s9, %s321
      %s323 = smul.u32 3, %s20
      %p324 = scmp.lt.s32.totalorder %s323, 5
      %s325 = scalar_select %p324, %s323, 5
      %s326 = smul.addr %s325, 4
      %s327 = scalar_lea.vmem %s0, %s326
      %s328 = smul.u32 3, %s20
      %p329 = scmp.lt.s32.totalorder %s20, 1
      %s330 = scalar_select %p329, %s20, 1
      %s331 = smul.addr %s330, 4
      %s332 = scalar_lea.vmem %s9, %s331
      %v334 = vld [vmem:[%s327] sm:$0xff]
      %v335 = vld [vmem:[%s327 + $0x8] sm:$0xf]
      %v336 = vld [vmem:[%s1] sm:$0x3]
      %v337 = vld [vmem:[%s2] sm:$0xf]
      %v339 = vcombine.high %v334, %v334
      %341 = vrot.lane.b32.xlu0 %v334, 19
      %v342 = vpop.permute.xlu0 %341
      %343 = vrot.lane.b32.xlu0 %v339, 19
      %v344 = vpop.permute.xlu0 %343
      %345 = vrot.lane.b32.xlu0 %v335, 19
      %v346 = vpop.permute.xlu0 %345
      %v347 = vlaneseq
      %v348 = vand.u32 %v347, 127
      %vm349 = vcmp.lt.s32.totalorder %v348, 19
      %v350 = vsel %vm349, %v344, %v346
      %v351 = vsel %vm349, %v342, %v344
      %v352 = vsel %vm349, %v346, %v342
      %353 = vrot.lane.b32.xlu0 %v334, 18
      %v354 = vpop.permute.xlu0 %353
      %355 = vrot.lane.b32.xlu0 %v339, 18
      %v356 = vpop.permute.xlu0 %355
      %357 = vrot.lane.b32.xlu0 %v335, 18
      %v358 = vpop.permute.xlu0 %357
      %vm359 = vcmp.lt.s32.totalorder %v348, 18
      %v360 = vsel %vm359, %v356, %v358
      %v361 = vsel %vm359, %v354, %v356
      %v362 = vsel %vm359, %v358, %v354
      %363 = vrot.lane.b32.xlu0 %v334, 17
      %v364 = vpop.permute.xlu0 %363
      %365 = vrot.lane.b32.xlu0 %v339, 17
      %v366 = vpop.permute.xlu0 %365
      %367 = vrot.lane.b32.xlu0 %v335, 17
      %v368 = vpop.permute.xlu0 %367
      %vm369 = vcmp.lt.s32.totalorder %v348, 17
      %v370 = vsel %vm369, %v366, %v368
      %v371 = vsel %vm369, %v364, %v366
      %v372 = vsel %vm369, %v368, %v364
      %373 = vrot.lane.b32.xlu0 %v334, 1
      %v374 = vpop.permute.xlu0 %373
      %375 = vrot.lane.b32.xlu0 %v339, 1
      %v376 = vpop.permute.xlu0 %375
      %377 = vrot.lane.b32.xlu0 %v335, 1
      %v378 = vpop.permute.xlu0 %377
      %vm379 = vcmp.lt.s32.totalorder %v348, 1
      %v380 = vsel %vm379, %v376, %v378
      %v381 = vsel %vm379, %v374, %v376
      %v382 = vsel %vm379, %v378, %v374
      %383 = vrot.lane.b32.xlu0 %v334, 127
      %v384 = vpop.permute.xlu0 %383
      %385 = vrot.lane.b32.xlu0 %v339, 127
      %v386 = vpop.permute.xlu0 %385
      %387 = vrot.lane.b32.xlu0 %v335, 127
      %v388 = vpop.permute.xlu0 %387
      %vm389 = vcmp.lt.s32.totalorder %v348, 127
      %v390 = vsel %vm389, %v386, %v388
      %v391 = vsel %vm389, %v384, %v386
      %v392 = vsel %vm389, %v388, %v384
      %393 = vrot.lane.b32.xlu0 %v334, 111
      %v394 = vpop.permute.xlu0 %393
      %395 = vrot.lane.b32.xlu0 %v339, 111
      %v396 = vpop.permute.xlu0 %395
      %397 = vrot.lane.b32.xlu0 %v335, 111
      %v398 = vpop.permute.xlu0 %397
      %vm399 = vcmp.lt.s32.totalorder %v348, 111
      %v400 = vsel %vm399, %v396, %v398
      %v401 = vsel %vm399, %v394, %v396
      %v402 = vsel %vm399, %v398, %v394
      %403 = vrot.lane.b32.xlu0 %v334, 110
      %v404 = vpop.permute.xlu0 %403
      %405 = vrot.lane.b32.xlu0 %v339, 110
      %v406 = vpop.permute.xlu0 %405
      %407 = vrot.lane.b32.xlu0 %v335, 110
      %v408 = vpop.permute.xlu0 %407
      %vm409 = vcmp.lt.s32.totalorder %v348, 110
      %v410 = vsel %vm409, %v406, %v408
      %v411 = vsel %vm409, %v404, %v406
      %v412 = vsel %vm409, %v408, %v404
      %413 = vrot.lane.b32.xlu0 %v334, 109
      %v414 = vpop.permute.xlu0 %413
      %415 = vrot.lane.b32.xlu0 %v339, 109
      %v416 = vpop.permute.xlu0 %415
      %417 = vrot.lane.b32.xlu0 %v335, 109
      %v418 = vpop.permute.xlu0 %417
      %vm419 = vcmp.lt.s32.totalorder %v348, 109
      %v420 = vsel %vm419, %v416, %v418
      %v421 = vsel %vm419, %v414, %v416
      %v422 = vsel %vm419, %v418, %v414
      %v426 = vrot.slane %v362, 4
      %v427 = vrot.slane %v361, 4
      %v428 = vrot.slane %v360, 4
      %v435 = vrot.slane %v382, 4
      %v436 = vrot.slane %v381, 4
      %v437 = vrot.slane %v380, 4
      %v444 = vrot.slane %v391, 4
      %v445 = vrot.slane %v390, 4
      %v446 = vrot.slane %v392, 4
      %v453 = vrot.slane %v411, 4
      %v454 = vrot.slane %v410, 4
      %v455 = vrot.slane %v412, 4
      %vm459 = vcmask 1043456
      %v460 = vsel %vm459, %v352, %v426
      %v461 = vsel %vm459, %v351, %v427
      %v462 = vsel %vm459, %v350, %v428
      %v463 = vsel %vm459, %v372, %v435
      %v464 = vsel %vm459, %v371, %v436
      %v465 = vsel %vm459, %v370, %v437
      %v466 = vsel %vm459, %v334, %v444
      %v467 = vsel %vm459, %v339, %v445
      %v468 = vsel %vm459, %v335, %v446
      %v469 = vsel %vm459, %v401, %v453
      %v470 = vsel %vm459, %v400, %v454
      %v471 = vsel %vm459, %v402, %v455
      %v472 = vpack.c.bf16 %v463, %v460
      %v473 = vpack.c.bf16 %v464, %v461
      %v474 = vpack.c.bf16 %v465, %v462
      %v475 = vpack.c.bf16 %v469, %v466
      %v476 = vpack.c.bf16 %v470, %v467
      %v477 = vpack.c.bf16 %v471, %v468
      %v478 = vpack.c.bf16 %v421, %v421
      %v479 = vpack.c.bf16 %v420, %v420
      %v480 = vpack.c.bf16 %v422, %v422
      %482 = vset.pattern.permute.xlu0 0
      %483 = vperm.xlu0 %482, %v337
      %v484 = vpop.permute.xlu0 %483
      %vm486 = vcmask 293888
      %v488 = vsel %vm486, %v336, 0
      %vm490 = vcmask 1041408
      %v492 = vsel %vm490, %v478, 0
      %v495 = vsel %vm490, %v479, 0
      %v498 = vsel %vm490, %v480, 0
      %500 = vmatprep.subr.bf16.mxu0 %v473
      %501 = vmatpush1.bf16.msra.mxu0 %v472
      %502 = vmatprep.subr.bf16.mxu0 %v476
      %503 = vmatpush1.bf16.msra.mxu0 %v475
      %504 = vmatprep.subr.bf16.mxu0 %v495
      %505 = vmatpush1.bf16.msra.mxu0 %v492
      %506 = vmatprep.subr.bf16.mxu0 0
      %507 = vmatpush1.bf16.msra.mxu0 0
      %508 = vmatprep.subr.bf16.mxu0 0
      %509 = vmatpush1.bf16.msra.mxu0 0
      %510 = vmatprep.subr.bf16.mxu0 0
      %511 = vmatpush1.bf16.msra.mxu0 0
      %512 = vmatprep.subr.bf16.mxu0 0
      %513 = vmatpush1.bf16.msra.mxu0 0
      %514 = vmatprep.subr.bf16.mxu0 0
      %515 = vmatpush1.bf16.msra.mxu0 0
      %516 = vmatprep.subr.bf16.mxu0 0
      %517 = vmatpush1.bf16.msra.mxu0 0
      %518 = vmatprep.subr.bf16.mxu0 0
      %519 = vmatpush1.bf16.msra.mxu0 0
      %520 = vmatprep.subr.bf16.mxu0 0
      %521 = vmatpush1.bf16.msra.mxu0 0
      %522 = vmatprep.subr.bf16.mxu0 0
      %523 = vmatpush1.bf16.msra.mxu0 0
      %524 = vmatprep.subr.bf16.mxu0 0
      %525 = vmatpush1.bf16.msra.mxu0 0
      %526 = vmatprep.subr.bf16.mxu0 0
      %527 = vmatpush1.bf16.msra.mxu0 0
      %528 = vmatprep.subr.bf16.mxu0 0
      %529 = vmatpush1.bf16.msra.mxu0 0
      %530 = vmatprep.subr.bf16.mxu0 0
      %531 = vmatpush1.bf16.msra.mxu0 0
      %532 = vmatprep.mubr.bf16.mxu0 0
      %533 = vmatmul.mubr.bf16.gmra.mrb[0].mxu0 %v488
      %v534 = vpop.f32.mrb[0].mxu0
      %v535 = vadd.f32 %v484, %v534
      %v536 = vpop.f32.mrb[0].mxu0
      %v537 = vadd.f32 %v484, %v536
      %v538 = vpop.f32.mrb[0].mxu0
      %v539 = vpop.f32.mrb[0].mxu0
      %540 = vdwg.mxu0
      %541 = vmatprep.subr.bf16.mxu0 0
      %542 = vmatpush1.bf16.msra.mxu0 %v474
      %543 = vmatprep.subr.bf16.mxu0 0
      %544 = vmatpush1.bf16.msra.mxu0 %v477
      %545 = vmatprep.subr.bf16.mxu0 0
      %546 = vmatpush1.bf16.msra.mxu0 %v498
      %547 = vmatprep.subr.bf16.mxu0 0
      %548 = vmatpush1.bf16.msra.mxu0 0
      %549 = vmatprep.subr.bf16.mxu0 0
      %550 = vmatpush1.bf16.msra.mxu0 0
      %551 = vmatprep.subr.bf16.mxu0 0
      %552 = vmatpush1.bf16.msra.mxu0 0
      %553 = vmatprep.subr.bf16.mxu0 0
      %554 = vmatpush1.bf16.msra.mxu0 0
      %555 = vmatprep.subr.bf16.mxu0 0
      %556 = vmatpush1.bf16.msra.mxu0 0
      %557 = vmatprep.subr.bf16.mxu0 0
      %558 = vmatpush1.bf16.msra.mxu0 0
      %559 = vmatprep.subr.bf16.mxu0 0
      %560 = vmatpush1.bf16.msra.mxu0 0
      %561 = vmatprep.subr.bf16.mxu0 0
      %562 = vmatpush1.bf16.msra.mxu0 0
      %563 = vmatprep.subr.bf16.mxu0 0
      %564 = vmatpush1.bf16.msra.mxu0 0
      %565 = vmatprep.subr.bf16.mxu0 0
      %566 = vmatpush1.bf16.msra.mxu0 0
      %567 = vmatprep.subr.bf16.mxu0 0
      %568 = vmatpush1.bf16.msra.mxu0 0
      %569 = vmatprep.subr.bf16.mxu0 0
      %570 = vmatpush1.bf16.msra.mxu0 0
      %571 = vmatprep.subr.bf16.mxu0 0
      %572 = vmatpush1.bf16.msra.mxu0 0
      %573 = vmatprep.mubr.bf16.mxu0 0
      %574 = vmatmul.mubr.bf16.gmra.mrb[0].mxu0 %v488
      %v575 = vpop.f32.mrb[0].mxu0
      %v576 = vadd.f32 %v484, %v575
      %v577 = vpop.f32.mrb[0].mxu0
      %v578 = vpop.f32.mrb[0].mxu0
      %v579 = vpop.f32.mrb[0].mxu0
      %580 = vdwg.mxu0
      %v581 = vpack.c.bf16 %v535, %v535
      %v582 = vpack.c.bf16 %v537, %v537
      %v583 = vpack.c.bf16 %v576, %v576
      %v584 = vld [vmem:[%s3] sm:$0xf]
      %v585 = vld [vmem:[%s3 + $0x4] sm:$0xf]
      %v586 = vld [vmem:[%s3 + $0x8] sm:$0xf]
      %v587 = vld [vmem:[%s3 + $0xc] sm:$0xf]
      %v588 = vld [vmem:[%s3 + $0x10] sm:$0xf]
      %v589 = vld [vmem:[%s3 + $0x14] sm:$0xf]
      %v590 = vld [vmem:[%s3 + $0x18] sm:$0xf]
      %v591 = vld [vmem:[%s3 + $0x1c] sm:$0xf]
      %v592 = vld [vmem:[%s3 + $0x20] sm:$0xf]
      %v593 = vld [vmem:[%s3 + $0x24] sm:$0xf]
      %v594 = vld [vmem:[%s3 + $0x28] sm:$0xf]
      %v595 = vld [vmem:[%s3 + $0x2c] sm:$0xf]
      %v596 = vld [vmem:[%s3 + $0x30] sm:$0xf]
      %v597 = vld [vmem:[%s3 + $0x34] sm:$0xf]
      %v598 = vld [vmem:[%s3 + $0x38] sm:$0xf]
      %v599 = vld [vmem:[%s3 + $0x3c] sm:$0xf]
      %v600 = vld [vmem:[%s3 + $0x40] sm:$0xf]
      %v601 = vld [vmem:[%s3 + $0x44] sm:$0xf]
      %v602 = vld [vmem:[%s3 + $0x48] sm:$0xf]
      %v603 = vld [vmem:[%s3 + $0x4c] sm:$0xf]
      %v604 = vld [vmem:[%s3 + $0x50] sm:$0xf]
      %v605 = vld [vmem:[%s3 + $0x54] sm:$0xf]
      %v606 = vld [vmem:[%s3 + $0x58] sm:$0xf]
      %v607 = vld [vmem:[%s3 + $0x5c] sm:$0xf]
      %v608 = vld [vmem:[%s3 + $0x60] sm:$0xf]
      %v609 = vld [vmem:[%s3 + $0x64] sm:$0xf]
      %v610 = vld [vmem:[%s3 + $0x68] sm:$0xf]
      %v611 = vld [vmem:[%s3 + $0x6c] sm:$0xf]
      %v612 = vld [vmem:[%s3 + $0x70] sm:$0xf]
      %v613 = vld [vmem:[%s3 + $0x74] sm:$0xf]
      %v614 = vld [vmem:[%s3 + $0x78] sm:$0xf]
      %v615 = vld [vmem:[%s3 + $0x7c] sm:$0xf]
      %v616 = vld [vmem:[%s3 + $0x80] sm:$0xf]
      %v617 = vld [vmem:[%s3 + $0x84] sm:$0xf]
      %v618 = vld [vmem:[%s3 + $0x88] sm:$0xf]
      %v619 = vld [vmem:[%s3 + $0x8c] sm:$0xf]
      %v620 = vld [vmem:[%s3 + $0x90] sm:$0xf]
      %v621 = vld [vmem:[%s3 + $0x94] sm:$0xf]
      %v622 = vld [vmem:[%s3 + $0x98] sm:$0xf]
      %v623 = vld [vmem:[%s3 + $0x9c] sm:$0xf]
      %v624 = vld [vmem:[%s3 + $0xa0] sm:$0xf]
      %v625 = vld [vmem:[%s3 + $0xa4] sm:$0xf]
      %v626 = vld [vmem:[%s3 + $0xa8] sm:$0xf]
      %v627 = vld [vmem:[%s3 + $0xac] sm:$0xf]
      %v628 = vld [vmem:[%s3 + $0xb0] sm:$0xf]
      %v629 = vld [vmem:[%s3 + $0xb4] sm:$0xf]
      %v630 = vld [vmem:[%s3 + $0xb8] sm:$0xf]
      %v631 = vld [vmem:[%s3 + $0xbc] sm:$0xf]
      %v680 = vunpack.c.l.b16 %v584
      %v681 = vunpack.c.l.b16 %v585
      %v682 = vunpack.c.l.b16 %v586
      %v683 = vunpack.c.l.b16 %v587
      %v684 = vunpack.c.l.b16 %v588
      %v685 = vunpack.c.l.b16 %v589
      %v686 = vunpack.c.l.b16 %v590
      %v687 = vunpack.c.l.b16 %v591
      %v688 = vunpack.c.l.b16 %v592
      %v689 = vunpack.c.l.b16 %v593
      %v690 = vunpack.c.l.b16 %v594
      %v691 = vunpack.c.l.b16 %v595
      %v692 = vunpack.c.l.b16 %v596
      %v693 = vunpack.c.l.b16 %v597
      %v694 = vunpack.c.l.b16 %v598
      %v695 = vunpack.c.l.b16 %v599
      %v696 = vunpack.c.l.b16 %v600
      %v697 = vunpack.c.l.b16 %v601
      %v698 = vunpack.c.l.b16 %v602
      %v699 = vunpack.c.l.b16 %v603
      %v700 = vunpack.c.l.b16 %v604
      %v701 = vunpack.c.l.b16 %v605
      %v702 = vunpack.c.l.b16 %v606
      %v703 = vunpack.c.l.b16 %v607
      %v704 = vunpack.c.l.b16 %v608
      %v705 = vunpack.c.l.b16 %v609
      %v706 = vunpack.c.l.b16 %v610
      %v707 = vunpack.c.l.b16 %v611
      %v708 = vunpack.c.l.b16 %v612
      %v709 = vunpack.c.l.b16 %v613
      %v710 = vunpack.c.l.b16 %v614
      %v711 = vunpack.c.l.b16 %v615
      %v712 = vunpack.c.l.b16 %v616
      %v713 = vunpack.c.l.b16 %v617
      %v714 = vunpack.c.l.b16 %v618
      %v715 = vunpack.c.l.b16 %v619
      %v716 = vunpack.c.l.b16 %v620
      %v717 = vunpack.c.l.b16 %v621
      %v718 = vunpack.c.l.b16 %v622
      %v719 = vunpack.c.l.b16 %v623
      %v720 = vunpack.c.l.b16 %v624
      %v721 = vunpack.c.l.b16 %v625
      %v722 = vunpack.c.l.b16 %v626
      %v723 = vunpack.c.l.b16 %v627
      %v724 = vunpack.c.l.b16 %v628
      %v725 = vunpack.c.l.b16 %v629
      %v726 = vunpack.c.l.b16 %v630
      %v727 = vunpack.c.l.b16 %v631
      %v728 = vpack.c.b16 %v681, %v680
      %v729 = vpack.c.b16 %v683, %v682
      %v730 = vpack.c.b16 %v685, %v684
      %v731 = vpack.c.b16 %v687, %v686
      %v732 = vpack.c.b16 %v689, %v688
      %v733 = vpack.c.b16 %v691, %v690
      %v734 = vpack.c.b16 %v693, %v692
      %v735 = vpack.c.b16 %v695, %v694
      %v736 = vpack.c.b16 %v697, %v696
      %v737 = vpack.c.b16 %v699, %v698
      %v738 = vpack.c.b16 %v701, %v700
      %v739 = vpack.c.b16 %v703, %v702
      %v740 = vpack.c.b16 %v705, %v704
      %v741 = vpack.c.b16 %v707, %v706
      %v742 = vpack.c.b16 %v709, %v708
      %v743 = vpack.c.b16 %v711, %v710
      %v744 = vpack.c.b16 %v713, %v712
      %v745 = vpack.c.b16 %v715, %v714
      %v746 = vpack.c.b16 %v717, %v716
      %v747 = vpack.c.b16 %v719, %v718
      %v748 = vpack.c.b16 %v721, %v720
      %v749 = vpack.c.b16 %v723, %v722
      %v750 = vpack.c.b16 %v725, %v724
      %v751 = vpack.c.b16 %v727, %v726
      %776 = vmatprep.subr.bf16.mxu0 0
      %777 = vmatpush1.bf16.msra.mxu0 %v728
      %778 = vmatprep.subr.bf16.mxu0 0
      %779 = vmatpush1.bf16.msra.mxu0 %v729
      %780 = vmatprep.subr.bf16.mxu0 0
      %781 = vmatpush1.bf16.msra.mxu0 %v730
      %782 = vmatprep.subr.bf16.mxu0 0
      %783 = vmatpush1.bf16.msra.mxu0 %v731
      %784 = vmatprep.subr.bf16.mxu0 0
      %785 = vmatpush1.bf16.msra.mxu0 %v732
      %786 = vmatprep.subr.bf16.mxu0 0
      %787 = vmatpush1.bf16.msra.mxu0 %v733
      %788 = vmatprep.subr.bf16.mxu0 0
      %789 = vmatpush1.bf16.msra.mxu0 %v734
      %790 = vmatprep.subr.bf16.mxu0 0
      %791 = vmatpush1.bf16.msra.mxu0 %v735
      %792 = vmatprep.subr.bf16.mxu0 0
      %793 = vmatpush1.bf16.msra.mxu0 %v736
      %794 = vmatprep.subr.bf16.mxu0 0
      %795 = vmatpush1.bf16.msra.mxu0 %v737
      %796 = vmatprep.subr.bf16.mxu0 0
      %797 = vmatpush1.bf16.msra.mxu0 %v738
      %798 = vmatprep.subr.bf16.mxu0 0
      %799 = vmatpush1.bf16.msra.mxu0 %v739
      %800 = vmatprep.subr.bf16.mxu0 0
      %801 = vmatpush1.bf16.msra.mxu0 %v740
      %802 = vmatprep.subr.bf16.mxu0 0
      %803 = vmatpush1.bf16.msra.mxu0 %v741
      %804 = vmatprep.subr.bf16.mxu0 0
      %805 = vmatpush1.bf16.msra.mxu0 %v742
      %806 = vmatprep.subr.bf16.mxu0 0
      %807 = vmatpush1.bf16.msra.mxu0 %v743
      %808 = vmatprep.mubr.bf16.mxu0 %v582
      %809 = vmatmul.mubr.bf16.gmra.mrb[0].mxu0 %v581
      %v810 = vpop.f32.mrb[0].mxu0
      %v811 = vadd.f32 0.0, %v810
      %v812 = vpop.f32.mrb[0].mxu0
      %v813 = vpop.f32.mrb[0].mxu0
      %v814 = vpop.f32.mrb[0].mxu0
      %815 = vdwg.mxu0
      %816 = vmatprep.subr.bf16.mxu0 0
      %817 = vmatpush1.bf16.msra.mxu0 %v744
      %818 = vmatprep.subr.bf16.mxu0 0
      %819 = vmatpush1.bf16.msra.mxu0 %v745
      %820 = vmatprep.subr.bf16.mxu0 0
      %821 = vmatpush1.bf16.msra.mxu0 %v746
      %822 = vmatprep.subr.bf16.mxu0 0
      %823 = vmatpush1.bf16.msra.mxu0 %v747
      %824 = vmatprep.subr.bf16.mxu0 0
      %825 = vmatpush1.bf16.msra.mxu0 %v748
      %826 = vmatprep.subr.bf16.mxu0 0
      %827 = vmatpush1.bf16.msra.mxu0 %v749
      %828 = vmatprep.subr.bf16.mxu0 0
      %829 = vmatpush1.bf16.msra.mxu0 %v750
      %830 = vmatprep.subr.bf16.mxu0 0
      %831 = vmatpush1.bf16.msra.mxu0 %v751
      %832 = vmatprep.subr.bf16.mxu0 0
      %833 = vmatpush1.bf16.msra.mxu0 0
      %834 = vmatprep.subr.bf16.mxu0 0
      %835 = vmatpush1.bf16.msra.mxu0 0
      %836 = vmatprep.subr.bf16.mxu0 0
      %837 = vmatpush1.bf16.msra.mxu0 0
      %838 = vmatprep.subr.bf16.mxu0 0
      %839 = vmatpush1.bf16.msra.mxu0 0
      %840 = vmatprep.subr.bf16.mxu0 0
      %841 = vmatpush1.bf16.msra.mxu0 0
      %842 = vmatprep.subr.bf16.mxu0 0
      %843 = vmatpush1.bf16.msra.mxu0 0
      %844 = vmatprep.subr.bf16.mxu0 0
      %845 = vmatpush1.bf16.msra.mxu0 0
      %846 = vmatprep.subr.bf16.mxu0 0
      %847 = vmatpush1.bf16.msra.mxu0 0
      %848 = vmatprep.mubr.bf16.mxu0 0
      %849 = vmatmul.mubr.bf16.gmra.mrb[0].mxu0 %v583
      %v850 = vpop.f32.mrb[0].mxu0
      %v851 = vadd.f32 %v811, %v850
      %v852 = vpop.f32.mrb[0].mxu0
      %v853 = vpop.f32.mrb[0].mxu0
      %v854 = vpop.f32.mrb[0].mxu0
      %855 = vdwg.mxu0
      %v856 = vld [vmem:[%s4] sm:$0x3]
      %v857 = vld [vmem:[%s5] sm:$0xf]
      %858 = vrot.lane.b32.xlu0 %v851, 11
      %v859 = vpop.permute.xlu0 %858
      %860 = vrot.lane.b32.xlu0 %v851, 10
      %v861 = vpop.permute.xlu0 %860
      %862 = vrot.lane.b32.xlu0 %v851, 9
      %v863 = vpop.permute.xlu0 %862
      %864 = vrot.lane.b32.xlu0 %v851, 1
      %v865 = vpop.permute.xlu0 %864
      %866 = vrot.lane.b32.xlu0 %v851, 127
      %v867 = vpop.permute.xlu0 %866
      %868 = vrot.lane.b32.xlu0 %v851, 119
      %v869 = vpop.permute.xlu0 %868
      %870 = vrot.lane.b32.xlu0 %v851, 118
      %v871 = vpop.permute.xlu0 %870
      %872 = vrot.lane.b32.xlu0 %v851, 117
      %v873 = vpop.permute.xlu0 %872
      %v875 = vrot.slane %v861, 4
      %v878 = vrot.slane %v865, 4
      %v881 = vrot.slane %v867, 4
      %v884 = vrot.slane %v871, 4
      %v886 = vsel %vm459, %v859, %v875
      %v887 = vsel %vm459, %v863, %v878
      %v888 = vsel %vm459, %v851, %v881
      %v889 = vsel %vm459, %v869, %v884
      %v890 = vpack.c.bf16 %v887, %v886
      %v891 = vpack.c.bf16 %v889, %v888
      %v892 = vpack.c.bf16 %v873, %v873
      %894 = vset.pattern.permute.xlu0 0
      %895 = vperm.xlu0 %894, %v857
      %v896 = vpop.permute.xlu0 %895
      %v899 = vsel %vm486, %v856, 0
      %v902 = vsel %vm490, %v892, 0
      %904 = vmatprep.subr.bf16.mxu0 0
      %905 = vmatpush1.bf16.msra.mxu0 %v890
      %906 = vmatprep.subr.bf16.mxu0 0
      %907 = vmatpush1.bf16.msra.mxu0 %v891
      %908 = vmatprep.subr.bf16.mxu0 0
      %909 = vmatpush1.bf16.msra.mxu0 %v902
      %910 = vmatprep.subr.bf16.mxu0 0
      %911 = vmatpush1.bf16.msra.mxu0 0
      %912 = vmatprep.subr.bf16.mxu0 0
      %913 = vmatpush1.bf16.msra.mxu0 0
      %914 = vmatprep.subr.bf16.mxu0 0
      %915 = vmatpush1.bf16.msra.mxu0 0
      %916 = vmatprep.subr.bf16.mxu0 0
      %917 = vmatpush1.bf16.msra.mxu0 0
      %918 = vmatprep.subr.bf16.mxu0 0
      %919 = vmatpush1.bf16.msra.mxu0 0
      %920 = vmatprep.subr.bf16.mxu0 0
      %921 = vmatpush1.bf16.msra.mxu0 0
      %922 = vmatprep.subr.bf16.mxu0 0
      %923 = vmatpush1.bf16.msra.mxu0 0
      %924 = vmatprep.subr.bf16.mxu0 0
      %925 = vmatpush1.bf16.msra.mxu0 0
      %926 = vmatprep.subr.bf16.mxu0 0
      %927 = vmatpush1.bf16.msra.mxu0 0
      %928 = vmatprep.subr.bf16.mxu0 0
      %929 = vmatpush1.bf16.msra.mxu0 0
      %930 = vmatprep.subr.bf16.mxu0 0
      %931 = vmatpush1.bf16.msra.mxu0 0
      %932 = vmatprep.subr.bf16.mxu0 0
      %933 = vmatpush1.bf16.msra.mxu0 0
      %934 = vmatprep.subr.bf16.mxu0 0
      %935 = vmatpush1.bf16.msra.mxu0 0
      %936 = vmatprep.mubr.bf16.mxu0 0
      %937 = vmatmul.mubr.bf16.gmra.mrb[0].mxu0 %v899
      %v938 = vpop.f32.mrb[0].mxu0
      %v939 = vadd.f32 %v896, %v938
      %v940 = vpop.f32.mrb[0].mxu0
      %v941 = vpop.f32.mrb[0].mxu0
      %v942 = vpop.f32.mrb[0].mxu0
      %943 = vdwg.mxu0
      %v944 = vmax.f32 %v939, 0.0
      %v945 = vld [vmem:[%s6] sm:$0x3]
      %v946 = vld [vmem:[%s7] sm:$0xf]
      %v947 = vpack.c.bf16 %v944, %v944
      %949 = vset.pattern.permute.xlu0 0
      %950 = vperm.xlu0 %949, %v946
      %v951 = vpop.permute.xlu0 %950
      %vm953 = vcmask 31744
      %v955 = vsel %vm953, %v945, 0
      %v958 = vsel %vm490, %v947, 0
      %960 = vmatprep.subr.bf16.mxu0 0
      %961 = vmatpush1.bf16.msra.mxu0 %v958
      %962 = vmatprep.subr.bf16.mxu0 0
      %963 = vmatpush1.bf16.msra.mxu0 0
      %964 = vmatprep.subr.bf16.mxu0 0
      %965 = vmatpush1.bf16.msra.mxu0 0
      %966 = vmatprep.subr.bf16.mxu0 0
      %967 = vmatpush1.bf16.msra.mxu0 0
      %968 = vmatprep.subr.bf16.mxu0 0
      %969 = vmatpush1.bf16.msra.mxu0 0
      %970 = vmatprep.subr.bf16.mxu0 0
      %971 = vmatpush1.bf16.msra.mxu0 0
      %972 = vmatprep.subr.bf16.mxu0 0
      %973 = vmatpush1.bf16.msra.mxu0 0
      %974 = vmatprep.subr.bf16.mxu0 0
      %975 = vmatpush1.bf16.msra.mxu0 0
      %976 = vmatprep.subr.bf16.mxu0 0
      %977 = vmatpush1.bf16.msra.mxu0 0
      %978 = vmatprep.subr.bf16.mxu0 0
      %979 = vmatpush1.bf16.msra.mxu0 0
      %980 = vmatprep.subr.bf16.mxu0 0
      %981 = vmatpush1.bf16.msra.mxu0 0
      %982 = vmatprep.subr.bf16.mxu0 0
      %983 = vmatpush1.bf16.msra.mxu0 0
      %984 = vmatprep.subr.bf16.mxu0 0
      %985 = vmatpush1.bf16.msra.mxu0 0
      %986 = vmatprep.subr.bf16.mxu0 0
      %987 = vmatpush1.bf16.msra.mxu0 0
      %988 = vmatprep.subr.bf16.mxu0 0
      %989 = vmatpush1.bf16.msra.mxu0 0
      %990 = vmatprep.subr.bf16.mxu0 0
      %991 = vmatpush1.bf16.msra.mxu0 0
      %992 = vmatprep.mubr.bf16.mxu0 0
      %993 = vmatmul.mubr.bf16.gmra.mrb[0].mxu0 %v955
      %v994 = vpop.f32.mrb[0].mxu0
      %v995 = vadd.f32 %v951, %v994
      %v996 = vpop.f32.mrb[0].mxu0
      %v997 = vpop.f32.mrb[0].mxu0
      %v998 = vpop.f32.mrb[0].mxu0
      %999 = vdwg.mxu0
      %v1000 = vmax.f32 %v995, 0.0
      %v1002 = vrot.slane %v1000, 4
      %v1004 = vsel %vm459, %v944, %v1002
      %v1005 = vld [vmem:[%s8] sm:$0x1]
      %v1007 = vlaneseq
      %v1008 = vshrl.u32 %v1007, 7
      %v1009 = vsub.s32 0, %v1008
      %v1010 = vrot.slane %v1005, %v1009
      %v1012 = vmul.f32 %v1004, %v1010
      %v1013 = vpack.c.bf16 %v1012, %v1012
      %1014 = vst [vmem:[%s332] sm:$0xf] %v1013
      %p1015 = scmp.lt.s32.totalorder %s20, 1
      %s1016 = scalar_select %p1015, %s20, 1
      %s1017 = smul.addr %s1016, 4
      %s1018 = scalar_lea.vmem %s9, %s1017
      // Predicated region
      $region57: #{_lambda_.5} parent=55 // pred_check
        %p1019 = pneg %p232
      $region58: #{_lambda_.5} parent=55 // pred_check_branch
        %1021 = sbr.rel (%p1019) target = $region60
      $region59: #{_lambda_.5} parent=55 // pred_region
        _
      $region60: #{_lambda_.5} parent=55 // pred_fallthru
        _
    $region56: #{_lambda_.5} parent=5 // pred_fallthru
      _
    %p1022 = scmp.le.s32.totalorder 2, %s15
    // Predicated region
    $region61: #{_lambda_.5} parent=5 // pred_check
      %p1023 = pneg %p1022
    $region62: #{_lambda_.5} parent=5 // pred_check_branch
      %1025 = sbr.rel (%p1023) target = $region64
    $region63: #{_lambda_.5} parent=5 // pred_region
      %s1026 = ssub.s32 %s15, 2
      // Predicated region
      $region65: #{_lambda_.5} parent=63 // pred_check
        %p1027 = pneg %p238
      $region66: #{_lambda_.5} parent=63 // pred_check_branch
        %1029 = sbr.rel (%p1027) target = $region68
      $region67: #{_lambda_.5} parent=63 // pred_region
        %p1030 = scmp.lt.s32.totalorder %s21, 1
        %s1031 = scalar_select %p1030, %s21, 1
        %s1032 = smul.addr %s1031, 4
        %s1033 = scalar_lea.vmem %s9, %s1032
      $region68: #{_lambda_.5} parent=63 // pred_fallthru
        _
    $region64: #{_lambda_.5} parent=5 // pred_fallthru
      _
  $region6: #{_lambda_.5} parent=0 // loop_footer
    %s19 = sadd.s32 1, %s15
  $region7: #{_lambda_.5} parent=0 // loop_footer_branch
    %14 = sbr.rel target = $region3
  $region8: #{_lambda_.5} parent=0 // loop_exit
    _

// kernel: _lambda_.9
$region0: #{_lambda_.9}
  #allocation0 [shape = 'u32[]', space=smem, size = 0x4, offset = 0x4, fixed_abs, tag = 'smem constant byte address 0x4 - core index']
  #allocation1 [shape = 'u32[144,128]{1,0:T(1,128)}', space=vmem, size = 0x12000, scoped, tag = 'internal scratch']
  %s0 = inlined_call_operand.vmem [shape: bf16[4,256], index: 0, kind: input, shape index: {}]
  %s1 = inlined_call_operand.vmem [shape: f32[4,768], index: 1, kind: input, shape index: {}]
  %s2 = inlined_call_operand.vmem [shape: bf16[128,384], index: 2, kind: input, shape index: {}]
  %s3 = inlined_call_operand.vmem [shape: bf16[4,36], index: 3, kind: input, shape index: {}]
  %s4 = inlined_call_operand.vmem [shape: f32[4,1], index: 4, kind: input, shape index: {}]
  %s5 = inlined_call_operand.vmem [shape: bf16[4,4], index: 5, kind: input, shape index: {}]
  %s6 = inlined_call_operand.vmem [shape: f32[4,1], index: 6, kind: input, shape index: {}]
  %s7 = inlined_call_operand.vmem [shape: bf16[4,4], index: 7, kind: input, shape index: {}]
  %s8 = inlined_call_operand.vmem [shape: f32[4,1], index: 8, kind: input, shape index: {}]
  %s9 = inlined_call_operand.vmem [shape: bf16[4,72], index: 9, kind: input, shape index: {}]
  %s10 = inlined_call_operand.vmem [shape: f32[4,1], index: 10, kind: input, shape index: {}]
  %s11 = inlined_call_operand.vmem [shape: f32[1,384], index: 11, kind: input, shape index: {}]
  %s12 = inlined_call_operand.vmem [shape: f32[4,768], index: 12, kind: output, shape index: {}]
  %s13 = sld [smem:[#allocation0]]
  $region81: #{_lambda_.9} parent=0
    _
  %s15 = ssub.s32 1, %s13
  %s16 = scalar_select 0, %s15, %s13
  loop: start=0, step=1, limit=4
  $region2: #{_lambda_.9} parent=0 // loop_pre_header
    _
  $region3: #{_lambda_.9} parent=0 // loop_header
    %s18 = sphi 0, %s22
    %p19 = scmp.ge.s32.totalorder %s18, 4
    %s28 = sphi 0, %s30
    %s31 = sphi 0, %s28
    %s32 = sphi 0, %s31
    %s48 = sphi 0, %s32
    %s54 = sphi 0, %s56
    %s57 = sphi 0, %s54
    %s58 = sphi 0, %s57
    %s74 = sphi 0, %s58
    %s78 = sphi 0, %s78
    %s80 = sphi 0, %s78
    %s81 = sphi 0, %s80
    %s95 = sphi 0, %s81
    %s99 = sphi 0, %s99
    %s101 = sphi 0, %s99
    %s102 = sphi 0, %s101
    %s116 = sphi 0, %s102
    %s120 = sphi 0, %s120
    %s122 = sphi 0, %s120
    %s123 = sphi 0, %s122
    %s137 = sphi 0, %s123
    %s141 = sphi 0, %s141
    %s143 = sphi 0, %s141
    %s144 = sphi 0, %s143
    %s158 = sphi 0, %s144
    %s162 = sphi 0, %s162
    %s164 = sphi 0, %s162
    %s165 = sphi 0, %s164
    %s179 = sphi 0, %s165
    %s183 = sphi 0, %s183
    %s185 = sphi 0, %s183
    %s186 = sphi 0, %s185
    %s200 = sphi 0, %s186
    %s204 = sphi 0, %s204
    %s206 = sphi 0, %s204
    %s207 = sphi 0, %s206
    %s221 = sphi 0, %s207
    %s225 = sphi 0, %s225
    %s227 = sphi 0, %s225
    %s228 = sphi 0, %s227
    %s242 = sphi 0, %s228
    %s246 = sphi 0, %s246
    %s248 = sphi 0, %s246
    %s249 = sphi 0, %s248
    %s263 = sphi 0, %s249
    %s267 = sphi 0, %s267
    %s269 = sphi 0, %s267
    %s270 = sphi 0, %s269
    %s284 = sphi 0, %s270
    %s290 = sphi 0, %s292
    %s293 = sphi 0, %s290
    %s294 = sphi 0, %s293
    %s310 = sphi 0, %s294
  $region4: #{_lambda_.9} parent=0 // loop_header_branch
    %21 = sbr.rel (%p19) target = $region8
  $region5: #{_lambda_.9} parent=0 // loop_body
    %s23 = ssub.s32 %s18, 1
    %s24 = ssub.s32 %s18, 2
    %s25 = sadd.s32 %s18, 1
    %s26 = ssub.s32 %s18, %s25
    %p27 = scmp.eq.s32.totalorder %s26, 0
    %s29 = sadd.s32 %s28, 1
    %s30 = scalar_select %p27, %s28, %s29
    %p33 = pneg %p27
    %p34 = scmp.eq.s32.totalorder %s18, 1
    %p35 = por %p33, %p34
    %p36 = scmp.ne.s32.totalorder %s28, %s31
    %p37 = scmp.eq.s32.totalorder %s18, 0
    %p38 = por %p36, %p37
    %p39 = scmp.ne.s32.totalorder %s28, %s31
    %p40 = scmp.eq.s32.totalorder %s23, 1
    %p41 = por %p39, %p40
    %p42 = scmp.ne.s32.totalorder %s31, %s32
    %p43 = scmp.eq.s32.totalorder %s23, 0
    %p44 = por %p42, %p43
    %p45 = scmp.ne.s32.totalorder %s31, %s32
    %p46 = scmp.eq.s32.totalorder %s24, 1
    %p47 = por %p45, %p46
    %p49 = scmp.ne.s32.totalorder %s32, %s48
    %p50 = scmp.eq.s32.totalorder %s24, 0
    %p51 = por %p49, %p50
    %s52 = ssub.s32 %s18, %s25
    %p53 = scmp.eq.s32.totalorder %s52, 0
    %s55 = sadd.s32 %s54, 1
    %s56 = scalar_select %p53, %s54, %s55
    %p59 = pneg %p53
    %p60 = scmp.eq.s32.totalorder %s18, 1
    %p61 = por %p59, %p60
    %p62 = scmp.ne.s32.totalorder %s54, %s57
    %p63 = scmp.eq.s32.totalorder %s18, 0
    %p64 = por %p62, %p63
    %p65 = scmp.ne.s32.totalorder %s54, %s57
    %p66 = scmp.eq.s32.totalorder %s23, 1
    %p67 = por %p65, %p66
    %p68 = scmp.ne.s32.totalorder %s57, %s58
    %p69 = scmp.eq.s32.totalorder %s23, 0
    %p70 = por %p68, %p69
    %p71 = scmp.ne.s32.totalorder %s57, %s58
    %p72 = scmp.eq.s32.totalorder %s24, 1
    %p73 = por %p71, %p72
    %p75 = scmp.ne.s32.totalorder %s58, %s74
    %p76 = scmp.eq.s32.totalorder %s24, 0
    %p77 = por %p75, %p76
    %s79 = sadd.s32 %s78, 1
    %p82 = scmp.eq.s32.totalorder %s18, 1
    %p83 = scmp.ne.s32.totalorder %s78, %s80
    %p84 = scmp.eq.s32.totalorder %s18, 0
    %p85 = por %p83, %p84
    %p86 = scmp.ne.s32.totalorder %s78, %s80
    %p87 = scmp.eq.s32.totalorder %s23, 1
    %p88 = por %p86, %p87
    %p89 = scmp.ne.s32.totalorder %s80, %s81
    %p90 = scmp.eq.s32.totalorder %s23, 0
    %p91 = por %p89, %p90
    %p92 = scmp.ne.s32.totalorder %s80, %s81
    %p93 = scmp.eq.s32.totalorder %s24, 1
    %p94 = por %p92, %p93
    %p96 = scmp.ne.s32.totalorder %s81, %s95
    %p97 = scmp.eq.s32.totalorder %s24, 0
    %p98 = por %p96, %p97
    %s100 = sadd.s32 %s99, 1
    %p103 = scmp.eq.s32.totalorder %s18, 1
    %p104 = scmp.ne.s32.totalorder %s99, %s101
    %p105 = scmp.eq.s32.totalorder %s18, 0
    %p106 = por %p104, %p105
    %p107 = scmp.ne.s32.totalorder %s99, %s101
    %p108 = scmp.eq.s32.totalorder %s23, 1
    %p109 = por %p107, %p108
    %p110 = scmp.ne.s32.totalorder %s101, %s102
    %p111 = scmp.eq.s32.totalorder %s23, 0
    %p112 = por %p110, %p111
    %p113 = scmp.ne.s32.totalorder %s101, %s102
    %p114 = scmp.eq.s32.totalorder %s24, 1
    %p115 = por %p113, %p114
    %p117 = scmp.ne.s32.totalorder %s102, %s116
    %p118 = scmp.eq.s32.totalorder %s24, 0
    %p119 = por %p117, %p118
    %s121 = sadd.s32 %s120, 1
    %p124 = scmp.eq.s32.totalorder %s18, 1
    %p125 = scmp.ne.s32.totalorder %s120, %s122
    %p126 = scmp.eq.s32.totalorder %s18, 0
    %p127 = por %p125, %p126
    %p128 = scmp.ne.s32.totalorder %s120, %s122
    %p129 = scmp.eq.s32.totalorder %s23, 1
    %p130 = por %p128, %p129
    %p131 = scmp.ne.s32.totalorder %s122, %s123
    %p132 = scmp.eq.s32.totalorder %s23, 0
    %p133 = por %p131, %p132
    %p134 = scmp.ne.s32.totalorder %s122, %s123
    %p135 = scmp.eq.s32.totalorder %s24, 1
    %p136 = por %p134, %p135
    %p138 = scmp.ne.s32.totalorder %s123, %s137
    %p139 = scmp.eq.s32.totalorder %s24, 0
    %p140 = por %p138, %p139
    %s142 = sadd.s32 %s141, 1
    %p145 = scmp.eq.s32.totalorder %s18, 1
    %p146 = scmp.ne.s32.totalorder %s141, %s143
    %p147 = scmp.eq.s32.totalorder %s18, 0
    %p148 = por %p146, %p147
    %p149 = scmp.ne.s32.totalorder %s141, %s143
    %p150 = scmp.eq.s32.totalorder %s23, 1
    %p151 = por %p149, %p150
    %p152 = scmp.ne.s32.totalorder %s143, %s144
    %p153 = scmp.eq.s32.totalorder %s23, 0
    %p154 = por %p152, %p153
    %p155 = scmp.ne.s32.totalorder %s143, %s144
    %p156 = scmp.eq.s32.totalorder %s24, 1
    %p157 = por %p155, %p156
    %p159 = scmp.ne.s32.totalorder %s144, %s158
    %p160 = scmp.eq.s32.totalorder %s24, 0
    %p161 = por %p159, %p160
    %s163 = sadd.s32 %s162, 1
    %p166 = scmp.eq.s32.totalorder %s18, 1
    %p167 = scmp.ne.s32.totalorder %s162, %s164
    %p168 = scmp.eq.s32.totalorder %s18, 0
    %p169 = por %p167, %p168
    %p170 = scmp.ne.s32.totalorder %s162, %s164
    %p171 = scmp.eq.s32.totalorder %s23, 1
    %p172 = por %p170, %p171
    %p173 = scmp.ne.s32.totalorder %s164, %s165
    %p174 = scmp.eq.s32.totalorder %s23, 0
    %p175 = por %p173, %p174
    %p176 = scmp.ne.s32.totalorder %s164, %s165
    %p177 = scmp.eq.s32.totalorder %s24, 1
    %p178 = por %p176, %p177
    %p180 = scmp.ne.s32.totalorder %s165, %s179
    %p181 = scmp.eq.s32.totalorder %s24, 0
    %p182 = por %p180, %p181
    %s184 = sadd.s32 %s183, 1
    %p187 = scmp.eq.s32.totalorder %s18, 1
    %p188 = scmp.ne.s32.totalorder %s183, %s185
    %p189 = scmp.eq.s32.totalorder %s18, 0
    %p190 = por %p188, %p189
    %p191 = scmp.ne.s32.totalorder %s183, %s185
    %p192 = scmp.eq.s32.totalorder %s23, 1
    %p193 = por %p191, %p192
    %p194 = scmp.ne.s32.totalorder %s185, %s186
    %p195 = scmp.eq.s32.totalorder %s23, 0
    %p196 = por %p194, %p195
    %p197 = scmp.ne.s32.totalorder %s185, %s186
    %p198 = scmp.eq.s32.totalorder %s24, 1
    %p199 = por %p197, %p198
    %p201 = scmp.ne.s32.totalorder %s186, %s200
    %p202 = scmp.eq.s32.totalorder %s24, 0
    %p203 = por %p201, %p202
    %s205 = sadd.s32 %s204, 1
    %p208 = scmp.eq.s32.totalorder %s18, 1
    %p209 = scmp.ne.s32.totalorder %s204, %s206
    %p210 = scmp.eq.s32.totalorder %s18, 0
    %p211 = por %p209, %p210
    %p212 = scmp.ne.s32.totalorder %s204, %s206
    %p213 = scmp.eq.s32.totalorder %s23, 1
    %p214 = por %p212, %p213
    %p215 = scmp.ne.s32.totalorder %s206, %s207
    %p216 = scmp.eq.s32.totalorder %s23, 0
    %p217 = por %p215, %p216
    %p218 = scmp.ne.s32.totalorder %s206, %s207
    %p219 = scmp.eq.s32.totalorder %s24, 1
    %p220 = por %p218, %p219
    %p222 = scmp.ne.s32.totalorder %s207, %s221
    %p223 = scmp.eq.s32.totalorder %s24, 0
    %p224 = por %p222, %p223
    %s226 = sadd.s32 %s225, 1
    %p229 = scmp.eq.s32.totalorder %s18, 1
    %p230 = scmp.ne.s32.totalorder %s225, %s227
    %p231 = scmp.eq.s32.totalorder %s18, 0
    %p232 = por %p230, %p231
    %p233 = scmp.ne.s32.totalorder %s225, %s227
    %p234 = scmp.eq.s32.totalorder %s23, 1
    %p235 = por %p233, %p234
    %p236 = scmp.ne.s32.totalorder %s227, %s228
    %p237 = scmp.eq.s32.totalorder %s23, 0
    %p238 = por %p236, %p237
    %p239 = scmp.ne.s32.totalorder %s227, %s228
    %p240 = scmp.eq.s32.totalorder %s24, 1
    %p241 = por %p239, %p240
    %p243 = scmp.ne.s32.totalorder %s228, %s242
    %p244 = scmp.eq.s32.totalorder %s24, 0
    %p245 = por %p243, %p244
    %s247 = sadd.s32 %s246, 1
    %p250 = scmp.eq.s32.totalorder %s18, 1
    %p251 = scmp.ne.s32.totalorder %s246, %s248
    %p252 = scmp.eq.s32.totalorder %s18, 0
    %p253 = por %p251, %p252
    %p254 = scmp.ne.s32.totalorder %s246, %s248
    %p255 = scmp.eq.s32.totalorder %s23, 1
    %p256 = por %p254, %p255
    %p257 = scmp.ne.s32.totalorder %s248, %s249
    %p258 = scmp.eq.s32.totalorder %s23, 0
    %p259 = por %p257, %p258
    %p260 = scmp.ne.s32.totalorder %s248, %s249
    %p261 = scmp.eq.s32.totalorder %s24, 1
    %p262 = por %p260, %p261
    %p264 = scmp.ne.s32.totalorder %s249, %s263
    %p265 = scmp.eq.s32.totalorder %s24, 0
    %p266 = por %p264, %p265
    %s268 = sadd.s32 %s267, 1
    %p271 = scmp.eq.s32.totalorder %s18, 1
    %p272 = scmp.ne.s32.totalorder %s267, %s269
    %p273 = scmp.eq.s32.totalorder %s18, 0
    %p274 = por %p272, %p273
    %p275 = scmp.ne.s32.totalorder %s267, %s269
    %p276 = scmp.eq.s32.totalorder %s23, 1
    %p277 = por %p275, %p276
    %p278 = scmp.ne.s32.totalorder %s269, %s270
    %p279 = scmp.eq.s32.totalorder %s23, 0
    %p280 = por %p278, %p279
    %p281 = scmp.ne.s32.totalorder %s269, %s270
    %p282 = scmp.eq.s32.totalorder %s24, 1
    %p283 = por %p281, %p282
    %p285 = scmp.ne.s32.totalorder %s270, %s284
    %p286 = scmp.eq.s32.totalorder %s24, 0
    %p287 = por %p285, %p286
    %s288 = ssub.s32 %s18, %s25
    %p289 = scmp.eq.s32.totalorder %s288, 0
    %s291 = sadd.s32 %s290, 1
    %s292 = scalar_select %p289, %s290, %s291
    %p295 = pneg %p289
    %p296 = scmp.eq.s32.totalorder %s18, 1
    %p297 = por %p295, %p296
    %p298 = scmp.ne.s32.totalorder %s290, %s293
    %p299 = scmp.eq.s32.totalorder %s18, 0
    %p300 = por %p298, %p299
    %p301 = scmp.ne.s32.totalorder %s290, %s293
    %p302 = scmp.eq.s32.totalorder %s23, 1
    %p303 = por %p301, %p302
    %p304 = scmp.ne.s32.totalorder %s293, %s294
    %p305 = scmp.eq.s32.totalorder %s23, 0
    %p306 = por %p304, %p305
    %p307 = scmp.ne.s32.totalorder %s293, %s294
    %p308 = scmp.eq.s32.totalorder %s24, 1
    %p309 = por %p307, %p308
    %p311 = scmp.ne.s32.totalorder %s294, %s310
    %p312 = scmp.eq.s32.totalorder %s24, 0
    %p313 = por %p311, %p312
    %p314 = scmp.le.s32.totalorder 1, %s18
    %p315 = scmp.lt.s32.totalorder %s18, 3
    %p316 = pnand %p314, %p315
    %p317 = pneg %p316
    // Predicated region
    $region9: #{_lambda_.9} parent=5 // pred_check
      _
    $region10: #{_lambda_.9} parent=5 // pred_check_branch
      %319 = sbr.rel (%p316) target = $region12
    $region11: #{_lambda_.9} parent=5 // pred_region
      %s320 = ssub.s32 %s18, 1
      // Predicated region
      $region13: #{_lambda_.9} parent=11 // pred_check
        %p321 = pneg %p91
      $region14: #{_lambda_.9} parent=11 // pred_check_branch
        %323 = sbr.rel (%p321) target = $region16
      $region15: #{_lambda_.9} parent=11 // pred_region
        _
      $region16: #{_lambda_.9} parent=11 // pred_fallthru
        _
      // Predicated region
      $region17: #{_lambda_.9} parent=11 // pred_check
        %p324 = pneg %p112
      $region18: #{_lambda_.9} parent=11 // pred_check_branch
        %326 = sbr.rel (%p324) target = $region20
      $region19: #{_lambda_.9} parent=11 // pred_region
        _
      $region20: #{_lambda_.9} parent=11 // pred_fallthru
        _
      // Predicated region
      $region21: #{_lambda_.9} parent=11 // pred_check
        %p327 = pneg %p133
      $region22: #{_lambda_.9} parent=11 // pred_check_branch
        %329 = sbr.rel (%p327) target = $region24
      $region23: #{_lambda_.9} parent=11 // pred_region
        _
      $region24: #{_lambda_.9} parent=11 // pred_fallthru
        _
      // Predicated region
      $region25: #{_lambda_.9} parent=11 // pred_check
        %p330 = pneg %p154
      $region26: #{_lambda_.9} parent=11 // pred_check_branch
        %332 = sbr.rel (%p330) target = $region28
      $region27: #{_lambda_.9} parent=11 // pred_region
        _
      $region28: #{_lambda_.9} parent=11 // pred_fallthru
        _
      // Predicated region
      $region29: #{_lambda_.9} parent=11 // pred_check
        %p333 = pneg %p175
      $region30: #{_lambda_.9} parent=11 // pred_check_branch
        %335 = sbr.rel (%p333) target = $region32
      $region31: #{_lambda_.9} parent=11 // pred_region
        _
      $region32: #{_lambda_.9} parent=11 // pred_fallthru
        _
      // Predicated region
      $region33: #{_lambda_.9} parent=11 // pred_check
        %p336 = pneg %p196
      $region34: #{_lambda_.9} parent=11 // pred_check_branch
        %338 = sbr.rel (%p336) target = $region36
      $region35: #{_lambda_.9} parent=11 // pred_region
        _
      $region36: #{_lambda_.9} parent=11 // pred_fallthru
        _
      // Predicated region
      $region37: #{_lambda_.9} parent=11 // pred_check
        %p339 = pneg %p217
      $region38: #{_lambda_.9} parent=11 // pred_check_branch
        %341 = sbr.rel (%p339) target = $region40
      $region39: #{_lambda_.9} parent=11 // pred_region
        _
      $region40: #{_lambda_.9} parent=11 // pred_fallthru
        _
      // Predicated region
      $region41: #{_lambda_.9} parent=11 // pred_check
        %p342 = pneg %p238
      $region42: #{_lambda_.9} parent=11 // pred_check_branch
        %344 = sbr.rel (%p342) target = $region44
      $region43: #{_lambda_.9} parent=11 // pred_region
        _
      $region44: #{_lambda_.9} parent=11 // pred_fallthru
        _
      // Predicated region
      $region45: #{_lambda_.9} parent=11 // pred_check
        %p345 = pneg %p259
      $region46: #{_lambda_.9} parent=11 // pred_check_branch
        %347 = sbr.rel (%p345) target = $region48
      $region47: #{_lambda_.9} parent=11 // pred_region
        _
      $region48: #{_lambda_.9} parent=11 // pred_fallthru
        _
      // Predicated region
      $region49: #{_lambda_.9} parent=11 // pred_check
        %p348 = pneg %p280
      $region50: #{_lambda_.9} parent=11 // pred_check_branch
        %350 = sbr.rel (%p348) target = $region52
      $region51: #{_lambda_.9} parent=11 // pred_region
        _
      $region52: #{_lambda_.9} parent=11 // pred_fallthru
        _
    $region12: #{_lambda_.9} parent=5 // pred_fallthru
      _
    %p351 = scmp.lt.s32.totalorder %s18, 2
    // Predicated region
    $region53: #{_lambda_.9} parent=5 // pred_check
      %p352 = pneg %p351
    $region54: #{_lambda_.9} parent=5 // pred_check_branch
      %354 = sbr.rel (%p352) target = $region56
    $region55: #{_lambda_.9} parent=5 // pred_region
      // Predicated region
      $region57: #{_lambda_.9} parent=55 // pred_check
        %p355 = pneg %p38
      $region58: #{_lambda_.9} parent=55 // pred_check_branch
        %357 = sbr.rel (%p355) target = $region60
      $region59: #{_lambda_.9} parent=55 // pred_region
        %p358 = scmp.lt.s32.totalorder %s18, 1
        %s359 = scalar_select %p358, %s18, 1
        %s360 = smul.addr %s359, 2
        %s361 = scalar_lea.vmem %s0, %s360
      $region60: #{_lambda_.9} parent=55 // pred_fallthru
        _
      // Predicated region
      $region61: #{_lambda_.9} parent=55 // pred_check
        %p362 = pneg %p64
      $region62: #{_lambda_.9} parent=55 // pred_check_branch
        %364 = sbr.rel (%p362) target = $region64
      $region63: #{_lambda_.9} parent=55 // pred_region
        %s365 = smul.u32 3, %s18
        %p366 = scmp.lt.s32.totalorder %s365, 5
        %s367 = scalar_select %p366, %s365, 5
        %s368 = smul.addr %s367, 4
        %s369 = scalar_lea.vmem %s1, %s368
        %s370 = smul.u32 3, %s18
      $region64: #{_lambda_.9} parent=55 // pred_fallthru
        _
    $region56: #{_lambda_.9} parent=5 // pred_fallthru
      _
    %p371 = scmp.le.s32.totalorder 1, %s18
    %p372 = scmp.lt.s32.totalorder %s18, 3
    %p373 = pnand %p371, %p372
    %p374 = pneg %p373
    // Predicated region
    $region65: #{_lambda_.9} parent=5 // pred_check
      _
    $region66: #{_lambda_.9} parent=5 // pred_check_branch
      %376 = sbr.rel (%p373) target = $region68
    $region67: #{_lambda_.9} parent=5 // pred_region
      %s377 = ssub.s32 %s18, 1
      %p378 = scmp.lt.s32.totalorder %s23, 1
      %s379 = scalar_select %p378, %s23, 1
      %s380 = smul.addr %s379, 2
      %s381 = scalar_lea.vmem %s0, %s380
      %p382 = pneg %p44
      %p383 = pneg %p41
      %s384 = smul.u32 3, %s23
      %p385 = scmp.lt.s32.totalorder %s384, 5
      %s386 = scalar_select %p385, %s384, 5
      %s387 = smul.addr %s386, 4
      %s388 = scalar_lea.vmem %s1, %s387
      %p389 = pneg %p70
      %p390 = pneg %p67
      %p391 = pneg %p91
      %p392 = pneg %p88
      %p393 = pneg %p112
      %p394 = pneg %p109
      %p395 = pneg %p133
      %p396 = pneg %p130
      %p397 = pneg %p154
      %p398 = pneg %p151
      %p399 = pneg %p175
      %p400 = pneg %p172
      %p401 = pneg %p196
      %p402 = pneg %p193
      %p403 = pneg %p217
      %p404 = pneg %p214
      %p405 = pneg %p238
      %p406 = pneg %p235
      %p407 = pneg %p259
      %p408 = pneg %p256
      %p409 = pneg %p280
      %p410 = pneg %p277
      %p411 = pneg %p306
      %p412 = pneg %p303
      %s413 = smul.u32 3, %s23
      %p414 = scmp.lt.s32.totalorder %s413, 5
      %s415 = scalar_select %p414, %s413, 5
      %s416 = smul.addr %s415, 4
      %s417 = scalar_lea.vmem %s12, %s416
      %p418 = scmp.lt.s32.totalorder %s23, 1
      %s419 = scalar_select %p418, %s23, 1
      %s420 = smul.addr %s419, 2
      %s421 = scalar_lea.vmem %s0, %s420
      %s422 = smul.u32 3, %s23
      %p423 = scmp.lt.s32.totalorder %s422, 5
      %s424 = scalar_select %p423, %s422, 5
      %s425 = smul.addr %s424, 4
      %s426 = scalar_lea.vmem %s1, %s425
      %s427 = smul.u32 3, %s23
      %s428 = smul.u32 3, %s23
      %p429 = scmp.lt.s32.totalorder %s428, 5
      %s430 = scalar_select %p429, %s428, 5
      %s431 = smul.addr %s430, 4
      %s432 = scalar_lea.vmem %s12, %s431
      %s433 = smul.u32 3, %s23
      %v435 = vld [vmem:[%s11] sm:$0x7]
      %v436 = vld [vmem:[%s421] sm:$0x3]
      %v437 = vld [vmem:[%s2] sm:$0xff]
      %v438 = vld [vmem:[%s2 + $0x8] sm:$0xf]
      %v439 = vld [vmem:[%s2 + $0xc] sm:$0xff]
      %v440 = vld [vmem:[%s2 + $0x14] sm:$0xf]
      %v441 = vld [vmem:[%s2 + $0x18] sm:$0xff]
      %v442 = vld [vmem:[%s2 + $0x20] sm:$0xf]
      %v443 = vld [vmem:[%s2 + $0x24] sm:$0xff]
      %v444 = vld [vmem:[%s2 + $0x2c] sm:$0xf]
      %v445 = vld [vmem:[%s2 + $0x30] sm:$0xff]
      %v446 = vld [vmem:[%s2 + $0x38] sm:$0xf]
      %v447 = vld [vmem:[%s2 + $0x3c] sm:$0xff]
      %v448 = vld [vmem:[%s2 + $0x44] sm:$0xf]
      %v449 = vld [vmem:[%s2 + $0x48] sm:$0xff]
      %v450 = vld [vmem:[%s2 + $0x50] sm:$0xf]
      %v451 = vld [vmem:[%s2 + $0x54] sm:$0xff]
      %v452 = vld [vmem:[%s2 + $0x5c] sm:$0xf]
      %v453 = vld [vmem:[%s2 + $0x60] sm:$0xff]
      %v454 = vld [vmem:[%s2 + $0x68] sm:$0xf]
      %v455 = vld [vmem:[%s2 + $0x6c] sm:$0xff]
      %v456 = vld [vmem:[%s2 + $0x74] sm:$0xf]
      %v457 = vld [vmem:[%s2 + $0x78] sm:$0xff]
      %v458 = vld [vmem:[%s2 + $0x80] sm:$0xf]
      %v459 = vld [vmem:[%s2 + $0x84] sm:$0xff]
      %v460 = vld [vmem:[%s2 + $0x8c] sm:$0xf]
      %v461 = vld [vmem:[%s2 + $0x90] sm:$0xff]
      %v462 = vld [vmem:[%s2 + $0x98] sm:$0xf]
      %v463 = vld [vmem:[%s2 + $0x9c] sm:$0xff]
      %v464 = vld [vmem:[%s2 + $0xa4] sm:$0xf]
      %v465 = vld [vmem:[%s2 + $0xa8] sm:$0xff]
      %v466 = vld [vmem:[%s2 + $0xb0] sm:$0xf]
      %v467 = vld [vmem:[%s2 + $0xb4] sm:$0xff]
      %v468 = vld [vmem:[%s2 + $0xbc] sm:$0xf]
      %v501 = vunpack.c.l.b16 %v437
      %v502 = vunpack.c.h.b16 %v437
      %v503 = vunpack.c.l.b16 %v438
      %v504 = vunpack.c.l.b16 %v439
      %v505 = vunpack.c.h.b16 %v439
      %v506 = vunpack.c.l.b16 %v440
      %v507 = vunpack.c.l.b16 %v441
      %v508 = vunpack.c.h.b16 %v441
      %v509 = vunpack.c.l.b16 %v442
      %v510 = vunpack.c.l.b16 %v443
      %v511 = vunpack.c.h.b16 %v443
      %v512 = vunpack.c.l.b16 %v444
      %v513 = vunpack.c.l.b16 %v445
      %v514 = vunpack.c.h.b16 %v445
      %v515 = vunpack.c.l.b16 %v446
      %v516 = vunpack.c.l.b16 %v447
      %v517 = vunpack.c.h.b16 %v447
      %v518 = vunpack.c.l.b16 %v448
      %v519 = vunpack.c.l.b16 %v449
      %v520 = vunpack.c.h.b16 %v449
      %v521 = vunpack.c.l.b16 %v450
      %v522 = vunpack.c.l.b16 %v451
      %v523 = vunpack.c.h.b16 %v451
      %v524 = vunpack.c.l.b16 %v452
      %v525 = vunpack.c.l.b16 %v453
      %v526 = vunpack.c.h.b16 %v453
      %v527 = vunpack.c.l.b16 %v454
      %v528 = vunpack.c.l.b16 %v455
      %v529 = vunpack.c.h.b16 %v455
      %v530 = vunpack.c.l.b16 %v456
      %v531 = vunpack.c.l.b16 %v457
      %v532 = vunpack.c.h.b16 %v457
      %v533 = vunpack.c.l.b16 %v458
      %v534 = vunpack.c.l.b16 %v459
      %v535 = vunpack.c.h.b16 %v459
      %v536 = vunpack.c.l.b16 %v460
      %v537 = vunpack.c.l.b16 %v461
      %v538 = vunpack.c.h.b16 %v461
      %v539 = vunpack.c.l.b16 %v462
      %v540 = vunpack.c.l.b16 %v463
      %v541 = vunpack.c.h.b16 %v463
      %v542 = vunpack.c.l.b16 %v464
      %v543 = vunpack.c.l.b16 %v465
      %v544 = vunpack.c.h.b16 %v465
      %v545 = vunpack.c.l.b16 %v466
      %v546 = vunpack.c.l.b16 %v467
      %v547 = vunpack.c.h.b16 %v467
      %v548 = vunpack.c.l.b16 %v468
      %v549 = vpack.c.b16 %v504, %v501
      %v550 = vpack.c.b16 %v505, %v502
      %v551 = vpack.c.b16 %v506, %v503
      %v552 = vpack.c.b16 %v510, %v507
      %v553 = vpack.c.b16 %v511, %v508
      %v554 = vpack.c.b16 %v512, %v509
      %v555 = vpack.c.b16 %v516, %v513
      %v556 = vpack.c.b16 %v517, %v514
      %v557 = vpack.c.b16 %v518, %v515
      %v558 = vpack.c.b16 %v522, %v519
      %v559 = vpack.c.b16 %v523, %v520
      %v560 = vpack.c.b16 %v524, %v521
      %v561 = vpack.c.b16 %v528, %v525
      %v562 = vpack.c.b16 %v529, %v526
      %v563 = vpack.c.b16 %v530, %v527
      %v564 = vpack.c.b16 %v534, %v531
      %v565 = vpack.c.b16 %v535, %v532
      %v566 = vpack.c.b16 %v536, %v533
      %v567 = vpack.c.b16 %v540, %v537
      %v568 = vpack.c.b16 %v541, %v538
      %v569 = vpack.c.b16 %v542, %v539
      %v570 = vpack.c.b16 %v546, %v543
      %v571 = vpack.c.b16 %v547, %v544
      %v572 = vpack.c.b16 %v548, %v545
      %597 = vmatprep.subr.bf16.mxu0 %v550
      %598 = vmatpush1.bf16.msra.mxu0 %v549
      %599 = vmatprep.subr.bf16.mxu0 %v553
      %600 = vmatpush1.bf16.msra.mxu0 %v552
      %601 = vmatprep.subr.bf16.mxu0 %v556
      %602 = vmatpush1.bf16.msra.mxu0 %v555
      %603 = vmatprep.subr.bf16.mxu0 %v559
      %604 = vmatpush1.bf16.msra.mxu0 %v558
      %605 = vmatprep.subr.bf16.mxu0 %v562
      %606 = vmatpush1.bf16.msra.mxu0 %v561
      %607 = vmatprep.subr.bf16.mxu0 %v565
      %608 = vmatpush1.bf16.msra.mxu0 %v564
      %609 = vmatprep.subr.bf16.mxu0 %v568
      %610 = vmatpush1.bf16.msra.mxu0 %v567
      %611 = vmatprep.subr.bf16.mxu0 %v571
      %612 = vmatpush1.bf16.msra.mxu0 %v570
      %613 = vmatprep.subr.bf16.mxu0 0
      %614 = vmatpush1.bf16.msra.mxu0 0
      %615 = vmatprep.subr.bf16.mxu0 0
      %616 = vmatpush1.bf16.msra.mxu0 0
      %617 = vmatprep.subr.bf16.mxu0 0
      %618 = vmatpush1.bf16.msra.mxu0 0
      %619 = vmatprep.subr.bf16.mxu0 0
      %620 = vmatpush1.bf16.msra.mxu0 0
      %621 = vmatprep.subr.bf16.mxu0 0
      %622 = vmatpush1.bf16.msra.mxu0 0
      %623 = vmatprep.subr.bf16.mxu0 0
      %624 = vmatpush1.bf16.msra.mxu0 0
      %625 = vmatprep.subr.bf16.mxu0 0
      %626 = vmatpush1.bf16.msra.mxu0 0
      %627 = vmatprep.subr.bf16.mxu0 0
      %628 = vmatpush1.bf16.msra.mxu0 0
      %629 = vmatprep.mubr.bf16.mxu0 0
      %630 = vmatmul.mubr.bf16.gmra.mrb[0].mxu0 %v436
      %v631 = vpop.f32.mrb[0].mxu0
      %v632 = vadd.f32 0.0, %v631
      %v633 = vpop.f32.mrb[0].mxu0
      %v634 = vadd.f32 0.0, %v633
      %v635 = vpop.f32.mrb[0].mxu0
      %v636 = vpop.f32.mrb[0].mxu0
      %637 = vdwg.mxu0
      %638 = vmatprep.subr.bf16.mxu0 0
      %639 = vmatpush1.bf16.msra.mxu0 %v551
      %640 = vmatprep.subr.bf16.mxu0 0
      %641 = vmatpush1.bf16.msra.mxu0 %v554
      %642 = vmatprep.subr.bf16.mxu0 0
      %643 = vmatpush1.bf16.msra.mxu0 %v557
      %644 = vmatprep.subr.bf16.mxu0 0
      %645 = vmatpush1.bf16.msra.mxu0 %v560
      %646 = vmatprep.subr.bf16.mxu0 0
      %647 = vmatpush1.bf16.msra.mxu0 %v563
      %648 = vmatprep.subr.bf16.mxu0 0
      %649 = vmatpush1.bf16.msra.mxu0 %v566
      %650 = vmatprep.subr.bf16.mxu0 0
      %651 = vmatpush1.bf16.msra.mxu0 %v569
      %652 = vmatprep.subr.bf16.mxu0 0
      %653 = vmatpush1.bf16.msra.mxu0 %v572
      %654 = vmatprep.subr.bf16.mxu0 0
      %655 = vmatpush1.bf16.msra.mxu0 0
      %656 = vmatprep.subr.bf16.mxu0 0
      %657 = vmatpush1.bf16.msra.mxu0 0
      %658 = vmatprep.subr.bf16.mxu0 0
      %659 = vmatpush1.bf16.msra.mxu0 0
      %660 = vmatprep.subr.bf16.mxu0 0
      %661 = vmatpush1.bf16.msra.mxu0 0
      %662 = vmatprep.subr.bf16.mxu0 0
      %663 = vmatpush1.bf16.msra.mxu0 0
      %664 = vmatprep.subr.bf16.mxu0 0
      %665 = vmatpush1.bf16.msra.mxu0 0
      %666 = vmatprep.subr.bf16.mxu0 0
      %667 = vmatpush1.bf16.msra.mxu0 0
      %668 = vmatprep.subr.bf16.mxu0 0
      %669 = vmatpush1.bf16.msra.mxu0 0
      %670 = vmatprep.mubr.bf16.mxu0 0
      %671 = vmatmul.mubr.bf16.gmra.mrb[0].mxu0 %v436
      %v672 = vpop.f32.mrb[0].mxu0
      %v673 = vadd.f32 0.0, %v672
      %v674 = vpop.f32.mrb[0].mxu0
      %v675 = vpop.f32.mrb[0].mxu0
      %v676 = vpop.f32.mrb[0].mxu0
      %677 = vdwg.mxu0
      %v678 = vld [vmem:[%s3] sm:$0x3]
      %v679 = vld [vmem:[%s4] sm:$0xf]
      %680 = vrot.lane.b32.xlu0 %v632, 19
      %v681 = vpop.permute.xlu0 %680
      %682 = vrot.lane.b32.xlu0 %v634, 19
      %v683 = vpop.permute.xlu0 %682
      %684 = vrot.lane.b32.xlu0 %v673, 19
      %v685 = vpop.permute.xlu0 %684
      %v686 = vlaneseq
      %v687 = vand.u32 %v686, 127
      %vm688 = vcmp.lt.s32.totalorder %v687, 19
      %v689 = vsel %vm688, %v683, %v685
      %v690 = vsel %vm688, %v681, %v683
      %v691 = vsel %vm688, %v685, %v681
      %692 = vrot.lane.b32.xlu0 %v632, 18
      %v693 = vpop.permute.xlu0 %692
      %694 = vrot.lane.b32.xlu0 %v634, 18
      %v695 = vpop.permute.xlu0 %694
      %696 = vrot.lane.b32.xlu0 %v673, 18
      %v697 = vpop.permute.xlu0 %696
      %vm698 = vcmp.lt.s32.totalorder %v687, 18
      %v699 = vsel %vm698, %v695, %v697
      %v700 = vsel %vm698, %v693, %v695
      %v701 = vsel %vm698, %v697, %v693
      %702 = vrot.lane.b32.xlu0 %v632, 17
      %v703 = vpop.permute.xlu0 %702
      %704 = vrot.lane.b32.xlu0 %v634, 17
      %v705 = vpop.permute.xlu0 %704
      %706 = vrot.lane.b32.xlu0 %v673, 17
      %v707 = vpop.permute.xlu0 %706
      %vm708 = vcmp.lt.s32.totalorder %v687, 17
      %v709 = vsel %vm708, %v705, %v707
      %v710 = vsel %vm708, %v703, %v705
      %v711 = vsel %vm708, %v707, %v703
      %712 = vrot.lane.b32.xlu0 %v632, 1
      %v713 = vpop.permute.xlu0 %712
      %714 = vrot.lane.b32.xlu0 %v634, 1
      %v715 = vpop.permute.xlu0 %714
      %716 = vrot.lane.b32.xlu0 %v673, 1
      %v717 = vpop.permute.xlu0 %716
      %vm718 = vcmp.lt.s32.totalorder %v687, 1
      %v719 = vsel %vm718, %v715, %v717
      %v720 = vsel %vm718, %v713, %v715
      %v721 = vsel %vm718, %v717, %v713
      %722 = vrot.lane.b32.xlu0 %v632, 127
      %v723 = vpop.permute.xlu0 %722
      %724 = vrot.lane.b32.xlu0 %v634, 127
      %v725 = vpop.permute.xlu0 %724
      %726 = vrot.lane.b32.xlu0 %v673, 127
      %v727 = vpop.permute.xlu0 %726
      %vm728 = vcmp.lt.s32.totalorder %v687, 127
      %v729 = vsel %vm728, %v725, %v727
      %v730 = vsel %vm728, %v723, %v725
      %v731 = vsel %vm728, %v727, %v723
      %732 = vrot.lane.b32.xlu0 %v632, 111
      %v733 = vpop.permute.xlu0 %732
      %734 = vrot.lane.b32.xlu0 %v634, 111
      %v735 = vpop.permute.xlu0 %734
      %736 = vrot.lane.b32.xlu0 %v673, 111
      %v737 = vpop.permute.xlu0 %736
      %vm738 = vcmp.lt.s32.totalorder %v687, 111
      %v739 = vsel %vm738, %v735, %v737
      %v740 = vsel %vm738, %v733, %v735
      %v741 = vsel %vm738, %v737, %v733
      %742 = vrot.lane.b32.xlu0 %v632, 110
      %v743 = vpop.permute.xlu0 %742
      %744 = vrot.lane.b32.xlu0 %v634, 110
      %v745 = vpop.permute.xlu0 %744
      %746 = vrot.lane.b32.xlu0 %v673, 110
      %v747 = vpop.permute.xlu0 %746
      %vm748 = vcmp.lt.s32.totalorder %v687, 110
      %v749 = vsel %vm748, %v745, %v747
      %v750 = vsel %vm748, %v743, %v745
      %v751 = vsel %vm748, %v747, %v743
      %752 = vrot.lane.b32.xlu0 %v632, 109
      %v753 = vpop.permute.xlu0 %752
      %754 = vrot.lane.b32.xlu0 %v634, 109
      %v755 = vpop.permute.xlu0 %754
      %756 = vrot.lane.b32.xlu0 %v673, 109
      %v757 = vpop.permute.xlu0 %756
      %vm758 = vcmp.lt.s32.totalorder %v687, 109
      %v759 = vsel %vm758, %v755, %v757
      %v760 = vsel %vm758, %v753, %v755
      %v761 = vsel %vm758, %v757, %v753
      %v765 = vrot.slane %v701, 4
      %v766 = vrot.slane %v700, 4
      %v767 = vrot.slane %v699, 4
      %v774 = vrot.slane %v721, 4
      %v775 = vrot.slane %v720, 4
      %v776 = vrot.slane %v719, 4
      %v783 = vrot.slane %v730, 4
      %v784 = vrot.slane %v729, 4
      %v785 = vrot.slane %v731, 4
      %v792 = vrot.slane %v750, 4
      %v793 = vrot.slane %v749, 4
      %v794 = vrot.slane %v751, 4
      %vm798 = vcmask 1043456
      %v799 = vsel %vm798, %v691, %v765
      %v800 = vsel %vm798, %v690, %v766
      %v801 = vsel %vm798, %v689, %v767
      %v802 = vsel %vm798, %v711, %v774
      %v803 = vsel %vm798, %v710, %v775
      %v804 = vsel %vm798, %v709, %v776
      %v805 = vsel %vm798, %v632, %v783
      %v806 = vsel %vm798, %v634, %v784
      %v807 = vsel %vm798, %v673, %v785
      %v808 = vsel %vm798, %v740, %v792
      %v809 = vsel %vm798, %v739, %v793
      %v810 = vsel %vm798, %v741, %v794
      %v811 = vpack.c.bf16 %v802, %v799
      %v812 = vpack.c.bf16 %v803, %v800
      %v813 = vpack.c.bf16 %v804, %v801
      %v814 = vpack.c.bf16 %v808, %v805
      %v815 = vpack.c.bf16 %v809, %v806
      %v816 = vpack.c.bf16 %v810, %v807
      %v817 = vpack.c.bf16 %v760, %v760
      %v818 = vpack.c.bf16 %v759, %v759
      %v819 = vpack.c.bf16 %v761, %v761
      %821 = vset.pattern.permute.xlu0 0
      %822 = vperm.xlu0 %821, %v679
      %v823 = vpop.permute.xlu0 %822
      %vm825 = vcmask 293888
      %v827 = vsel %vm825, %v678, 0
      %vm829 = vcmask 1041408
      %v831 = vsel %vm829, %v817, 0
      %v834 = vsel %vm829, %v818, 0
      %v837 = vsel %vm829, %v819, 0
      %839 = vmatprep.subr.bf16.mxu0 %v812
      %840 = vmatpush1.bf16.msra.mxu0 %v811
      %841 = vmatprep.subr.bf16.mxu0 %v815
      %842 = vmatpush1.bf16.msra.mxu0 %v814
      %843 = vmatprep.subr.bf16.mxu0 %v834
      %844 = vmatpush1.bf16.msra.mxu0 %v831
      %845 = vmatprep.subr.bf16.mxu0 0
      %846 = vmatpush1.bf16.msra.mxu0 0
      %847 = vmatprep.subr.bf16.mxu0 0
      %848 = vmatpush1.bf16.msra.mxu0 0
      %849 = vmatprep.subr.bf16.mxu0 0
      %850 = vmatpush1.bf16.msra.mxu0 0
      %851 = vmatprep.subr.bf16.mxu0 0
      %852 = vmatpush1.bf16.msra.mxu0 0
      %853 = vmatprep.subr.bf16.mxu0 0
      %854 = vmatpush1.bf16.msra.mxu0 0
      %855 = vmatprep.subr.bf16.mxu0 0
      %856 = vmatpush1.bf16.msra.mxu0 0
      %857 = vmatprep.subr.bf16.mxu0 0
      %858 = vmatpush1.bf16.msra.mxu0 0
      %859 = vmatprep.subr.bf16.mxu0 0
      %860 = vmatpush1.bf16.msra.mxu0 0
      %861 = vmatprep.subr.bf16.mxu0 0
      %862 = vmatpush1.bf16.msra.mxu0 0
      %863 = vmatprep.subr.bf16.mxu0 0
      %864 = vmatpush1.bf16.msra.mxu0 0
      %865 = vmatprep.subr.bf16.mxu0 0
      %866 = vmatpush1.bf16.msra.mxu0 0
      %867 = vmatprep.subr.bf16.mxu0 0
      %868 = vmatpush1.bf16.msra.mxu0 0
      %869 = vmatprep.subr.bf16.mxu0 0
      %870 = vmatpush1.bf16.msra.mxu0 0
      %871 = vmatprep.mubr.bf16.mxu0 0
      %872 = vmatmul.mubr.bf16.gmra.mrb[0].mxu0 %v827
      %v873 = vpop.f32.mrb[0].mxu0
      %v874 = vadd.f32 %v823, %v873
      %v875 = vpop.f32.mrb[0].mxu0
      %v876 = vadd.f32 %v823, %v875
      %v877 = vpop.f32.mrb[0].mxu0
      %v878 = vpop.f32.mrb[0].mxu0
      %879 = vdwg.mxu0
      %880 = vmatprep.subr.bf16.mxu0 0
      %881 = vmatpush1.bf16.msra.mxu0 %v813
      %882 = vmatprep.subr.bf16.mxu0 0
      %883 = vmatpush1.bf16.msra.mxu0 %v816
      %884 = vmatprep.subr.bf16.mxu0 0
      %885 = vmatpush1.bf16.msra.mxu0 %v837
      %886 = vmatprep.subr.bf16.mxu0 0
      %887 = vmatpush1.bf16.msra.mxu0 0
      %888 = vmatprep.subr.bf16.mxu0 0
      %889 = vmatpush1.bf16.msra.mxu0 0
      %890 = vmatprep.subr.bf16.mxu0 0
      %891 = vmatpush1.bf16.msra.mxu0 0
      %892 = vmatprep.subr.bf16.mxu0 0
      %893 = vmatpush1.bf16.msra.mxu0 0
      %894 = vmatprep.subr.bf16.mxu0 0
      %895 = vmatpush1.bf16.msra.mxu0 0
      %896 = vmatprep.subr.bf16.mxu0 0
      %897 = vmatpush1.bf16.msra.mxu0 0
      %898 = vmatprep.subr.bf16.mxu0 0
      %899 = vmatpush1.bf16.msra.mxu0 0
      %900 = vmatprep.subr.bf16.mxu0 0
      %901 = vmatpush1.bf16.msra.mxu0 0
      %902 = vmatprep.subr.bf16.mxu0 0
      %903 = vmatpush1.bf16.msra.mxu0 0
      %904 = vmatprep.subr.bf16.mxu0 0
      %905 = vmatpush1.bf16.msra.mxu0 0
      %906 = vmatprep.subr.bf16.mxu0 0
      %907 = vmatpush1.bf16.msra.mxu0 0
      %908 = vmatprep.subr.bf16.mxu0 0
      %909 = vmatpush1.bf16.msra.mxu0 0
      %910 = vmatprep.subr.bf16.mxu0 0
      %911 = vmatpush1.bf16.msra.mxu0 0
      %912 = vmatprep.mubr.bf16.mxu0 0
      %913 = vmatmul.mubr.bf16.gmra.mrb[0].mxu0 %v827
      %v914 = vpop.f32.mrb[0].mxu0
      %v915 = vadd.f32 %v823, %v914
      %v916 = vpop.f32.mrb[0].mxu0
      %v917 = vpop.f32.mrb[0].mxu0
      %v918 = vpop.f32.mrb[0].mxu0
      %919 = vdwg.mxu0
      %v920 = vld [vmem:[%s5] sm:$0x3]
      %v921 = vld [vmem:[%s6] sm:$0xf]
      %v922 = vpack.c.bf16 %v874, %v874
      %v923 = vpack.c.bf16 %v876, %v876
      %v924 = vpack.c.bf16 %v915, %v915
      %926 = vset.pattern.permute.xlu0 0
      %927 = vperm.xlu0 %926, %v921
      %v928 = vpop.permute.xlu0 %927
      %vm930 = vcmask 31744
      %v932 = vsel %vm930, %v920, 0
      %v935 = vsel %vm829, %v922, 0
      %v938 = vsel %vm829, %v923, 0
      %v941 = vsel %vm829, %v924, 0
      %943 = vmatprep.subr.bf16.mxu0 %v938
      %944 = vmatpush1.bf16.msra.mxu0 %v935
      %945 = vmatprep.subr.bf16.mxu0 0
      %946 = vmatpush1.bf16.msra.mxu0 0
      %947 = vmatprep.subr.bf16.mxu0 0
      %948 = vmatpush1.bf16.msra.mxu0 0
      %949 = vmatprep.subr.bf16.mxu0 0
      %950 = vmatpush1.bf16.msra.mxu0 0
      %951 = vmatprep.subr.bf16.mxu0 0
      %952 = vmatpush1.bf16.msra.mxu0 0
      %953 = vmatprep.subr.bf16.mxu0 0
      %954 = vmatpush1.bf16.msra.mxu0 0
      %955 = vmatprep.subr.bf16.mxu0 0
      %956 = vmatpush1.bf16.msra.mxu0 0
      %957 = vmatprep.subr.bf16.mxu0 0
      %958 = vmatpush1.bf16.msra.mxu0 0
      %959 = vmatprep.subr.bf16.mxu0 0
      %960 = vmatpush1.bf16.msra.mxu0 0
      %961 = vmatprep.subr.bf16.mxu0 0
      %962 = vmatpush1.bf16.msra.mxu0 0
      %963 = vmatprep.subr.bf16.mxu0 0
      %964 = vmatpush1.bf16.msra.mxu0 0
      %965 = vmatprep.subr.bf16.mxu0 0
      %966 = vmatpush1.bf16.msra.mxu0 0
      %967 = vmatprep.subr.bf16.mxu0 0
      %968 = vmatpush1.bf16.msra.mxu0 0
      %969 = vmatprep.subr.bf16.mxu0 0
      %970 = vmatpush1.bf16.msra.mxu0 0
      %971 = vmatprep.subr.bf16.mxu0 0
      %972 = vmatpush1.bf16.msra.mxu0 0
      %973 = vmatprep.subr.bf16.mxu0 0
      %974 = vmatpush1.bf16.msra.mxu0 0
      %975 = vmatprep.mubr.bf16.mxu0 0
      %976 = vmatmul.mubr.bf16.gmra.mrb[0].mxu0 %v932
      %v977 = vpop.f32.mrb[0].mxu0
      %v978 = vadd.f32 %v928, %v977
      %v979 = vpop.f32.mrb[0].mxu0
      %v980 = vadd.f32 %v928, %v979
      %v981 = vpop.f32.mrb[0].mxu0
      %v982 = vpop.f32.mrb[0].mxu0
      %983 = vdwg.mxu0
      %984 = vmatprep.subr.bf16.mxu0 0
      %985 = vmatpush1.bf16.msra.mxu0 %v941
      %986 = vmatprep.subr.bf16.mxu0 0
      %987 = vmatpush1.bf16.msra.mxu0 0
      %988 = vmatprep.subr.bf16.mxu0 0
      %989 = vmatpush1.bf16.msra.mxu0 0
      %990 = vmatprep.subr.bf16.mxu0 0
      %991 = vmatpush1.bf16.msra.mxu0 0
      %992 = vmatprep.subr.bf16.mxu0 0
      %993 = vmatpush1.bf16.msra.mxu0 0
      %994 = vmatprep.subr.bf16.mxu0 0
      %995 = vmatpush1.bf16.msra.mxu0 0
      %996 = vmatprep.subr.bf16.mxu0 0
      %997 = vmatpush1.bf16.msra.mxu0 0
      %998 = vmatprep.subr.bf16.mxu0 0
      %999 = vmatpush1.bf16.msra.mxu0 0
      %1000 = vmatprep.subr.bf16.mxu0 0
      %1001 = vmatpush1.bf16.msra.mxu0 0
      %1002 = vmatprep.subr.bf16.mxu0 0
      %1003 = vmatpush1.bf16.msra.mxu0 0
      %1004 = vmatprep.subr.bf16.mxu0 0
      %1005 = vmatpush1.bf16.msra.mxu0 0
      %1006 = vmatprep.subr.bf16.mxu0 0
      %1007 = vmatpush1.bf16.msra.mxu0 0
      %1008 = vmatprep.subr.bf16.mxu0 0
      %1009 = vmatpush1.bf16.msra.mxu0 0
      %1010 = vmatprep.subr.bf16.mxu0 0
      %1011 = vmatpush1.bf16.msra.mxu0 0
      %1012 = vmatprep.subr.bf16.mxu0 0
      %1013 = vmatpush1.bf16.msra.mxu0 0
      %1014 = vmatprep.subr.bf16.mxu0 0
      %1015 = vmatpush1.bf16.msra.mxu0 0
      %1016 = vmatprep.mubr.bf16.mxu0 0
      %1017 = vmatmul.mubr.bf16.gmra.mrb[0].mxu0 %v932
      %v1018 = vpop.f32.mrb[0].mxu0
      %v1019 = vadd.f32 %v928, %v1018
      %v1020 = vpop.f32.mrb[0].mxu0
      %v1021 = vpop.f32.mrb[0].mxu0
      %v1022 = vpop.f32.mrb[0].mxu0
      %1023 = vdwg.mxu0
      %v1024 = vmax.f32 %v978, 0.0
      %v1025 = vmax.f32 %v980, 0.0
      %v1026 = vmax.f32 %v1019, 0.0
      %v1027 = vld [vmem:[%s7] sm:$0x3]
      %v1028 = vld [vmem:[%s8] sm:$0xf]
      %v1029 = vpack.c.bf16 %v1024, %v1024
      %v1030 = vpack.c.bf16 %v1025, %v1025
      %v1031 = vpack.c.bf16 %v1026, %v1026
      %1033 = vset.pattern.permute.xlu0 0
      %1034 = vperm.xlu0 %1033, %v1028
      %v1035 = vpop.permute.xlu0 %1034
      %v1038 = vsel %vm930, %v1027, 0
      %v1041 = vsel %vm829, %v1029, 0
      %v1044 = vsel %vm829, %v1030, 0
      %v1047 = vsel %vm829, %v1031, 0
      %1049 = vmatprep.subr.bf16.mxu0 %v1044
      %1050 = vmatpush1.bf16.msra.mxu0 %v1041
      %1051 = vmatprep.subr.bf16.mxu0 0
      %1052 = vmatpush1.bf16.msra.mxu0 0
      %1053 = vmatprep.subr.bf16.mxu0 0
      %1054 = vmatpush1.bf16.msra.mxu0 0
      %1055 = vmatprep.subr.bf16.mxu0 0
      %1056 = vmatpush1.bf16.msra.mxu0 0
      %1057 = vmatprep.subr.bf16.mxu0 0
      %1058 = vmatpush1.bf16.msra.mxu0 0
      %1059 = vmatprep.subr.bf16.mxu0 0
      %1060 = vmatpush1.bf16.msra.mxu0 0
      %1061 = vmatprep.subr.bf16.mxu0 0
      %1062 = vmatpush1.bf16.msra.mxu0 0
      %1063 = vmatprep.subr.bf16.mxu0 0
      %1064 = vmatpush1.bf16.msra.mxu0 0
      %1065 = vmatprep.subr.bf16.mxu0 0
      %1066 = vmatpush1.bf16.msra.mxu0 0
      %1067 = vmatprep.subr.bf16.mxu0 0
      %1068 = vmatpush1.bf16.msra.mxu0 0
      %1069 = vmatprep.subr.bf16.mxu0 0
      %1070 = vmatpush1.bf16.msra.mxu0 0
      %1071 = vmatprep.subr.bf16.mxu0 0
      %1072 = vmatpush1.bf16.msra.mxu0 0
      %1073 = vmatprep.subr.bf16.mxu0 0
      %1074 = vmatpush1.bf16.msra.mxu0 0
      %1075 = vmatprep.subr.bf16.mxu0 0
      %1076 = vmatpush1.bf16.msra.mxu0 0
      %1077 = vmatprep.subr.bf16.mxu0 0
      %1078 = vmatpush1.bf16.msra.mxu0 0
      %1079 = vmatprep.subr.bf16.mxu0 0
      %1080 = vmatpush1.bf16.msra.mxu0 0
      %1081 = vmatprep.mubr.bf16.mxu0 0
      %1082 = vmatmul.mubr.bf16.gmra.mrb[0].mxu0 %v1038
      %v1083 = vpop.f32.mrb[0].mxu0
      %v1084 = vadd.f32 %v1035, %v1083
      %v1085 = vpop.f32.mrb[0].mxu0
      %v1086 = vadd.f32 %v1035, %v1085
      %v1087 = vpop.f32.mrb[0].mxu0
      %v1088 = vpop.f32.mrb[0].mxu0
      %1089 = vdwg.mxu0
      %1090 = vmatprep.subr.bf16.mxu0 0
      %1091 = vmatpush1.bf16.msra.mxu0 %v1047
      %1092 = vmatprep.subr.bf16.mxu0 0
      %1093 = vmatpush1.bf16.msra.mxu0 0
      %1094 = vmatprep.subr.bf16.mxu0 0
      %1095 = vmatpush1.bf16.msra.mxu0 0
      %1096 = vmatprep.subr.bf16.mxu0 0
      %1097 = vmatpush1.bf16.msra.mxu0 0
      %1098 = vmatprep.subr.bf16.mxu0 0
      %1099 = vmatpush1.bf16.msra.mxu0 0
      %1100 = vmatprep.subr.bf16.mxu0 0
      %1101 = vmatpush1.bf16.msra.mxu0 0
      %1102 = vmatprep.subr.bf16.mxu0 0
      %1103 = vmatpush1.bf16.msra.mxu0 0
      %1104 = vmatprep.subr.bf16.mxu0 0
      %1105 = vmatpush1.bf16.msra.mxu0 0
      %1106 = vmatprep.subr.bf16.mxu0 0
      %1107 = vmatpush1.bf16.msra.mxu0 0
      %1108 = vmatprep.subr.bf16.mxu0 0
      %1109 = vmatpush1.bf16.msra.mxu0 0
      %1110 = vmatprep.subr.bf16.mxu0 0
      %1111 = vmatpush1.bf16.msra.mxu0 0
      %1112 = vmatprep.subr.bf16.mxu0 0
      %1113 = vmatpush1.bf16.msra.mxu0 0
      %1114 = vmatprep.subr.bf16.mxu0 0
      %1115 = vmatpush1.bf16.msra.mxu0 0
      %1116 = vmatprep.subr.bf16.mxu0 0
      %1117 = vmatpush1.bf16.msra.mxu0 0
      %1118 = vmatprep.subr.bf16.mxu0 0
      %1119 = vmatpush1.bf16.msra.mxu0 0
      %1120 = vmatprep.subr.bf16.mxu0 0
      %1121 = vmatpush1.bf16.msra.mxu0 0
      %1122 = vmatprep.mubr.bf16.mxu0 0
      %1123 = vmatmul.mubr.bf16.gmra.mrb[0].mxu0 %v1038
      %v1124 = vpop.f32.mrb[0].mxu0
      %v1125 = vadd.f32 %v1035, %v1124
      %v1126 = vpop.f32.mrb[0].mxu0
      %v1127 = vpop.f32.mrb[0].mxu0
      %v1128 = vpop.f32.mrb[0].mxu0
      %1129 = vdwg.mxu0
      %v1131 = vlaneseq
      %v1132 = vshrl.u32 %v1131, 7
      %v1133 = vsub.s32 0, %v1132
      %v1134 = vrot.slane %v435, %v1133
      %v1135 = vlaneseq
      %v1136 = vshrl.u32 %v1135, 7
      %v1137 = vsub.s32 1, %v1136
      %v1138 = vrot.slane %v435, %v1137
      %v1139 = vlaneseq
      %v1140 = vshrl.u32 %v1139, 7
      %v1141 = vsub.s32 2, %v1140
      %v1142 = vrot.slane %v435, %v1141
      %v1146 = vmul.f32 %v1084, %v1134
      %v1147 = vmul.f32 %v1086, %v1138
      %v1148 = vmul.f32 %v1125, %v1142
      %v1149 = vld [vmem:[%s426] sm:$0xff]
      %v1150 = vld [vmem:[%s426 + $0x8] sm:$0xf]
      %v1151 = vxor.u32 %v1146, 2147483648
      %v1152 = vxor.u32 %v1147, 2147483648
      %v1153 = vxor.u32 %v1148, 2147483648
      %v1154 = vmul.f32 %v1151, 1.442695
      %v1155 = vpow.pop %v1154
      %v1156 = vmul.f32 %v1152, 1.442695
      %v1157 = vpow.pop %v1156
      %v1158 = vmul.f32 %v1153, 1.442695
      %v1159 = vpow.pop %v1158
      %v1160 = vadd.f32 %v1155, 1.0
      %v1161 = vadd.f32 %v1157, 1.0
      %v1162 = vadd.f32 %v1159, 1.0
      %v1163 = vrcp.pop %v1160
      %v1164 = vmul.f32 1.0, %v1163
      %v1165 = vrcp.pop %v1161
      %v1166 = vmul.f32 1.0, %v1165
      %v1167 = vrcp.pop %v1162
      %v1168 = vmul.f32 1.0, %v1167
      %v1171 = vcombine.low %v1164, %v1166
      %v1173 = vmul.f32 %v1149, %v1171
      %v1174 = vmul.f32 %v1150, %v1168
      %v1175 = vmul.f32 %v1173, 2.0
      %v1176 = vmul.f32 %v1174, 2.0
      %v1179 = vcombine.low %v1175, %v1175
      %v1180 = vcombine.low %v1176, %v1176
      %v1183 = vsel %vm798, %v1146, %v1179
      %v1184 = vsel %vm798, %v1147, %v1175
      %v1185 = vsel %vm798, %v1148, %v1180
      %v1186 = vld [vmem:[%s9] sm:$0x3]
      %v1187 = vld [vmem:[%s10] sm:$0xf]
      %1188 = vrot.lane.b32.xlu0 %v1183, 19
      %v1189 = vpop.permute.xlu0 %1188
      %1190 = vrot.lane.b32.xlu0 %v1184, 19
      %v1191 = vpop.permute.xlu0 %1190
      %1192 = vrot.lane.b32.xlu0 %v1185, 19
      %v1193 = vpop.permute.xlu0 %1192
      %v1194 = vsel %vm688, %v1191, %v1193
      %v1195 = vsel %vm688, %v1189, %v1191
      %v1196 = vsel %vm688, %v1193, %v1189
      %1197 = vrot.lane.b32.xlu0 %v1183, 18
      %v1198 = vpop.permute.xlu0 %1197
      %1199 = vrot.lane.b32.xlu0 %v1184, 18
      %v1200 = vpop.permute.xlu0 %1199
      %1201 = vrot.lane.b32.xlu0 %v1185, 18
      %v1202 = vpop.permute.xlu0 %1201
      %v1203 = vsel %vm698, %v1200, %v1202
      %v1204 = vsel %vm698, %v1198, %v1200
      %v1205 = vsel %vm698, %v1202, %v1198
      %1206 = vrot.lane.b32.xlu0 %v1183, 17
      %v1207 = vpop.permute.xlu0 %1206
      %1208 = vrot.lane.b32.xlu0 %v1184, 17
      %v1209 = vpop.permute.xlu0 %1208
      %1210 = vrot.lane.b32.xlu0 %v1185, 17
      %v1211 = vpop.permute.xlu0 %1210
      %v1212 = vsel %vm708, %v1209, %v1211
      %v1213 = vsel %vm708, %v1207, %v1209
      %v1214 = vsel %vm708, %v1211, %v1207
      %1215 = vrot.lane.b32.xlu0 %v1183, 1
      %v1216 = vpop.permute.xlu0 %1215
      %1217 = vrot.lane.b32.xlu0 %v1184, 1
      %v1218 = vpop.permute.xlu0 %1217
      %1219 = vrot.lane.b32.xlu0 %v1185, 1
      %v1220 = vpop.permute.xlu0 %1219
      %v1221 = vsel %vm718, %v1218, %v1220
      %v1222 = vsel %vm718, %v1216, %v1218
      %v1223 = vsel %vm718, %v1220, %v1216
      %1224 = vrot.lane.b32.xlu0 %v1183, 127
      %v1225 = vpop.permute.xlu0 %1224
      %1226 = vrot.lane.b32.xlu0 %v1184, 127
      %v1227 = vpop.permute.xlu0 %1226
      %1228 = vrot.lane.b32.xlu0 %v1185, 127
      %v1229 = vpop.permute.xlu0 %1228
      %v1230 = vsel %vm728, %v1227, %v1229
      %v1231 = vsel %vm728, %v1225, %v1227
      %v1232 = vsel %vm728, %v1229, %v1225
      %1233 = vrot.lane.b32.xlu0 %v1183, 111
      %v1234 = vpop.permute.xlu0 %1233
      %1235 = vrot.lane.b32.xlu0 %v1184, 111
      %v1236 = vpop.permute.xlu0 %1235
      %1237 = vrot.lane.b32.xlu0 %v1185, 111
      %v1238 = vpop.permute.xlu0 %1237
      %v1239 = vsel %vm738, %v1236, %v1238
      %v1240 = vsel %vm738, %v1234, %v1236
      %v1241 = vsel %vm738, %v1238, %v1234
      %1242 = vrot.lane.b32.xlu0 %v1183, 110
      %v1243 = vpop.permute.xlu0 %1242
      %1244 = vrot.lane.b32.xlu0 %v1184, 110
      %v1245 = vpop.permute.xlu0 %1244
      %1246 = vrot.lane.b32.xlu0 %v1185, 110
      %v1247 = vpop.permute.xlu0 %1246
      %v1248 = vsel %vm748, %v1245, %v1247
      %v1249 = vsel %vm748, %v1243, %v1245
      %v1250 = vsel %vm748, %v1247, %v1243
      %1251 = vrot.lane.b32.xlu0 %v1183, 109
      %v1252 = vpop.permute.xlu0 %1251
      %1253 = vrot.lane.b32.xlu0 %v1184, 109
      %v1254 = vpop.permute.xlu0 %1253
      %1255 = vrot.lane.b32.xlu0 %v1185, 109
      %v1256 = vpop.permute.xlu0 %1255
      %v1257 = vsel %vm758, %v1254, %v1256
      %v1258 = vsel %vm758, %v1252, %v1254
      %v1259 = vsel %vm758, %v1256, %v1252
      %v1260 = vpack.c.bf16 %v1205, %v1196
      %v1261 = vpack.c.bf16 %v1204, %v1195
      %v1262 = vpack.c.bf16 %v1203, %v1194
      %v1263 = vpack.c.bf16 %v1223, %v1214
      %v1264 = vpack.c.bf16 %v1222, %v1213
      %v1265 = vpack.c.bf16 %v1221, %v1212
      %v1266 = vpack.c.bf16 %v1231, %v1183
      %v1267 = vpack.c.bf16 %v1230, %v1184
      %v1268 = vpack.c.bf16 %v1232, %v1185
      %v1269 = vpack.c.bf16 %v1249, %v1240
      %v1270 = vpack.c.bf16 %v1248, %v1239
      %v1271 = vpack.c.bf16 %v1250, %v1241
      %v1272 = vpack.c.bf16 %v1258, %v1258
      %v1273 = vpack.c.bf16 %v1257, %v1257
      %v1274 = vpack.c.bf16 %v1259, %v1259
      %1276 = vset.pattern.permute.xlu0 0
      %1277 = vperm.xlu0 %1276, %v1187
      %v1278 = vpop.permute.xlu0 %1277
      %vm1280 = vcmask 588800
      %v1282 = vsel %vm1280, %v1186, 0
      %v1285 = vsel %vm798, %v1272, 0
      %v1288 = vsel %vm798, %v1273, 0
      %v1291 = vsel %vm798, %v1274, 0
      %1293 = vmatprep.subr.bf16.mxu0 %v1261
      %1294 = vmatpush1.bf16.msra.mxu0 %v1260
      %1295 = vmatprep.subr.bf16.mxu0 %v1264
      %1296 = vmatpush1.bf16.msra.mxu0 %v1263
      %1297 = vmatprep.subr.bf16.mxu0 %v1267
      %1298 = vmatpush1.bf16.msra.mxu0 %v1266
      %1299 = vmatprep.subr.bf16.mxu0 %v1270
      %1300 = vmatpush1.bf16.msra.mxu0 %v1269
      %1301 = vmatprep.subr.bf16.mxu0 %v1288
      %1302 = vmatpush1.bf16.msra.mxu0 %v1285
      %1303 = vmatprep.subr.bf16.mxu0 0
      %1304 = vmatpush1.bf16.msra.mxu0 0
      %1305 = vmatprep.subr.bf16.mxu0 0
      %1306 = vmatpush1.bf16.msra.mxu0 0
      %1307 = vmatprep.subr.bf16.mxu0 0
      %1308 = vmatpush1.bf16.msra.mxu0 0
      %1309 = vmatprep.subr.bf16.mxu0 0
      %1310 = vmatpush1.bf16.msra.mxu0 0
      %1311 = vmatprep.subr.bf16.mxu0 0
      %1312 = vmatpush1.bf16.msra.mxu0 0
      %1313 = vmatprep.subr.bf16.mxu0 0
      %1314 = vmatpush1.bf16.msra.mxu0 0
      %1315 = vmatprep.subr.bf16.mxu0 0
      %1316 = vmatpush1.bf16.msra.mxu0 0
      %1317 = vmatprep.subr.bf16.mxu0 0
      %1318 = vmatpush1.bf16.msra.mxu0 0
      %1319 = vmatprep.subr.bf16.mxu0 0
      %1320 = vmatpush1.bf16.msra.mxu0 0
      %1321 = vmatprep.subr.bf16.mxu0 0
      %1322 = vmatpush1.bf16.msra.mxu0 0
      %1323 = vmatprep.subr.bf16.mxu0 0
      %1324 = vmatpush1.bf16.msra.mxu0 0
      %1325 = vmatprep.mubr.bf16.mxu0 0
      %1326 = vmatmul.mubr.bf16.gmra.mrb[0].mxu0 %v1282
      %v1327 = vpop.f32.mrb[0].mxu0
      %v1328 = vadd.f32 %v1278, %v1327
      %v1329 = vpop.f32.mrb[0].mxu0
      %v1330 = vadd.f32 %v1278, %v1329
      %v1331 = vpop.f32.mrb[0].mxu0
      %v1332 = vpop.f32.mrb[0].mxu0
      %1333 = vdwg.mxu0
      %1334 = vmatprep.subr.bf16.mxu0 0
      %1335 = vmatpush1.bf16.msra.mxu0 %v1262
      %1336 = vmatprep.subr.bf16.mxu0 0
      %1337 = vmatpush1.bf16.msra.mxu0 %v1265
      %1338 = vmatprep.subr.bf16.mxu0 0
      %1339 = vmatpush1.bf16.msra.mxu0 %v1268
      %1340 = vmatprep.subr.bf16.mxu0 0
      %1341 = vmatpush1.bf16.msra.mxu0 %v1271
      %1342 = vmatprep.subr.bf16.mxu0 0
      %1343 = vmatpush1.bf16.msra.mxu0 %v1291
      %1344 = vmatprep.subr.bf16.mxu0 0
      %1345 = vmatpush1.bf16.msra.mxu0 0
      %1346 = vmatprep.subr.bf16.mxu0 0
      %1347 = vmatpush1.bf16.msra.mxu0 0
      %1348 = vmatprep.subr.bf16.mxu0 0
      %1349 = vmatpush1.bf16.msra.mxu0 0
      %1350 = vmatprep.subr.bf16.mxu0 0
      %1351 = vmatpush1.bf16.msra.mxu0 0
      %1352 = vmatprep.subr.bf16.mxu0 0
      %1353 = vmatpush1.bf16.msra.mxu0 0
      %1354 = vmatprep.subr.bf16.mxu0 0
      %1355 = vmatpush1.bf16.msra.mxu0 0
      %1356 = vmatprep.subr.bf16.mxu0 0
      %1357 = vmatpush1.bf16.msra.mxu0 0
      %1358 = vmatprep.subr.bf16.mxu0 0
      %1359 = vmatpush1.bf16.msra.mxu0 0
      %1360 = vmatprep.subr.bf16.mxu0 0
      %1361 = vmatpush1.bf16.msra.mxu0 0
      %1362 = vmatprep.subr.bf16.mxu0 0
      %1363 = vmatpush1.bf16.msra.mxu0 0
      %1364 = vmatprep.subr.bf16.mxu0 0
      %1365 = vmatpush1.bf16.msra.mxu0 0
      %1366 = vmatprep.mubr.bf16.mxu0 0
      %1367 = vmatmul.mubr.bf16.gmra.mrb[0].mxu0 %v1282
      %v1368 = vpop.f32.mrb[0].mxu0
      %v1369 = vadd.f32 %v1278, %v1368
      %v1370 = vpop.f32.mrb[0].mxu0
      %v1371 = vpop.f32.mrb[0].mxu0
      %v1372 = vpop.f32.mrb[0].mxu0
      %1373 = vdwg.mxu0
      %v1374 = vmax.f32 %v1328, 0.0
      %v1375 = vmax.f32 %v1330, 0.0
      %v1376 = vmax.f32 %v1369, 0.0
      %v1377 = vmul.f32 %v1374, %v1134
      %v1378 = vmul.f32 %v1375, %v1138
      %v1379 = vmul.f32 %v1376, %v1142
      %v1382 = vcombine.low %v1377, %v1378
      %1384 = vst [vmem:[%s432] sm:$0xff] %v1382
      %1385 = vst [vmem:[%s432 + $0x8] sm:$0xf] %v1379
      %s1386 = smul.u32 3, %s23
      %p1387 = scmp.lt.s32.totalorder %s1386, 5
      %s1388 = scalar_select %p1387, %s1386, 5
      %s1389 = smul.addr %s1388, 4
      %s1390 = scalar_lea.vmem %s12, %s1389
      // Predicated region
      $region69: #{_lambda_.9} parent=67 // pred_check
        %p1391 = pneg %p303
      $region70: #{_lambda_.9} parent=67 // pred_check_branch
        %1393 = sbr.rel (%p1391) target = $region72
      $region71: #{_lambda_.9} parent=67 // pred_region
        %s1394 = smul.u32 3, %s23
      $region72: #{_lambda_.9} parent=67 // pred_fallthru
        _
    $region68: #{_lambda_.9} parent=5 // pred_fallthru
      _
    %p1395 = scmp.le.s32.totalorder 2, %s18
    // Predicated region
    $region73: #{_lambda_.9} parent=5 // pred_check
      %p1396 = pneg %p1395
    $region74: #{_lambda_.9} parent=5 // pred_check_branch
      %1398 = sbr.rel (%p1396) target = $region76
    $region75: #{_lambda_.9} parent=5 // pred_region
      %s1399 = ssub.s32 %s18, 2
      // Predicated region
      $region77: #{_lambda_.9} parent=75 // pred_check
        %p1400 = pneg %p309
      $region78: #{_lambda_.9} parent=75 // pred_check_branch
        %1402 = sbr.rel (%p1400) target = $region80
      $region79: #{_lambda_.9} parent=75 // pred_region
        %s1403 = smul.u32 3, %s24
        %p1404 = scmp.lt.s32.totalorder %s1403, 5
        %s1405 = scalar_select %p1404, %s1403, 5
        %s1406 = smul.addr %s1405, 4
        %s1407 = scalar_lea.vmem %s12, %s1406
      $region80: #{_lambda_.9} parent=75 // pred_fallthru
        _
    $region76: #{_lambda_.9} parent=5 // pred_fallthru
      _
  $region6: #{_lambda_.9} parent=0 // loop_footer
    %s22 = sadd.s32 1, %s18
  $region7: #{_lambda_.9} parent=0 // loop_footer_branch
    %17 = sbr.rel target = $region3
  $region8: #{_lambda_.9} parent=0 // loop_exit
    _

</llo_original>
